<compile_context>
chip_gen: v7x
topology: tpu7x:2x2x1
jax: 0.10.0
libtpu: 0.0.40
codegen_flags: <defaults>
</compile_context>

<pallas_src>
import jax
import jax.numpy as jnp
import numpy as np
from jax.experimental import pallas as pl
from jax.experimental.pallas import tpu as pltpu


# ----------------------------------------------------------------------------
# Pallas kernel: per-chunk input projection + fused fwd/bwd GRU recurrence,
# masked mean pool + Gaussian head fused into the final time-chunk step.
# ----------------------------------------------------------------------------
def _source_inference_kernel(
    xf_ref, xb_ref,            # [TC*BB, D] f32   x chunk c (fwd) / chunk NC-1-c (bwd)
    len_ref,                   # [BB, 1]    i32   sequence lengths for this batch block
    wih_f_ref, gbias_f_ref, bhhn_f_ref, whh_f_ref,   # fwd GRU weights (lane-padded)
    wih_b_ref, gbias_b_ref, bhhn_b_ref, whh_b_ref,   # bwd GRU weights
    wmu_ref, bmu_ref, wsig_ref, bsig_ref,            # Gaussian head
    mu_ref, sig_ref, X_ref,    # outputs [BB, Z], [BB, Z], [BB, 2*Hp]
    gxf_s, gxb_s,              # [TC*BB, 3Hp] f32 scratch: per-chunk input gates
    hf_s, af_s, hb_s, ab_s,    # [BB, Hp] f32 scratch: carried hidden / pooled sums
):
    c = pl.program_id(1)          # time-chunk index ("arbitrary", state-carrying axis)
    nc = pl.num_programs(1)
    BB, Hp = hf_s.shape
    TB = xf_ref.shape[0]
    TC = TB // BB
    H2 = 2 * Hp

    @pl.when(c == 0)
    def _init():
        z = jnp.zeros((BB, Hp), jnp.float32)
        hf_s[...] = z
        af_s[...] = z
        hb_s[...] = z
        ab_s[...] = z

    # Per-chunk input projection: one MXU matmul per direction, OFF the serial
    # recurrence path.  b_hh(r,z) is already folded into gbias_* by the wrapper.
    gxf_s[...] = jnp.dot(xf_ref[...], wih_f_ref[...],
                         preferred_element_type=jnp.float32) + gbias_f_ref[...]
    gxb_s[...] = jnp.dot(xb_ref[...], wih_b_ref[...],
                         preferred_element_type=jnp.float32) + gbias_b_ref[...]

    # Hoist loop-invariant loads / broadcasts out of the recurrence.
    whh_f = whh_f_ref[...]
    whh_b = whh_b_ref[...]
    bhhn_f = jnp.broadcast_to(bhhn_f_ref[...], (BB, Hp))
    bhhn_b = jnp.broadcast_to(bhhn_b_ref[...], (BB, Hp))
    lens = len_ref[...]                               # [BB, 1] int32

    t0_f = c * TC                                     # global time of fwd chunk row 0
    t0_b = (nc - 1 - c) * TC                          # global time of bwd chunk row 0

    def gru_cell(gx, h, whh, bhh_n):
        # PyTorch gate order (r, z, n); only the h @ W_hh matmul is on the serial path.
        gh = jnp.dot(h, whh, preferred_element_type=jnp.float32)
        rz = jax.nn.sigmoid(gx[:, :H2] + gh[:, :H2])  # one sigmoid covers r and z
        r = rz[:, :Hp]
        z = rz[:, Hp:]
        n = jnp.tanh(gx[:, H2:] + r * (gh[:, H2:] + bhh_n))
        return (1.0 - z) * n + z * h

    def body(i, carry):
        h_f, a_f, h_b, a_b = carry
        # forward direction, global timestep t0_f + i
        gx_f = gxf_s[pl.ds(pl.multiple_of(i * BB, BB), BB), :]
        hf_new = gru_cell(gx_f, h_f, whh_f, bhhn_f)
        m_f = (t0_f + i) < lens                       # packed-sequence validity
        h_f = jnp.where(m_f, hf_new, h_f)
        a_f = a_f + jnp.where(m_f, h_f, 0.0)
        # backward direction, global timestep t0_b + j (descending within the chunk)
        j = TC - 1 - i
        gx_b = gxb_s[pl.ds(pl.multiple_of(j * BB, BB), BB), :]
        hb_new = gru_cell(gx_b, h_b, whh_b, bhhn_b)
        m_b = (t0_b + j) < lens
        h_b = jnp.where(m_b, hb_new, h_b)
        a_b = a_b + jnp.where(m_b, h_b, 0.0)
        return h_f, a_f, h_b, a_b

    unroll = True if TC <= 8 else 4                   # full unroll on short chunks
    h_f, a_f, h_b, a_b = jax.lax.fori_loop(
        0, TC, body, (hf_s[...], af_s[...], hb_s[...], ab_s[...]), unroll=unroll)

    hf_s[...] = h_f
    af_s[...] = a_f
    hb_s[...] = h_b
    ab_s[...] = a_b

    @pl.when(c == nc - 1)
    def _finalize():
        # meanPool (length==0 guard for padded rows), lane-dense X store, Gaussian head.
        inv_len = 1.0 / jnp.maximum(lens.astype(jnp.float32), 1.0)
        X = jnp.concatenate([a_f * inv_len, a_b * inv_len], axis=1)      # [BB, 2*Hp]
        X_ref[...] = X
        mu_ref[...] = jnp.dot(X, wmu_ref[...],
                              preferred_element_type=jnp.float32) + bmu_ref[...]
        s = jnp.dot(X, wsig_ref[...],
                    preferred_element_type=jnp.float32) + bsig_ref[...]
        # numerically-stable softplus using only exp/log (safe to lower)
        sig_ref[...] = jnp.maximum(s, 0.0) + jnp.log(1.0 + jnp.exp(-jnp.abs(s)))


# ----------------------------------------------------------------------------
# Wrapper
# ----------------------------------------------------------------------------
def _round_up(a, m):
    return -(-a // m) * m


def _pad_gate_cols(w, H, Hp):
    """Pad the three gate column groups [r|z|n] of a [..., 3H] array to width 3*Hp."""
    pad = [(0, 0)] * (w.ndim - 1) + [(0, Hp - H)]
    return jnp.concatenate(
        [jnp.pad(w[..., k * H:(k + 1) * H], pad) for k in range(3)], axis=-1)


def source_inference_forward(x, x_lengths, params, time_chunk=32, batch_block=None):
    """x: [B, T, D] float32; x_lengths: [B] int (sorted descending, as in the module)."""
    B, T, D = x.shape
    H = params["whh_f"].shape[0]
    Z = params["wmu"].shape[1]
    f32 = jnp.float32

    # Lane-aligned hidden size: gate slices become free static views and the X store is
    # lane-dense.  Zero-padded weights/biases keep padded hidden units at exactly 0.
    Hp = _round_up(H, 128)
    G = 3 * Hp

    TC = int(time_chunk)
    NC = pl.cdiv(T, TC)
    T_pad = NC * TC
    if batch_block is None:
        batch_block = min(max(B, 8), 128)             # up to 128 batch rows per MXU pass
    BB = _round_up(batch_block, 8)
    NB = pl.cdiv(B, BB)
    B_pad = NB * BB

    # Blocked, time-major x layout: x_blk[nb, c, i*BB + bb, :] == x[nb*BB+bb, c*TC+i, :].
    # Padded rows / timesteps are masked inside the kernel.
    x_p = jnp.pad(x.astype(f32), ((0, B_pad - B), (0, T_pad - T), (0, 0)))
    x_blk = (x_p.transpose(1, 0, 2)
             .reshape(NC, TC, NB, BB, D)
             .transpose(2, 0, 1, 3, 4)
             .reshape(NB, NC, TC * BB, D))
    lens = jnp.pad(x_lengths.astype(jnp.int32), (0, B_pad - B))[:, None]   # [B_pad, 1]

    def prep_dir(wih, whh, bih, bhh):
        wih_p = _pad_gate_cols(wih.astype(f32), H, Hp)                     # [D, 3Hp]
        whh_p = _pad_gate_cols(
            jnp.pad(whh.astype(f32), ((0, Hp - H), (0, 0))), H, Hp)        # [Hp, 3Hp]
        bih_p = _pad_gate_cols(bih.astype(f32), H, Hp)                     # [1, 3Hp]
        bhh_p = _pad_gate_cols(bhh.astype(f32), H, Hp)
        # Fold b_hh of the r/z gates into the input-side gate bias; the n-gate b_hh
        # stays separate because PyTorch applies it inside r * (...).
        gbias = bih_p.at[:, :2 * Hp].add(bhh_p[:, :2 * Hp])
        bhh_n = bhh_p[:, 2 * Hp:]                                          # [1, Hp]
        return wih_p, whh_p, gbias, bhh_n

    wih_f, whh_f, gbias_f, bhhn_f = prep_dir(params["wih_f"], params["whh_f"],
                                             params["bih_f"], params["bhh_f"])
    wih_b, whh_b, gbias_b, bhhn_b = prep_dir(params["wih_b"], params["whh_b"],
                                             params["bih_b"], params["bhh_b"])

    def pad_head_rows(w):
        # [2H, Z] -> [2Hp, Z]: forward features live at X[:, :H], backward at X[:, Hp:Hp+H]
        return jnp.concatenate(
            [jnp.pad(w[:H].astype(f32), ((0, Hp - H), (0, 0))),
             jnp.pad(w[H:].astype(f32), ((0, Hp - H), (0, 0)))], axis=0)

    wmu = pad_head_rows(params["wmu"])
    wsig = pad_head_rows(params["wsig"])
    bmu = params["bmu"].astype(f32)
    bsig = params["bsig"].astype(f32)

    kernel_inputs = (x_blk, x_blk, lens,
                     wih_f, gbias_f, bhhn_f, whh_f,
                     wih_b, gbias_b, bhhn_b, whh_b,
                     wmu, bmu, wsig, bsig)

    def whole(shape):                                  # constant-index (weight) specs
        n = len(shape)
        return pl.BlockSpec(shape, lambda b, c, n=n: (0,) * n)

    in_specs = [
        pl.BlockSpec((None, None, TC * BB, D), lambda b, c: (b, c, 0, 0)),           # fwd x
        pl.BlockSpec((None, None, TC * BB, D), lambda b, c: (b, NC - 1 - c, 0, 0)),   # bwd x
        pl.BlockSpec((BB, 1), lambda b, c: (b, 0)),
        whole((D, G)), whole((1, G)), whole((1, Hp)), whole((Hp, G)),
        whole((D, G)), whole((1, G)), whole((1, Hp)), whole((Hp, G)),
        whole((2 * Hp, Z)), whole((1, Z)), whole((2 * Hp, Z)), whole((1, Z)),
    ]
    out_specs = (
        pl.BlockSpec((BB, Z), lambda b, c: (b, 0)),
        pl.BlockSpec((BB, Z), lambda b, c: (b, 0)),
        pl.BlockSpec((BB, 2 * Hp), lambda b, c: (b, 0)),
    )
    out_shapes = (
        jax.ShapeDtypeStruct((B_pad, Z), f32),          # mu_x
        jax.ShapeDtypeStruct((B_pad, Z), f32),          # sig_x
        jax.ShapeDtypeStruct((B_pad, 2 * Hp), f32),     # X (lane-padded)
    )
    scratch_shapes = [
        pltpu.VMEM((TC * BB, G), f32), pltpu.VMEM((TC * BB, G), f32),     # chunk gates
        pltpu.VMEM((BB, Hp), f32), pltpu.VMEM((BB, Hp), f32),             # h_f, acc_f
        pltpu.VMEM((BB, Hp), f32), pltpu.VMEM((BB, Hp), f32),             # h_b, acc_b
    ]

    # VMEM budget: chunk-gate scratch + double-buffered weights dominate.  Cap at
    # 48 MiB so v7x (64 MiB physical) keeps headroom for compiler-internal scratch.
    def nb(shape):
        return int(np.prod(shape)) * 4
    resident = (4 * nb((TC * BB, D)) + 2 * nb((BB, 1))
                + 2 * sum(nb(a.shape) for a in kernel_inputs[3:])
                + 2 * (2 * nb((BB, Z)) + nb((BB, 2 * Hp)))
                + 2 * nb((TC * BB, G)) + 4 * nb((BB, Hp)))
    vmem_limit = int(min(48 << 20, max(2 * resident, 16 << 20)))

    mu, sig, Xp = pl.pallas_call(
        _source_inference_kernel,
        out_shape=out_shapes,
        grid_spec=pltpu.PrefetchScalarGridSpec(
            num_scalar_prefetch=0,
            grid=(NB, NC),                  # batch blocks (parallel) x time (stateful)
            in_specs=in_specs,
            out_specs=out_specs,
            scratch_shapes=scratch_shapes,
        ),
        compiler_params=pltpu.CompilerParams(
            dimension_semantics=("parallel", "arbitrary"),
            vmem_limit_bytes=vmem_limit,
        ),
    )(*kernel_inputs)

    # Strip batch padding and hidden lane padding (fwd cols [0:H], bwd cols [Hp:Hp+H]).
    X = jnp.concatenate([Xp[:B, :H], Xp[:B, Hp:Hp + H]], axis=1)
    return mu[:B], sig[:B], X


# ----------------------------------------------------------------------------
# Parameter init (PyTorch-style uniform(-1/sqrt(H), 1/sqrt(H)))
# ----------------------------------------------------------------------------
def init_params(key, src_size, hidden_size, z_dim):
    D, H, Z = src_size, hidden_size, z_dim
    bound = 1.0 / np.sqrt(H)
    keys = jax.random.split(key, 12)

    def u(k, shape):
        return jax.random.uniform(k, shape, jnp.float32, -bound, bound)

    return {
        # weights stored [in, out] for right-multiplication; gate order (r, z, n).
        "wih_f": u(keys[0], (D, 3 * H)),
        "whh_f": u(keys[1], (H, 3 * H)),
        "bih_f": u(keys[2], (1, 3 * H)),
        "bhh_f": u(keys[3], (1, 3 * H)),
        "wih_b": u(keys[4], (D, 3 * H)),
        "whh_b": u(keys[5], (H, 3 * H)),
        "bih_b": u(keys[6], (1, 3 * H)),
        "bhh_b": u(keys[7], (1, 3 * H)),
        "wmu":   u(keys[8], (2 * H, Z)),
        "bmu":   u(keys[9], (1, Z)),
        "wsig":  u(keys[10], (2 * H, Z)),
        "bsig":  u(keys[11], (1, Z)),
    }


# ----------------------------------------------------------------------------
# Pure-JAX f32 reference (module semantics)
# ----------------------------------------------------------------------------
def reference_forward(x, lengths, p):
    B, T, D = x.shape
    H = p["whh_f"].shape[0]
    valid = jnp.arange(T)[None, :] < lengths[:, None]            # [B, T] bool

    def run(forward, wih, whh, bih, bhh):
        h = jnp.zeros((B, H), jnp.float32)
        acc = jnp.zeros((B, H), jnp.float32)
        ts = range(T) if forward else range(T - 1, -1, -1)
        for t in ts:
            x_t = x[:, t, :]
            v = valid[:, t:t + 1]
            gx = x_t @ wih + bih
            gh = h @ whh + bhh
            r = jax.nn.sigmoid(gx[:, :H] + gh[:, :H])
            z = jax.nn.sigmoid(gx[:, H:2 * H] + gh[:, H:2 * H])
            n = jnp.tanh(gx[:, 2 * H:] + r * gh[:, 2 * H:])
            h_new = (1 - z) * n + z * h
            h = jnp.where(v, h_new, h)
            acc = acc + jnp.where(v, h, 0.0)
        return acc

    acc_f = run(True, p["wih_f"], p["whh_f"], p["bih_f"], p["bhh_f"])
    acc_b = run(False, p["wih_b"], p["whh_b"], p["bih_b"], p["bhh_b"])
    X = jnp.concatenate([acc_f, acc_b], axis=1) / lengths[:, None].astype(jnp.float32)
    mu = X @ p["wmu"] + p["bmu"]
    sig = jax.nn.softplus(X @ p["wsig"] + p["bsig"])
    return mu, sig, X


if __name__ == "__main__":
    # Small shapes consistent with the module's forward: x is [batch, time, src_size].
    B, T, D, H, Z = 2, 10, 4, 32, 8

    key = jax.random.PRNGKey(0)
    k_x, k_p = jax.random.split(key)
    x = jax.random.normal(k_x, (B, T, D), jnp.float32)
    x_lengths = jnp.array([10, 6], dtype=jnp.int32)   # sorted descending (pack requirement)
    params = init_params(k_p, D, H, Z)

    # time_chunk=8 exercises the multi-chunk streaming path at this tiny T;
    # the production default is 32 (sized against the 48 MiB VMEM budget).
    mu, sig, X = source_inference_forward(x, x_lengths, params, time_chunk=8)
    jax.block_until_ready((mu, sig, X))

    mu_r, sig_r, X_r = reference_forward(x, x_lengths, params)
    np.testing.assert_allclose(np.asarray(X), np.asarray(X_r), rtol=1e-2, atol=1e-2)
    np.testing.assert_allclose(np.asarray(mu), np.asarray(mu_r), rtol=1e-2, atol=1e-2)
    np.testing.assert_allclose(np.asarray(sig), np.asarray(sig_r), rtol=1e-2, atol=1e-2)

    print("KERNEL_OK")
</pallas_src>

<mosaic_0001>
module attributes {stable_mosaic.version = 11 : i64} {
  func.func @_source_inference_kernel(%arg0: i32, %arg1: i32, %arg2: memref<1x1x64x4xf32, #tpu.memory_space<vmem>>, %arg3: memref<1x1x64x4xf32, #tpu.memory_space<vmem>>, %arg4: memref<8x1xi32, #tpu.memory_space<vmem>>, %arg5: memref<4x384xf32, #tpu.memory_space<vmem>>, %arg6: memref<1x384xf32, #tpu.memory_space<vmem>>, %arg7: memref<1x128xf32, #tpu.memory_space<vmem>>, %arg8: memref<128x384xf32, #tpu.memory_space<vmem>>, %arg9: memref<4x384xf32, #tpu.memory_space<vmem>>, %arg10: memref<1x384xf32, #tpu.memory_space<vmem>>, %arg11: memref<1x128xf32, #tpu.memory_space<vmem>>, %arg12: memref<128x384xf32, #tpu.memory_space<vmem>>, %arg13: memref<256x8xf32, #tpu.memory_space<vmem>>, %arg14: memref<1x8xf32, #tpu.memory_space<vmem>>, %arg15: memref<256x8xf32, #tpu.memory_space<vmem>>, %arg16: memref<1x8xf32, #tpu.memory_space<vmem>>, %arg17: memref<8x8xf32, #tpu.memory_space<vmem>>, %arg18: memref<8x8xf32, #tpu.memory_space<vmem>>, %arg19: memref<8x256xf32, #tpu.memory_space<vmem>>, %arg20: memref<64x384xf32, #tpu.memory_space<vmem>>, %arg21: memref<64x384xf32, #tpu.memory_space<vmem>>, %arg22: memref<8x128xf32, #tpu.memory_space<vmem>>, %arg23: memref<8x128xf32, #tpu.memory_space<vmem>>, %arg24: memref<8x128xf32, #tpu.memory_space<vmem>>, %arg25: memref<8x128xf32, #tpu.memory_space<vmem>>) attributes {dimension_semantics = [#tpu.dimension_semantics<parallel>, #tpu.dimension_semantics<arbitrary>], iteration_bounds = array<i64: 1, 2>, scalar_prefetch = 0 : i64, scratch_operands = 6 : i64, tpu.core_type = #tpu.core_type<tc>, window_params = [{transform_indices = @transform_0, window_bounds = array<i64: 1, 1, 64, 4>}, {transform_indices = @transform_1, window_bounds = array<i64: 1, 1, 64, 4>}, {transform_indices = @transform_2, window_bounds = array<i64: 8, 1>}, {pipeline_mode = #tpu.pipeline_mode<synchronous>, transform_indices = @transform_3, window_bounds = array<i64: 4, 384>}, {pipeline_mode = #tpu.pipeline_mode<synchronous>, transform_indices = @transform_4, window_bounds = array<i64: 1, 384>}, {pipeline_mode = #tpu.pipeline_mode<synchronous>, transform_indices = @transform_5, window_bounds = array<i64: 1, 128>}, {pipeline_mode = #tpu.pipeline_mode<synchronous>, transform_indices = @transform_6, window_bounds = array<i64: 128, 384>}, {pipeline_mode = #tpu.pipeline_mode<synchronous>, transform_indices = @transform_7, window_bounds = array<i64: 4, 384>}, {pipeline_mode = #tpu.pipeline_mode<synchronous>, transform_indices = @transform_8, window_bounds = array<i64: 1, 384>}, {pipeline_mode = #tpu.pipeline_mode<synchronous>, transform_indices = @transform_9, window_bounds = array<i64: 1, 128>}, {pipeline_mode = #tpu.pipeline_mode<synchronous>, transform_indices = @transform_10, window_bounds = array<i64: 128, 384>}, {pipeline_mode = #tpu.pipeline_mode<synchronous>, transform_indices = @transform_11, window_bounds = array<i64: 256, 8>}, {pipeline_mode = #tpu.pipeline_mode<synchronous>, transform_indices = @transform_12, window_bounds = array<i64: 1, 8>}, {pipeline_mode = #tpu.pipeline_mode<synchronous>, transform_indices = @transform_13, window_bounds = array<i64: 256, 8>}, {pipeline_mode = #tpu.pipeline_mode<synchronous>, transform_indices = @transform_14, window_bounds = array<i64: 1, 8>}, {transform_indices = @transform_15, window_bounds = array<i64: 8, 8>}, {transform_indices = @transform_16, window_bounds = array<i64: 8, 8>}, {transform_indices = @transform_17, window_bounds = array<i64: 8, 256>}]} {
    %c0_i32 = arith.constant 0 : i32
    %0 = arith.cmpi eq, %arg1, %c0_i32 : i32
    %1 = arith.extui %0 : i1 to i32
    %c0_i32_0 = arith.constant 0 : i32
    %2 = arith.cmpi ne, %1, %c0_i32_0 : i32
    scf.if %2 {
      %cst_157 = arith.constant 0.000000e+00 : f32
      %642 = vector.broadcast %cst_157 : f32 to vector<8x128xf32>
      %c0_158 = arith.constant 0 : index
      %c0_159 = arith.constant 0 : index
      %643 = vector.load %arg22[%c0_158, %c0_159] : memref<8x128xf32, #tpu.memory_space<vmem>>, vector<8x128xf32>
      tpu.vector_store %arg22[%c0_158, %c0_159], %642 {strides = array<i32>} : memref<8x128xf32, #tpu.memory_space<vmem>>, vector<8x128xf32>,
      %c0_160 = arith.constant 0 : index
      %c0_161 = arith.constant 0 : index
      %644 = vector.load %arg23[%c0_160, %c0_161] : memref<8x128xf32, #tpu.memory_space<vmem>>, vector<8x128xf32>
      tpu.vector_store %arg23[%c0_160, %c0_161], %642 {strides = array<i32>} : memref<8x128xf32, #tpu.memory_space<vmem>>, vector<8x128xf32>,
      %c0_162 = arith.constant 0 : index
      %c0_163 = arith.constant 0 : index
      %645 = vector.load %arg24[%c0_162, %c0_163] : memref<8x128xf32, #tpu.memory_space<vmem>>, vector<8x128xf32>
      tpu.vector_store %arg24[%c0_162, %c0_163], %642 {strides = array<i32>} : memref<8x128xf32, #tpu.memory_space<vmem>>, vector<8x128xf32>,
      %c0_164 = arith.constant 0 : index
      %c0_165 = arith.constant 0 : index
      %646 = vector.load %arg25[%c0_164, %c0_165] : memref<8x128xf32, #tpu.memory_space<vmem>>, vector<8x128xf32>
      tpu.vector_store %arg25[%c0_164, %c0_165], %642 {strides = array<i32>} : memref<8x128xf32, #tpu.memory_space<vmem>>, vector<8x128xf32>,
    } else {
    }
    %c0 = arith.constant 0 : index
    %c0_1 = arith.constant 0 : index
    %c0_2 = arith.constant 0 : index
    %c0_3 = arith.constant 0 : index
    %3 = vector.load %arg2[%c0, %c0_1, %c0_2, %c0_3] : memref<1x1x64x4xf32, #tpu.memory_space<vmem>>, vector<1x1x64x4xf32>
    %4 = vector.shape_cast %3 : vector<1x1x64x4xf32> to vector<64x4xf32>
    %c0_4 = arith.constant 0 : index
    %c0_5 = arith.constant 0 : index
    %5 = vector.load %arg5[%c0_4, %c0_5] : memref<4x384xf32, #tpu.memory_space<vmem>>, vector<4x384xf32>
    %cst = arith.constant dense<0.000000e+00> : vector<64x384xf32>
    %6 = tpu.matmul %4, %5, %cst {dimension_numbers = #tpu.dot_dimension_numbers<[1], [0], [0], [1], [0, 0, 1, 1], [], []>} : vector<64x4xf32>, vector<4x384xf32>, vector<64x384xf32> -> vector<64x384xf32>
    %c0_6 = arith.constant 0 : index
    %c0_7 = arith.constant 0 : index
    %7 = vector.load %arg6[%c0_6, %c0_7] : memref<1x384xf32, #tpu.memory_space<vmem>>, vector<1x384xf32>
    %8 = vector.broadcast %7 : vector<1x384xf32> to vector<64x384xf32>
    %9 = arith.addf %6, %8 : vector<64x384xf32>
    %c0_8 = arith.constant 0 : index
    %c0_9 = arith.constant 0 : index
    %10 = vector.load %arg20[%c0_8, %c0_9] : memref<64x384xf32, #tpu.memory_space<vmem>>, vector<64x384xf32>
    tpu.vector_store %arg20[%c0_8, %c0_9], %9 {strides = array<i32>} : memref<64x384xf32, #tpu.memory_space<vmem>>, vector<64x384xf32>,
    %c0_10 = arith.constant 0 : index
    %c0_11 = arith.constant 0 : index
    %c0_12 = arith.constant 0 : index
    %c0_13 = arith.constant 0 : index
    %11 = vector.load %arg3[%c0_10, %c0_11, %c0_12, %c0_13] : memref<1x1x64x4xf32, #tpu.memory_space<vmem>>, vector<1x1x64x4xf32>
    %12 = vector.shape_cast %11 : vector<1x1x64x4xf32> to vector<64x4xf32>
    %c0_14 = arith.constant 0 : index
    %c0_15 = arith.constant 0 : index
    %13 = vector.load %arg9[%c0_14, %c0_15] : memref<4x384xf32, #tpu.memory_space<vmem>>, vector<4x384xf32>
    %cst_16 = arith.constant dense<0.000000e+00> : vector<64x384xf32>
    %14 = tpu.matmul %12, %13, %cst_16 {dimension_numbers = #tpu.dot_dimension_numbers<[1], [0], [0], [1], [0, 0, 1, 1], [], []>} : vector<64x4xf32>, vector<4x384xf32>, vector<64x384xf32> -> vector<64x384xf32>
    %c0_17 = arith.constant 0 : index
    %c0_18 = arith.constant 0 : index
    %15 = vector.load %arg10[%c0_17, %c0_18] : memref<1x384xf32, #tpu.memory_space<vmem>>, vector<1x384xf32>
    %16 = vector.broadcast %15 : vector<1x384xf32> to vector<64x384xf32>
    %17 = arith.addf %14, %16 : vector<64x384xf32>
    %c0_19 = arith.constant 0 : index
    %c0_20 = arith.constant 0 : index
    %18 = vector.load %arg21[%c0_19, %c0_20] : memref<64x384xf32, #tpu.memory_space<vmem>>, vector<64x384xf32>
    tpu.vector_store %arg21[%c0_19, %c0_20], %17 {strides = array<i32>} : memref<64x384xf32, #tpu.memory_space<vmem>>, vector<64x384xf32>,
    %c0_21 = arith.constant 0 : index
    %c0_22 = arith.constant 0 : index
    %19 = vector.load %arg8[%c0_21, %c0_22] : memref<128x384xf32, #tpu.memory_space<vmem>>, vector<128x384xf32>
    %c0_23 = arith.constant 0 : index
    %c0_24 = arith.constant 0 : index
    %20 = vector.load %arg12[%c0_23, %c0_24] : memref<128x384xf32, #tpu.memory_space<vmem>>, vector<128x384xf32>
    %c0_25 = arith.constant 0 : index
    %c0_26 = arith.constant 0 : index
    %21 = vector.load %arg7[%c0_25, %c0_26] : memref<1x128xf32, #tpu.memory_space<vmem>>, vector<1x128xf32>
    %22 = vector.shape_cast %21 : vector<1x128xf32> to vector<1x128xf32>
    %23 = vector.broadcast %22 : vector<1x128xf32> to vector<8x128xf32>
    %c0_27 = arith.constant 0 : index
    %c0_28 = arith.constant 0 : index
    %24 = vector.load %arg11[%c0_27, %c0_28] : memref<1x128xf32, #tpu.memory_space<vmem>>, vector<1x128xf32>
    %25 = vector.shape_cast %24 : vector<1x128xf32> to vector<1x128xf32>
    %26 = vector.broadcast %25 : vector<1x128xf32> to vector<8x128xf32>
    %c0_29 = arith.constant 0 : index
    %c0_30 = arith.constant 0 : index
    %27 = vector.load %arg4[%c0_29, %c0_30] : memref<8x1xi32, #tpu.memory_space<vmem>>, vector<8x1xi32>
    %c8_i32 = arith.constant 8 : i32
    %28 = arith.muli %arg1, %c8_i32 : i32
    %c1_i32 = arith.constant 1 : i32
    %29 = arith.subi %c1_i32, %arg1 : i32
    %c8_i32_31 = arith.constant 8 : i32
    %30 = arith.muli %29, %c8_i32_31 : i32
    %c0_32 = arith.constant 0 : index
    %c0_33 = arith.constant 0 : index
    %31 = vector.load %arg22[%c0_32, %c0_33] : memref<8x128xf32, #tpu.memory_space<vmem>>, vector<8x128xf32>
    %c0_34 = arith.constant 0 : index
    %c0_35 = arith.constant 0 : index
    %32 = vector.load %arg23[%c0_34, %c0_35] : memref<8x128xf32, #tpu.memory_space<vmem>>, vector<8x128xf32>
    %c0_36 = arith.constant 0 : index
    %c0_37 = arith.constant 0 : index
    %33 = vector.load %arg24[%c0_36, %c0_37] : memref<8x128xf32, #tpu.memory_space<vmem>>, vector<8x128xf32>
    %c0_38 = arith.constant 0 : index
    %c0_39 = arith.constant 0 : index
    %34 = vector.load %arg25[%c0_38, %c0_39] : memref<8x128xf32, #tpu.memory_space<vmem>>, vector<8x128xf32>
    %c0_i32_40 = arith.constant 0 : i32
    %c8_i32_41 = arith.constant 8 : i32
    %35 = arith.muli %c0_i32_40, %c8_i32_41 : i32
    %36 = tpu.assume_multiple %35, 8 : i32
    %37 = arith.index_cast %36 : i32 to index
    %c0_42 = arith.constant 0 : index
    %38 = vector.load %arg20[%37, %c0_42] : memref<64x384xf32, #tpu.memory_space<vmem>>, vector<8x384xf32>
    %cst_43 = arith.constant dense<0.000000e+00> : vector<8x384xf32>
    %39 = tpu.matmul %31, %19, %cst_43 {dimension_numbers = #tpu.dot_dimension_numbers<[1], [0], [0], [1], [0, 0, 1, 1], [], []>} : vector<8x128xf32>, vector<128x384xf32>, vector<8x384xf32> -> vector<8x384xf32>
    %40 = vector.extract_strided_slice %38 {offsets = [0, 0], sizes = [8, 256], strides = [1, 1]} : vector<8x384xf32> to vector<8x256xf32>
    %41 = vector.extract_strided_slice %39 {offsets = [0, 0], sizes = [8, 256], strides = [1, 1]} : vector<8x384xf32> to vector<8x256xf32>
    %42 = arith.addf %40, %41 : vector<8x256xf32>
    %43 = arith.negf %42 : vector<8x256xf32>
    %44 = math.exp %43 : vector<8x256xf32>
    %cst_44 = arith.constant 1.000000e+00 : f32
    %45 = vector.broadcast %cst_44 : f32 to vector<8x256xf32>
    %46 = arith.addf %45, %44 : vector<8x256xf32>
    %47 = arith.divf %45, %46 : vector<8x256xf32>
    %48 = vector.extract_strided_slice %47 {offsets = [0, 0], sizes = [8, 128], strides = [1, 1]} : vector<8x256xf32> to vector<8x128xf32>
    %49 = vector.extract_strided_slice %47 {offsets = [0, 128], sizes = [8, 128], strides = [1, 1]} : vector<8x256xf32> to vector<8x128xf32>
    %50 = vector.extract_strided_slice %38 {offsets = [0, 256], sizes = [8, 128], strides = [1, 1]} : vector<8x384xf32> to vector<8x128xf32>
    %51 = vector.extract_strided_slice %39 {offsets = [0, 256], sizes = [8, 128], strides = [1, 1]} : vector<8x384xf32> to vector<8x128xf32>
    %52 = arith.addf %51, %23 : vector<8x128xf32>
    %53 = arith.mulf %48, %52 : vector<8x128xf32>
    %54 = arith.addf %50, %53 : vector<8x128xf32>
    %55 = math.tanh %54 : vector<8x128xf32>
    %cst_45 = arith.constant 1.000000e+00 : f32
    %56 = vector.broadcast %cst_45 : f32 to vector<8x128xf32>
    %57 = arith.subf %56, %49 : vector<8x128xf32>
    %58 = arith.mulf %57, %55 : vector<8x128xf32>
    %59 = arith.mulf %49, %31 : vector<8x128xf32>
    %60 = arith.addf %58, %59 : vector<8x128xf32>
    %61 = arith.addi %28, %c0_i32_40 : i32
    %62 = vector.broadcast %61 : i32 to vector<8x1xi32>
    %63 = arith.cmpi slt, %62, %27 : vector<8x1xi32>
    %64 = vector.shape_cast %63 : vector<8x1xi1> to vector<8x1xi1>
    %65 = vector.broadcast %64 : vector<8x1xi1> to vector<8x128xi1>
    %66 = arith.select %65, %60, %31 : vector<8x128xi1>, vector<8x128xf32>
    %cst_46 = arith.constant 0.000000e+00 : f32
    %67 = vector.shape_cast %63 : vector<8x1xi1> to vector<8x1xi1>
    %68 = vector.broadcast %67 : vector<8x1xi1> to vector<8x128xi1>
    %69 = vector.broadcast %cst_46 : f32 to vector<8x128xf32>
    %70 = arith.select %68, %66, %69 : vector<8x128xi1>, vector<8x128xf32>
    %71 = arith.addf %32, %70 : vector<8x128xf32>
    %c7_i32 = arith.constant 7 : i32
    %72 = arith.subi %c7_i32, %c0_i32_40 : i32
    %c8_i32_47 = arith.constant 8 : i32
    %73 = arith.muli %72, %c8_i32_47 : i32
    %74 = tpu.assume_multiple %73, 8 : i32
    %75 = arith.index_cast %74 : i32 to index
    %c0_48 = arith.constant 0 : index
    %76 = vector.load %arg21[%75, %c0_48] : memref<64x384xf32, #tpu.memory_space<vmem>>, vector<8x384xf32>
    %cst_49 = arith.constant dense<0.000000e+00> : vector<8x384xf32>
    %77 = tpu.matmul %33, %20, %cst_49 {dimension_numbers = #tpu.dot_dimension_numbers<[1], [0], [0], [1], [0, 0, 1, 1], [], []>} : vector<8x128xf32>, vector<128x384xf32>, vector<8x384xf32> -> vector<8x384xf32>
    %78 = vector.extract_strided_slice %76 {offsets = [0, 0], sizes = [8, 256], strides = [1, 1]} : vector<8x384xf32> to vector<8x256xf32>
    %79 = vector.extract_strided_slice %77 {offsets = [0, 0], sizes = [8, 256], strides = [1, 1]} : vector<8x384xf32> to vector<8x256xf32>
    %80 = arith.addf %78, %79 : vector<8x256xf32>
    %81 = arith.negf %80 : vector<8x256xf32>
    %82 = math.exp %81 : vector<8x256xf32>
    %cst_50 = arith.constant 1.000000e+00 : f32
    %83 = vector.broadcast %cst_50 : f32 to vector<8x256xf32>
    %84 = arith.addf %83, %82 : vector<8x256xf32>
    %85 = arith.divf %83, %84 : vector<8x256xf32>
    %86 = vector.extract_strided_slice %85 {offsets = [0, 0], sizes = [8, 128], strides = [1, 1]} : vector<8x256xf32> to vector<8x128xf32>
    %87 = vector.extract_strided_slice %85 {offsets = [0, 128], sizes = [8, 128], strides = [1, 1]} : vector<8x256xf32> to vector<8x128xf32>
    %88 = vector.extract_strided_slice %76 {offsets = [0, 256], sizes = [8, 128], strides = [1, 1]} : vector<8x384xf32> to vector<8x128xf32>
    %89 = vector.extract_strided_slice %77 {offsets = [0, 256], sizes = [8, 128], strides = [1, 1]} : vector<8x384xf32> to vector<8x128xf32>
    %90 = arith.addf %89, %26 : vector<8x128xf32>
    %91 = arith.mulf %86, %90 : vector<8x128xf32>
    %92 = arith.addf %88, %91 : vector<8x128xf32>
    %93 = math.tanh %92 : vector<8x128xf32>
    %cst_51 = arith.constant 1.000000e+00 : f32
    %94 = vector.broadcast %cst_51 : f32 to vector<8x128xf32>
    %95 = arith.subf %94, %87 : vector<8x128xf32>
    %96 = arith.mulf %95, %93 : vector<8x128xf32>
    %97 = arith.mulf %87, %33 : vector<8x128xf32>
    %98 = arith.addf %96, %97 : vector<8x128xf32>
    %99 = arith.addi %30, %72 : i32
    %100 = vector.broadcast %99 : i32 to vector<8x1xi32>
    %101 = arith.cmpi slt, %100, %27 : vector<8x1xi32>
    %102 = vector.shape_cast %101 : vector<8x1xi1> to vector<8x1xi1>
    %103 = vector.broadcast %102 : vector<8x1xi1> to vector<8x128xi1>
    %104 = arith.select %103, %98, %33 : vector<8x128xi1>, vector<8x128xf32>
    %cst_52 = arith.constant 0.000000e+00 : f32
    %105 = vector.shape_cast %101 : vector<8x1xi1> to vector<8x1xi1>
    %106 = vector.broadcast %105 : vector<8x1xi1> to vector<8x128xi1>
    %107 = vector.broadcast %cst_52 : f32 to vector<8x128xf32>
    %108 = arith.select %106, %104, %107 : vector<8x128xi1>, vector<8x128xf32>
    %109 = arith.addf %34, %108 : vector<8x128xf32>
    %c1_i32_53 = arith.constant 1 : i32
    %c8_i32_54 = arith.constant 8 : i32
    %110 = arith.muli %c1_i32_53, %c8_i32_54 : i32
    %111 = tpu.assume_multiple %110, 8 : i32
    %112 = arith.index_cast %111 : i32 to index
    %c0_55 = arith.constant 0 : index
    %113 = vector.load %arg20[%112, %c0_55] : memref<64x384xf32, #tpu.memory_space<vmem>>, vector<8x384xf32>
    %cst_56 = arith.constant dense<0.000000e+00> : vector<8x384xf32>
    %114 = tpu.matmul %66, %19, %cst_56 {dimension_numbers = #tpu.dot_dimension_numbers<[1], [0], [0], [1], [0, 0, 1, 1], [], []>} : vector<8x128xf32>, vector<128x384xf32>, vector<8x384xf32> -> vector<8x384xf32>
    %115 = vector.extract_strided_slice %113 {offsets = [0, 0], sizes = [8, 256], strides = [1, 1]} : vector<8x384xf32> to vector<8x256xf32>
    %116 = vector.extract_strided_slice %114 {offsets = [0, 0], sizes = [8, 256], strides = [1, 1]} : vector<8x384xf32> to vector<8x256xf32>
    %117 = arith.addf %115, %116 : vector<8x256xf32>
    %118 = arith.negf %117 : vector<8x256xf32>
    %119 = math.exp %118 : vector<8x256xf32>
    %cst_57 = arith.constant 1.000000e+00 : f32
    %120 = vector.broadcast %cst_57 : f32 to vector<8x256xf32>
    %121 = arith.addf %120, %119 : vector<8x256xf32>
    %122 = arith.divf %120, %121 : vector<8x256xf32>
    %123 = vector.extract_strided_slice %122 {offsets = [0, 0], sizes = [8, 128], strides = [1, 1]} : vector<8x256xf32> to vector<8x128xf32>
    %124 = vector.extract_strided_slice %122 {offsets = [0, 128], sizes = [8, 128], strides = [1, 1]} : vector<8x256xf32> to vector<8x128xf32>
    %125 = vector.extract_strided_slice %113 {offsets = [0, 256], sizes = [8, 128], strides = [1, 1]} : vector<8x384xf32> to vector<8x128xf32>
    %126 = vector.extract_strided_slice %114 {offsets = [0, 256], sizes = [8, 128], strides = [1, 1]} : vector<8x384xf32> to vector<8x128xf32>
    %127 = arith.addf %126, %23 : vector<8x128xf32>
    %128 = arith.mulf %123, %127 : vector<8x128xf32>
    %129 = arith.addf %125, %128 : vector<8x128xf32>
    %130 = math.tanh %129 : vector<8x128xf32>
    %cst_58 = arith.constant 1.000000e+00 : f32
    %131 = vector.broadcast %cst_58 : f32 to vector<8x128xf32>
    %132 = arith.subf %131, %124 : vector<8x128xf32>
    %133 = arith.mulf %132, %130 : vector<8x128xf32>
    %134 = arith.mulf %124, %66 : vector<8x128xf32>
    %135 = arith.addf %133, %134 : vector<8x128xf32>
    %136 = arith.addi %28, %c1_i32_53 : i32
    %137 = vector.broadcast %136 : i32 to vector<8x1xi32>
    %138 = arith.cmpi slt, %137, %27 : vector<8x1xi32>
    %139 = vector.shape_cast %138 : vector<8x1xi1> to vector<8x1xi1>
    %140 = vector.broadcast %139 : vector<8x1xi1> to vector<8x128xi1>
    %141 = arith.select %140, %135, %66 : vector<8x128xi1>, vector<8x128xf32>
    %cst_59 = arith.constant 0.000000e+00 : f32
    %142 = vector.shape_cast %138 : vector<8x1xi1> to vector<8x1xi1>
    %143 = vector.broadcast %142 : vector<8x1xi1> to vector<8x128xi1>
    %144 = vector.broadcast %cst_59 : f32 to vector<8x128xf32>
    %145 = arith.select %143, %141, %144 : vector<8x128xi1>, vector<8x128xf32>
    %146 = arith.addf %71, %145 : vector<8x128xf32>
    %c7_i32_60 = arith.constant 7 : i32
    %147 = arith.subi %c7_i32_60, %c1_i32_53 : i32
    %c8_i32_61 = arith.constant 8 : i32
    %148 = arith.muli %147, %c8_i32_61 : i32
    %149 = tpu.assume_multiple %148, 8 : i32
    %150 = arith.index_cast %149 : i32 to index
    %c0_62 = arith.constant 0 : index
    %151 = vector.load %arg21[%150, %c0_62] : memref<64x384xf32, #tpu.memory_space<vmem>>, vector<8x384xf32>
    %cst_63 = arith.constant dense<0.000000e+00> : vector<8x384xf32>
    %152 = tpu.matmul %104, %20, %cst_63 {dimension_numbers = #tpu.dot_dimension_numbers<[1], [0], [0], [1], [0, 0, 1, 1], [], []>} : vector<8x128xf32>, vector<128x384xf32>, vector<8x384xf32> -> vector<8x384xf32>
    %153 = vector.extract_strided_slice %151 {offsets = [0, 0], sizes = [8, 256], strides = [1, 1]} : vector<8x384xf32> to vector<8x256xf32>
    %154 = vector.extract_strided_slice %152 {offsets = [0, 0], sizes = [8, 256], strides = [1, 1]} : vector<8x384xf32> to vector<8x256xf32>
    %155 = arith.addf %153, %154 : vector<8x256xf32>
    %156 = arith.negf %155 : vector<8x256xf32>
    %157 = math.exp %156 : vector<8x256xf32>
    %cst_64 = arith.constant 1.000000e+00 : f32
    %158 = vector.broadcast %cst_64 : f32 to vector<8x256xf32>
    %159 = arith.addf %158, %157 : vector<8x256xf32>
    %160 = arith.divf %158, %159 : vector<8x256xf32>
    %161 = vector.extract_strided_slice %160 {offsets = [0, 0], sizes = [8, 128], strides = [1, 1]} : vector<8x256xf32> to vector<8x128xf32>
    %162 = vector.extract_strided_slice %160 {offsets = [0, 128], sizes = [8, 128], strides = [1, 1]} : vector<8x256xf32> to vector<8x128xf32>
    %163 = vector.extract_strided_slice %151 {offsets = [0, 256], sizes = [8, 128], strides = [1, 1]} : vector<8x384xf32> to vector<8x128xf32>
    %164 = vector.extract_strided_slice %152 {offsets = [0, 256], sizes = [8, 128], strides = [1, 1]} : vector<8x384xf32> to vector<8x128xf32>
    %165 = arith.addf %164, %26 : vector<8x128xf32>
    %166 = arith.mulf %161, %165 : vector<8x128xf32>
    %167 = arith.addf %163, %166 : vector<8x128xf32>
    %168 = math.tanh %167 : vector<8x128xf32>
    %cst_65 = arith.constant 1.000000e+00 : f32
    %169 = vector.broadcast %cst_65 : f32 to vector<8x128xf32>
    %170 = arith.subf %169, %162 : vector<8x128xf32>
    %171 = arith.mulf %170, %168 : vector<8x128xf32>
    %172 = arith.mulf %162, %104 : vector<8x128xf32>
    %173 = arith.addf %171, %172 : vector<8x128xf32>
    %174 = arith.addi %30, %147 : i32
    %175 = vector.broadcast %174 : i32 to vector<8x1xi32>
    %176 = arith.cmpi slt, %175, %27 : vector<8x1xi32>
    %177 = vector.shape_cast %176 : vector<8x1xi1> to vector<8x1xi1>
    %178 = vector.broadcast %177 : vector<8x1xi1> to vector<8x128xi1>
    %179 = arith.select %178, %173, %104 : vector<8x128xi1>, vector<8x128xf32>
    %cst_66 = arith.constant 0.000000e+00 : f32
    %180 = vector.shape_cast %176 : vector<8x1xi1> to vector<8x1xi1>
    %181 = vector.broadcast %180 : vector<8x1xi1> to vector<8x128xi1>
    %182 = vector.broadcast %cst_66 : f32 to vector<8x128xf32>
    %183 = arith.select %181, %179, %182 : vector<8x128xi1>, vector<8x128xf32>
    %184 = arith.addf %109, %183 : vector<8x128xf32>
    %c2_i32 = arith.constant 2 : i32
    %c8_i32_67 = arith.constant 8 : i32
    %185 = arith.muli %c2_i32, %c8_i32_67 : i32
    %186 = tpu.assume_multiple %185, 8 : i32
    %187 = arith.index_cast %186 : i32 to index
    %c0_68 = arith.constant 0 : index
    %188 = vector.load %arg20[%187, %c0_68] : memref<64x384xf32, #tpu.memory_space<vmem>>, vector<8x384xf32>
    %cst_69 = arith.constant dense<0.000000e+00> : vector<8x384xf32>
    %189 = tpu.matmul %141, %19, %cst_69 {dimension_numbers = #tpu.dot_dimension_numbers<[1], [0], [0], [1], [0, 0, 1, 1], [], []>} : vector<8x128xf32>, vector<128x384xf32>, vector<8x384xf32> -> vector<8x384xf32>
    %190 = vector.extract_strided_slice %188 {offsets = [0, 0], sizes = [8, 256], strides = [1, 1]} : vector<8x384xf32> to vector<8x256xf32>
    %191 = vector.extract_strided_slice %189 {offsets = [0, 0], sizes = [8, 256], strides = [1, 1]} : vector<8x384xf32> to vector<8x256xf32>
    %192 = arith.addf %190, %191 : vector<8x256xf32>
    %193 = arith.negf %192 : vector<8x256xf32>
    %194 = math.exp %193 : vector<8x256xf32>
    %cst_70 = arith.constant 1.000000e+00 : f32
    %195 = vector.broadcast %cst_70 : f32 to vector<8x256xf32>
    %196 = arith.addf %195, %194 : vector<8x256xf32>
    %197 = arith.divf %195, %196 : vector<8x256xf32>
    %198 = vector.extract_strided_slice %197 {offsets = [0, 0], sizes = [8, 128], strides = [1, 1]} : vector<8x256xf32> to vector<8x128xf32>
    %199 = vector.extract_strided_slice %197 {offsets = [0, 128], sizes = [8, 128], strides = [1, 1]} : vector<8x256xf32> to vector<8x128xf32>
    %200 = vector.extract_strided_slice %188 {offsets = [0, 256], sizes = [8, 128], strides = [1, 1]} : vector<8x384xf32> to vector<8x128xf32>
    %201 = vector.extract_strided_slice %189 {offsets = [0, 256], sizes = [8, 128], strides = [1, 1]} : vector<8x384xf32> to vector<8x128xf32>
    %202 = arith.addf %201, %23 : vector<8x128xf32>
    %203 = arith.mulf %198, %202 : vector<8x128xf32>
    %204 = arith.addf %200, %203 : vector<8x128xf32>
    %205 = math.tanh %204 : vector<8x128xf32>
    %cst_71 = arith.constant 1.000000e+00 : f32
    %206 = vector.broadcast %cst_71 : f32 to vector<8x128xf32>
    %207 = arith.subf %206, %199 : vector<8x128xf32>
    %208 = arith.mulf %207, %205 : vector<8x128xf32>
    %209 = arith.mulf %199, %141 : vector<8x128xf32>
    %210 = arith.addf %208, %209 : vector<8x128xf32>
    %211 = arith.addi %28, %c2_i32 : i32
    %212 = vector.broadcast %211 : i32 to vector<8x1xi32>
    %213 = arith.cmpi slt, %212, %27 : vector<8x1xi32>
    %214 = vector.shape_cast %213 : vector<8x1xi1> to vector<8x1xi1>
    %215 = vector.broadcast %214 : vector<8x1xi1> to vector<8x128xi1>
    %216 = arith.select %215, %210, %141 : vector<8x128xi1>, vector<8x128xf32>
    %cst_72 = arith.constant 0.000000e+00 : f32
    %217 = vector.shape_cast %213 : vector<8x1xi1> to vector<8x1xi1>
    %218 = vector.broadcast %217 : vector<8x1xi1> to vector<8x128xi1>
    %219 = vector.broadcast %cst_72 : f32 to vector<8x128xf32>
    %220 = arith.select %218, %216, %219 : vector<8x128xi1>, vector<8x128xf32>
    %221 = arith.addf %146, %220 : vector<8x128xf32>
    %c7_i32_73 = arith.constant 7 : i32
    %222 = arith.subi %c7_i32_73, %c2_i32 : i32
    %c8_i32_74 = arith.constant 8 : i32
    %223 = arith.muli %222, %c8_i32_74 : i32
    %224 = tpu.assume_multiple %223, 8 : i32
    %225 = arith.index_cast %224 : i32 to index
    %c0_75 = arith.constant 0 : index
    %226 = vector.load %arg21[%225, %c0_75] : memref<64x384xf32, #tpu.memory_space<vmem>>, vector<8x384xf32>
    %cst_76 = arith.constant dense<0.000000e+00> : vector<8x384xf32>
    %227 = tpu.matmul %179, %20, %cst_76 {dimension_numbers = #tpu.dot_dimension_numbers<[1], [0], [0], [1], [0, 0, 1, 1], [], []>} : vector<8x128xf32>, vector<128x384xf32>, vector<8x384xf32> -> vector<8x384xf32>
    %228 = vector.extract_strided_slice %226 {offsets = [0, 0], sizes = [8, 256], strides = [1, 1]} : vector<8x384xf32> to vector<8x256xf32>
    %229 = vector.extract_strided_slice %227 {offsets = [0, 0], sizes = [8, 256], strides = [1, 1]} : vector<8x384xf32> to vector<8x256xf32>
    %230 = arith.addf %228, %229 : vector<8x256xf32>
    %231 = arith.negf %230 : vector<8x256xf32>
    %232 = math.exp %231 : vector<8x256xf32>
    %cst_77 = arith.constant 1.000000e+00 : f32
    %233 = vector.broadcast %cst_77 : f32 to vector<8x256xf32>
    %234 = arith.addf %233, %232 : vector<8x256xf32>
    %235 = arith.divf %233, %234 : vector<8x256xf32>
    %236 = vector.extract_strided_slice %235 {offsets = [0, 0], sizes = [8, 128], strides = [1, 1]} : vector<8x256xf32> to vector<8x128xf32>
    %237 = vector.extract_strided_slice %235 {offsets = [0, 128], sizes = [8, 128], strides = [1, 1]} : vector<8x256xf32> to vector<8x128xf32>
    %238 = vector.extract_strided_slice %226 {offsets = [0, 256], sizes = [8, 128], strides = [1, 1]} : vector<8x384xf32> to vector<8x128xf32>
    %239 = vector.extract_strided_slice %227 {offsets = [0, 256], sizes = [8, 128], strides = [1, 1]} : vector<8x384xf32> to vector<8x128xf32>
    %240 = arith.addf %239, %26 : vector<8x128xf32>
    %241 = arith.mulf %236, %240 : vector<8x128xf32>
    %242 = arith.addf %238, %241 : vector<8x128xf32>
    %243 = math.tanh %242 : vector<8x128xf32>
    %cst_78 = arith.constant 1.000000e+00 : f32
    %244 = vector.broadcast %cst_78 : f32 to vector<8x128xf32>
    %245 = arith.subf %244, %237 : vector<8x128xf32>
    %246 = arith.mulf %245, %243 : vector<8x128xf32>
    %247 = arith.mulf %237, %179 : vector<8x128xf32>
    %248 = arith.addf %246, %247 : vector<8x128xf32>
    %249 = arith.addi %30, %222 : i32
    %250 = vector.broadcast %249 : i32 to vector<8x1xi32>
    %251 = arith.cmpi slt, %250, %27 : vector<8x1xi32>
    %252 = vector.shape_cast %251 : vector<8x1xi1> to vector<8x1xi1>
    %253 = vector.broadcast %252 : vector<8x1xi1> to vector<8x128xi1>
    %254 = arith.select %253, %248, %179 : vector<8x128xi1>, vector<8x128xf32>
    %cst_79 = arith.constant 0.000000e+00 : f32
    %255 = vector.shape_cast %251 : vector<8x1xi1> to vector<8x1xi1>
    %256 = vector.broadcast %255 : vector<8x1xi1> to vector<8x128xi1>
    %257 = vector.broadcast %cst_79 : f32 to vector<8x128xf32>
    %258 = arith.select %256, %254, %257 : vector<8x128xi1>, vector<8x128xf32>
    %259 = arith.addf %184, %258 : vector<8x128xf32>
    %c3_i32 = arith.constant 3 : i32
    %c8_i32_80 = arith.constant 8 : i32
    %260 = arith.muli %c3_i32, %c8_i32_80 : i32
    %261 = tpu.assume_multiple %260, 8 : i32
    %262 = arith.index_cast %261 : i32 to index
    %c0_81 = arith.constant 0 : index
    %263 = vector.load %arg20[%262, %c0_81] : memref<64x384xf32, #tpu.memory_space<vmem>>, vector<8x384xf32>
    %cst_82 = arith.constant dense<0.000000e+00> : vector<8x384xf32>
    %264 = tpu.matmul %216, %19, %cst_82 {dimension_numbers = #tpu.dot_dimension_numbers<[1], [0], [0], [1], [0, 0, 1, 1], [], []>} : vector<8x128xf32>, vector<128x384xf32>, vector<8x384xf32> -> vector<8x384xf32>
    %265 = vector.extract_strided_slice %263 {offsets = [0, 0], sizes = [8, 256], strides = [1, 1]} : vector<8x384xf32> to vector<8x256xf32>
    %266 = vector.extract_strided_slice %264 {offsets = [0, 0], sizes = [8, 256], strides = [1, 1]} : vector<8x384xf32> to vector<8x256xf32>
    %267 = arith.addf %265, %266 : vector<8x256xf32>
    %268 = arith.negf %267 : vector<8x256xf32>
    %269 = math.exp %268 : vector<8x256xf32>
    %cst_83 = arith.constant 1.000000e+00 : f32
    %270 = vector.broadcast %cst_83 : f32 to vector<8x256xf32>
    %271 = arith.addf %270, %269 : vector<8x256xf32>
    %272 = arith.divf %270, %271 : vector<8x256xf32>
    %273 = vector.extract_strided_slice %272 {offsets = [0, 0], sizes = [8, 128], strides = [1, 1]} : vector<8x256xf32> to vector<8x128xf32>
    %274 = vector.extract_strided_slice %272 {offsets = [0, 128], sizes = [8, 128], strides = [1, 1]} : vector<8x256xf32> to vector<8x128xf32>
    %275 = vector.extract_strided_slice %263 {offsets = [0, 256], sizes = [8, 128], strides = [1, 1]} : vector<8x384xf32> to vector<8x128xf32>
    %276 = vector.extract_strided_slice %264 {offsets = [0, 256], sizes = [8, 128], strides = [1, 1]} : vector<8x384xf32> to vector<8x128xf32>
    %277 = arith.addf %276, %23 : vector<8x128xf32>
    %278 = arith.mulf %273, %277 : vector<8x128xf32>
    %279 = arith.addf %275, %278 : vector<8x128xf32>
    %280 = math.tanh %279 : vector<8x128xf32>
    %cst_84 = arith.constant 1.000000e+00 : f32
    %281 = vector.broadcast %cst_84 : f32 to vector<8x128xf32>
    %282 = arith.subf %281, %274 : vector<8x128xf32>
    %283 = arith.mulf %282, %280 : vector<8x128xf32>
    %284 = arith.mulf %274, %216 : vector<8x128xf32>
    %285 = arith.addf %283, %284 : vector<8x128xf32>
    %286 = arith.addi %28, %c3_i32 : i32
    %287 = vector.broadcast %286 : i32 to vector<8x1xi32>
    %288 = arith.cmpi slt, %287, %27 : vector<8x1xi32>
    %289 = vector.shape_cast %288 : vector<8x1xi1> to vector<8x1xi1>
    %290 = vector.broadcast %289 : vector<8x1xi1> to vector<8x128xi1>
    %291 = arith.select %290, %285, %216 : vector<8x128xi1>, vector<8x128xf32>
    %cst_85 = arith.constant 0.000000e+00 : f32
    %292 = vector.shape_cast %288 : vector<8x1xi1> to vector<8x1xi1>
    %293 = vector.broadcast %292 : vector<8x1xi1> to vector<8x128xi1>
    %294 = vector.broadcast %cst_85 : f32 to vector<8x128xf32>
    %295 = arith.select %293, %291, %294 : vector<8x128xi1>, vector<8x128xf32>
    %296 = arith.addf %221, %295 : vector<8x128xf32>
    %c7_i32_86 = arith.constant 7 : i32
    %297 = arith.subi %c7_i32_86, %c3_i32 : i32
    %c8_i32_87 = arith.constant 8 : i32
    %298 = arith.muli %297, %c8_i32_87 : i32
    %299 = tpu.assume_multiple %298, 8 : i32
    %300 = arith.index_cast %299 : i32 to index
    %c0_88 = arith.constant 0 : index
    %301 = vector.load %arg21[%300, %c0_88] : memref<64x384xf32, #tpu.memory_space<vmem>>, vector<8x384xf32>
    %cst_89 = arith.constant dense<0.000000e+00> : vector<8x384xf32>
    %302 = tpu.matmul %254, %20, %cst_89 {dimension_numbers = #tpu.dot_dimension_numbers<[1], [0], [0], [1], [0, 0, 1, 1], [], []>} : vector<8x128xf32>, vector<128x384xf32>, vector<8x384xf32> -> vector<8x384xf32>
    %303 = vector.extract_strided_slice %301 {offsets = [0, 0], sizes = [8, 256], strides = [1, 1]} : vector<8x384xf32> to vector<8x256xf32>
    %304 = vector.extract_strided_slice %302 {offsets = [0, 0], sizes = [8, 256], strides = [1, 1]} : vector<8x384xf32> to vector<8x256xf32>
    %305 = arith.addf %303, %304 : vector<8x256xf32>
    %306 = arith.negf %305 : vector<8x256xf32>
    %307 = math.exp %306 : vector<8x256xf32>
    %cst_90 = arith.constant 1.000000e+00 : f32
    %308 = vector.broadcast %cst_90 : f32 to vector<8x256xf32>
    %309 = arith.addf %308, %307 : vector<8x256xf32>
    %310 = arith.divf %308, %309 : vector<8x256xf32>
    %311 = vector.extract_strided_slice %310 {offsets = [0, 0], sizes = [8, 128], strides = [1, 1]} : vector<8x256xf32> to vector<8x128xf32>
    %312 = vector.extract_strided_slice %310 {offsets = [0, 128], sizes = [8, 128], strides = [1, 1]} : vector<8x256xf32> to vector<8x128xf32>
    %313 = vector.extract_strided_slice %301 {offsets = [0, 256], sizes = [8, 128], strides = [1, 1]} : vector<8x384xf32> to vector<8x128xf32>
    %314 = vector.extract_strided_slice %302 {offsets = [0, 256], sizes = [8, 128], strides = [1, 1]} : vector<8x384xf32> to vector<8x128xf32>
    %315 = arith.addf %314, %26 : vector<8x128xf32>
    %316 = arith.mulf %311, %315 : vector<8x128xf32>
    %317 = arith.addf %313, %316 : vector<8x128xf32>
    %318 = math.tanh %317 : vector<8x128xf32>
    %cst_91 = arith.constant 1.000000e+00 : f32
    %319 = vector.broadcast %cst_91 : f32 to vector<8x128xf32>
    %320 = arith.subf %319, %312 : vector<8x128xf32>
    %321 = arith.mulf %320, %318 : vector<8x128xf32>
    %322 = arith.mulf %312, %254 : vector<8x128xf32>
    %323 = arith.addf %321, %322 : vector<8x128xf32>
    %324 = arith.addi %30, %297 : i32
    %325 = vector.broadcast %324 : i32 to vector<8x1xi32>
    %326 = arith.cmpi slt, %325, %27 : vector<8x1xi32>
    %327 = vector.shape_cast %326 : vector<8x1xi1> to vector<8x1xi1>
    %328 = vector.broadcast %327 : vector<8x1xi1> to vector<8x128xi1>
    %329 = arith.select %328, %323, %254 : vector<8x128xi1>, vector<8x128xf32>
    %cst_92 = arith.constant 0.000000e+00 : f32
    %330 = vector.shape_cast %326 : vector<8x1xi1> to vector<8x1xi1>
    %331 = vector.broadcast %330 : vector<8x1xi1> to vector<8x128xi1>
    %332 = vector.broadcast %cst_92 : f32 to vector<8x128xf32>
    %333 = arith.select %331, %329, %332 : vector<8x128xi1>, vector<8x128xf32>
    %334 = arith.addf %259, %333 : vector<8x128xf32>
    %c4_i32 = arith.constant 4 : i32
    %c8_i32_93 = arith.constant 8 : i32
    %335 = arith.muli %c4_i32, %c8_i32_93 : i32
    %336 = tpu.assume_multiple %335, 8 : i32
    %337 = arith.index_cast %336 : i32 to index
    %c0_94 = arith.constant 0 : index
    %338 = vector.load %arg20[%337, %c0_94] : memref<64x384xf32, #tpu.memory_space<vmem>>, vector<8x384xf32>
    %cst_95 = arith.constant dense<0.000000e+00> : vector<8x384xf32>
    %339 = tpu.matmul %291, %19, %cst_95 {dimension_numbers = #tpu.dot_dimension_numbers<[1], [0], [0], [1], [0, 0, 1, 1], [], []>} : vector<8x128xf32>, vector<128x384xf32>, vector<8x384xf32> -> vector<8x384xf32>
    %340 = vector.extract_strided_slice %338 {offsets = [0, 0], sizes = [8, 256], strides = [1, 1]} : vector<8x384xf32> to vector<8x256xf32>
    %341 = vector.extract_strided_slice %339 {offsets = [0, 0], sizes = [8, 256], strides = [1, 1]} : vector<8x384xf32> to vector<8x256xf32>
    %342 = arith.addf %340, %341 : vector<8x256xf32>
    %343 = arith.negf %342 : vector<8x256xf32>
    %344 = math.exp %343 : vector<8x256xf32>
    %cst_96 = arith.constant 1.000000e+00 : f32
    %345 = vector.broadcast %cst_96 : f32 to vector<8x256xf32>
    %346 = arith.addf %345, %344 : vector<8x256xf32>
    %347 = arith.divf %345, %346 : vector<8x256xf32>
    %348 = vector.extract_strided_slice %347 {offsets = [0, 0], sizes = [8, 128], strides = [1, 1]} : vector<8x256xf32> to vector<8x128xf32>
    %349 = vector.extract_strided_slice %347 {offsets = [0, 128], sizes = [8, 128], strides = [1, 1]} : vector<8x256xf32> to vector<8x128xf32>
    %350 = vector.extract_strided_slice %338 {offsets = [0, 256], sizes = [8, 128], strides = [1, 1]} : vector<8x384xf32> to vector<8x128xf32>
    %351 = vector.extract_strided_slice %339 {offsets = [0, 256], sizes = [8, 128], strides = [1, 1]} : vector<8x384xf32> to vector<8x128xf32>
    %352 = arith.addf %351, %23 : vector<8x128xf32>
    %353 = arith.mulf %348, %352 : vector<8x128xf32>
    %354 = arith.addf %350, %353 : vector<8x128xf32>
    %355 = math.tanh %354 : vector<8x128xf32>
    %cst_97 = arith.constant 1.000000e+00 : f32
    %356 = vector.broadcast %cst_97 : f32 to vector<8x128xf32>
    %357 = arith.subf %356, %349 : vector<8x128xf32>
    %358 = arith.mulf %357, %355 : vector<8x128xf32>
    %359 = arith.mulf %349, %291 : vector<8x128xf32>
    %360 = arith.addf %358, %359 : vector<8x128xf32>
    %361 = arith.addi %28, %c4_i32 : i32
    %362 = vector.broadcast %361 : i32 to vector<8x1xi32>
    %363 = arith.cmpi slt, %362, %27 : vector<8x1xi32>
    %364 = vector.shape_cast %363 : vector<8x1xi1> to vector<8x1xi1>
    %365 = vector.broadcast %364 : vector<8x1xi1> to vector<8x128xi1>
    %366 = arith.select %365, %360, %291 : vector<8x128xi1>, vector<8x128xf32>
    %cst_98 = arith.constant 0.000000e+00 : f32
    %367 = vector.shape_cast %363 : vector<8x1xi1> to vector<8x1xi1>
    %368 = vector.broadcast %367 : vector<8x1xi1> to vector<8x128xi1>
    %369 = vector.broadcast %cst_98 : f32 to vector<8x128xf32>
    %370 = arith.select %368, %366, %369 : vector<8x128xi1>, vector<8x128xf32>
    %371 = arith.addf %296, %370 : vector<8x128xf32>
    %c7_i32_99 = arith.constant 7 : i32
    %372 = arith.subi %c7_i32_99, %c4_i32 : i32
    %c8_i32_100 = arith.constant 8 : i32
    %373 = arith.muli %372, %c8_i32_100 : i32
    %374 = tpu.assume_multiple %373, 8 : i32
    %375 = arith.index_cast %374 : i32 to index
    %c0_101 = arith.constant 0 : index
    %376 = vector.load %arg21[%375, %c0_101] : memref<64x384xf32, #tpu.memory_space<vmem>>, vector<8x384xf32>
    %cst_102 = arith.constant dense<0.000000e+00> : vector<8x384xf32>
    %377 = tpu.matmul %329, %20, %cst_102 {dimension_numbers = #tpu.dot_dimension_numbers<[1], [0], [0], [1], [0, 0, 1, 1], [], []>} : vector<8x128xf32>, vector<128x384xf32>, vector<8x384xf32> -> vector<8x384xf32>
    %378 = vector.extract_strided_slice %376 {offsets = [0, 0], sizes = [8, 256], strides = [1, 1]} : vector<8x384xf32> to vector<8x256xf32>
    %379 = vector.extract_strided_slice %377 {offsets = [0, 0], sizes = [8, 256], strides = [1, 1]} : vector<8x384xf32> to vector<8x256xf32>
    %380 = arith.addf %378, %379 : vector<8x256xf32>
    %381 = arith.negf %380 : vector<8x256xf32>
    %382 = math.exp %381 : vector<8x256xf32>
    %cst_103 = arith.constant 1.000000e+00 : f32
    %383 = vector.broadcast %cst_103 : f32 to vector<8x256xf32>
    %384 = arith.addf %383, %382 : vector<8x256xf32>
    %385 = arith.divf %383, %384 : vector<8x256xf32>
    %386 = vector.extract_strided_slice %385 {offsets = [0, 0], sizes = [8, 128], strides = [1, 1]} : vector<8x256xf32> to vector<8x128xf32>
    %387 = vector.extract_strided_slice %385 {offsets = [0, 128], sizes = [8, 128], strides = [1, 1]} : vector<8x256xf32> to vector<8x128xf32>
    %388 = vector.extract_strided_slice %376 {offsets = [0, 256], sizes = [8, 128], strides = [1, 1]} : vector<8x384xf32> to vector<8x128xf32>
    %389 = vector.extract_strided_slice %377 {offsets = [0, 256], sizes = [8, 128], strides = [1, 1]} : vector<8x384xf32> to vector<8x128xf32>
    %390 = arith.addf %389, %26 : vector<8x128xf32>
    %391 = arith.mulf %386, %390 : vector<8x128xf32>
    %392 = arith.addf %388, %391 : vector<8x128xf32>
    %393 = math.tanh %392 : vector<8x128xf32>
    %cst_104 = arith.constant 1.000000e+00 : f32
    %394 = vector.broadcast %cst_104 : f32 to vector<8x128xf32>
    %395 = arith.subf %394, %387 : vector<8x128xf32>
    %396 = arith.mulf %395, %393 : vector<8x128xf32>
    %397 = arith.mulf %387, %329 : vector<8x128xf32>
    %398 = arith.addf %396, %397 : vector<8x128xf32>
    %399 = arith.addi %30, %372 : i32
    %400 = vector.broadcast %399 : i32 to vector<8x1xi32>
    %401 = arith.cmpi slt, %400, %27 : vector<8x1xi32>
    %402 = vector.shape_cast %401 : vector<8x1xi1> to vector<8x1xi1>
    %403 = vector.broadcast %402 : vector<8x1xi1> to vector<8x128xi1>
    %404 = arith.select %403, %398, %329 : vector<8x128xi1>, vector<8x128xf32>
    %cst_105 = arith.constant 0.000000e+00 : f32
    %405 = vector.shape_cast %401 : vector<8x1xi1> to vector<8x1xi1>
    %406 = vector.broadcast %405 : vector<8x1xi1> to vector<8x128xi1>
    %407 = vector.broadcast %cst_105 : f32 to vector<8x128xf32>
    %408 = arith.select %406, %404, %407 : vector<8x128xi1>, vector<8x128xf32>
    %409 = arith.addf %334, %408 : vector<8x128xf32>
    %c5_i32 = arith.constant 5 : i32
    %c8_i32_106 = arith.constant 8 : i32
    %410 = arith.muli %c5_i32, %c8_i32_106 : i32
    %411 = tpu.assume_multiple %410, 8 : i32
    %412 = arith.index_cast %411 : i32 to index
    %c0_107 = arith.constant 0 : index
    %413 = vector.load %arg20[%412, %c0_107] : memref<64x384xf32, #tpu.memory_space<vmem>>, vector<8x384xf32>
    %cst_108 = arith.constant dense<0.000000e+00> : vector<8x384xf32>
    %414 = tpu.matmul %366, %19, %cst_108 {dimension_numbers = #tpu.dot_dimension_numbers<[1], [0], [0], [1], [0, 0, 1, 1], [], []>} : vector<8x128xf32>, vector<128x384xf32>, vector<8x384xf32> -> vector<8x384xf32>
    %415 = vector.extract_strided_slice %413 {offsets = [0, 0], sizes = [8, 256], strides = [1, 1]} : vector<8x384xf32> to vector<8x256xf32>
    %416 = vector.extract_strided_slice %414 {offsets = [0, 0], sizes = [8, 256], strides = [1, 1]} : vector<8x384xf32> to vector<8x256xf32>
    %417 = arith.addf %415, %416 : vector<8x256xf32>
    %418 = arith.negf %417 : vector<8x256xf32>
    %419 = math.exp %418 : vector<8x256xf32>
    %cst_109 = arith.constant 1.000000e+00 : f32
    %420 = vector.broadcast %cst_109 : f32 to vector<8x256xf32>
    %421 = arith.addf %420, %419 : vector<8x256xf32>
    %422 = arith.divf %420, %421 : vector<8x256xf32>
    %423 = vector.extract_strided_slice %422 {offsets = [0, 0], sizes = [8, 128], strides = [1, 1]} : vector<8x256xf32> to vector<8x128xf32>
    %424 = vector.extract_strided_slice %422 {offsets = [0, 128], sizes = [8, 128], strides = [1, 1]} : vector<8x256xf32> to vector<8x128xf32>
    %425 = vector.extract_strided_slice %413 {offsets = [0, 256], sizes = [8, 128], strides = [1, 1]} : vector<8x384xf32> to vector<8x128xf32>
    %426 = vector.extract_strided_slice %414 {offsets = [0, 256], sizes = [8, 128], strides = [1, 1]} : vector<8x384xf32> to vector<8x128xf32>
    %427 = arith.addf %426, %23 : vector<8x128xf32>
    %428 = arith.mulf %423, %427 : vector<8x128xf32>
    %429 = arith.addf %425, %428 : vector<8x128xf32>
    %430 = math.tanh %429 : vector<8x128xf32>
    %cst_110 = arith.constant 1.000000e+00 : f32
    %431 = vector.broadcast %cst_110 : f32 to vector<8x128xf32>
    %432 = arith.subf %431, %424 : vector<8x128xf32>
    %433 = arith.mulf %432, %430 : vector<8x128xf32>
    %434 = arith.mulf %424, %366 : vector<8x128xf32>
    %435 = arith.addf %433, %434 : vector<8x128xf32>
    %436 = arith.addi %28, %c5_i32 : i32
    %437 = vector.broadcast %436 : i32 to vector<8x1xi32>
    %438 = arith.cmpi slt, %437, %27 : vector<8x1xi32>
    %439 = vector.shape_cast %438 : vector<8x1xi1> to vector<8x1xi1>
    %440 = vector.broadcast %439 : vector<8x1xi1> to vector<8x128xi1>
    %441 = arith.select %440, %435, %366 : vector<8x128xi1>, vector<8x128xf32>
    %cst_111 = arith.constant 0.000000e+00 : f32
    %442 = vector.shape_cast %438 : vector<8x1xi1> to vector<8x1xi1>
    %443 = vector.broadcast %442 : vector<8x1xi1> to vector<8x128xi1>
    %444 = vector.broadcast %cst_111 : f32 to vector<8x128xf32>
    %445 = arith.select %443, %441, %444 : vector<8x128xi1>, vector<8x128xf32>
    %446 = arith.addf %371, %445 : vector<8x128xf32>
    %c7_i32_112 = arith.constant 7 : i32
    %447 = arith.subi %c7_i32_112, %c5_i32 : i32
    %c8_i32_113 = arith.constant 8 : i32
    %448 = arith.muli %447, %c8_i32_113 : i32
    %449 = tpu.assume_multiple %448, 8 : i32
    %450 = arith.index_cast %449 : i32 to index
    %c0_114 = arith.constant 0 : index
    %451 = vector.load %arg21[%450, %c0_114] : memref<64x384xf32, #tpu.memory_space<vmem>>, vector<8x384xf32>
    %cst_115 = arith.constant dense<0.000000e+00> : vector<8x384xf32>
    %452 = tpu.matmul %404, %20, %cst_115 {dimension_numbers = #tpu.dot_dimension_numbers<[1], [0], [0], [1], [0, 0, 1, 1], [], []>} : vector<8x128xf32>, vector<128x384xf32>, vector<8x384xf32> -> vector<8x384xf32>
    %453 = vector.extract_strided_slice %451 {offsets = [0, 0], sizes = [8, 256], strides = [1, 1]} : vector<8x384xf32> to vector<8x256xf32>
    %454 = vector.extract_strided_slice %452 {offsets = [0, 0], sizes = [8, 256], strides = [1, 1]} : vector<8x384xf32> to vector<8x256xf32>
    %455 = arith.addf %453, %454 : vector<8x256xf32>
    %456 = arith.negf %455 : vector<8x256xf32>
    %457 = math.exp %456 : vector<8x256xf32>
    %cst_116 = arith.constant 1.000000e+00 : f32
    %458 = vector.broadcast %cst_116 : f32 to vector<8x256xf32>
    %459 = arith.addf %458, %457 : vector<8x256xf32>
    %460 = arith.divf %458, %459 : vector<8x256xf32>
    %461 = vector.extract_strided_slice %460 {offsets = [0, 0], sizes = [8, 128], strides = [1, 1]} : vector<8x256xf32> to vector<8x128xf32>
    %462 = vector.extract_strided_slice %460 {offsets = [0, 128], sizes = [8, 128], strides = [1, 1]} : vector<8x256xf32> to vector<8x128xf32>
    %463 = vector.extract_strided_slice %451 {offsets = [0, 256], sizes = [8, 128], strides = [1, 1]} : vector<8x384xf32> to vector<8x128xf32>
    %464 = vector.extract_strided_slice %452 {offsets = [0, 256], sizes = [8, 128], strides = [1, 1]} : vector<8x384xf32> to vector<8x128xf32>
    %465 = arith.addf %464, %26 : vector<8x128xf32>
    %466 = arith.mulf %461, %465 : vector<8x128xf32>
    %467 = arith.addf %463, %466 : vector<8x128xf32>
    %468 = math.tanh %467 : vector<8x128xf32>
    %cst_117 = arith.constant 1.000000e+00 : f32
    %469 = vector.broadcast %cst_117 : f32 to vector<8x128xf32>
    %470 = arith.subf %469, %462 : vector<8x128xf32>
    %471 = arith.mulf %470, %468 : vector<8x128xf32>
    %472 = arith.mulf %462, %404 : vector<8x128xf32>
    %473 = arith.addf %471, %472 : vector<8x128xf32>
    %474 = arith.addi %30, %447 : i32
    %475 = vector.broadcast %474 : i32 to vector<8x1xi32>
    %476 = arith.cmpi slt, %475, %27 : vector<8x1xi32>
    %477 = vector.shape_cast %476 : vector<8x1xi1> to vector<8x1xi1>
    %478 = vector.broadcast %477 : vector<8x1xi1> to vector<8x128xi1>
    %479 = arith.select %478, %473, %404 : vector<8x128xi1>, vector<8x128xf32>
    %cst_118 = arith.constant 0.000000e+00 : f32
    %480 = vector.shape_cast %476 : vector<8x1xi1> to vector<8x1xi1>
    %481 = vector.broadcast %480 : vector<8x1xi1> to vector<8x128xi1>
    %482 = vector.broadcast %cst_118 : f32 to vector<8x128xf32>
    %483 = arith.select %481, %479, %482 : vector<8x128xi1>, vector<8x128xf32>
    %484 = arith.addf %409, %483 : vector<8x128xf32>
    %c6_i32 = arith.constant 6 : i32
    %c8_i32_119 = arith.constant 8 : i32
    %485 = arith.muli %c6_i32, %c8_i32_119 : i32
    %486 = tpu.assume_multiple %485, 8 : i32
    %487 = arith.index_cast %486 : i32 to index
    %c0_120 = arith.constant 0 : index
    %488 = vector.load %arg20[%487, %c0_120] : memref<64x384xf32, #tpu.memory_space<vmem>>, vector<8x384xf32>
    %cst_121 = arith.constant dense<0.000000e+00> : vector<8x384xf32>
    %489 = tpu.matmul %441, %19, %cst_121 {dimension_numbers = #tpu.dot_dimension_numbers<[1], [0], [0], [1], [0, 0, 1, 1], [], []>} : vector<8x128xf32>, vector<128x384xf32>, vector<8x384xf32> -> vector<8x384xf32>
    %490 = vector.extract_strided_slice %488 {offsets = [0, 0], sizes = [8, 256], strides = [1, 1]} : vector<8x384xf32> to vector<8x256xf32>
    %491 = vector.extract_strided_slice %489 {offsets = [0, 0], sizes = [8, 256], strides = [1, 1]} : vector<8x384xf32> to vector<8x256xf32>
    %492 = arith.addf %490, %491 : vector<8x256xf32>
    %493 = arith.negf %492 : vector<8x256xf32>
    %494 = math.exp %493 : vector<8x256xf32>
    %cst_122 = arith.constant 1.000000e+00 : f32
    %495 = vector.broadcast %cst_122 : f32 to vector<8x256xf32>
    %496 = arith.addf %495, %494 : vector<8x256xf32>
    %497 = arith.divf %495, %496 : vector<8x256xf32>
    %498 = vector.extract_strided_slice %497 {offsets = [0, 0], sizes = [8, 128], strides = [1, 1]} : vector<8x256xf32> to vector<8x128xf32>
    %499 = vector.extract_strided_slice %497 {offsets = [0, 128], sizes = [8, 128], strides = [1, 1]} : vector<8x256xf32> to vector<8x128xf32>
    %500 = vector.extract_strided_slice %488 {offsets = [0, 256], sizes = [8, 128], strides = [1, 1]} : vector<8x384xf32> to vector<8x128xf32>
    %501 = vector.extract_strided_slice %489 {offsets = [0, 256], sizes = [8, 128], strides = [1, 1]} : vector<8x384xf32> to vector<8x128xf32>
    %502 = arith.addf %501, %23 : vector<8x128xf32>
    %503 = arith.mulf %498, %502 : vector<8x128xf32>
    %504 = arith.addf %500, %503 : vector<8x128xf32>
    %505 = math.tanh %504 : vector<8x128xf32>
    %cst_123 = arith.constant 1.000000e+00 : f32
    %506 = vector.broadcast %cst_123 : f32 to vector<8x128xf32>
    %507 = arith.subf %506, %499 : vector<8x128xf32>
    %508 = arith.mulf %507, %505 : vector<8x128xf32>
    %509 = arith.mulf %499, %441 : vector<8x128xf32>
    %510 = arith.addf %508, %509 : vector<8x128xf32>
    %511 = arith.addi %28, %c6_i32 : i32
    %512 = vector.broadcast %511 : i32 to vector<8x1xi32>
    %513 = arith.cmpi slt, %512, %27 : vector<8x1xi32>
    %514 = vector.shape_cast %513 : vector<8x1xi1> to vector<8x1xi1>
    %515 = vector.broadcast %514 : vector<8x1xi1> to vector<8x128xi1>
    %516 = arith.select %515, %510, %441 : vector<8x128xi1>, vector<8x128xf32>
    %cst_124 = arith.constant 0.000000e+00 : f32
    %517 = vector.shape_cast %513 : vector<8x1xi1> to vector<8x1xi1>
    %518 = vector.broadcast %517 : vector<8x1xi1> to vector<8x128xi1>
    %519 = vector.broadcast %cst_124 : f32 to vector<8x128xf32>
    %520 = arith.select %518, %516, %519 : vector<8x128xi1>, vector<8x128xf32>
    %521 = arith.addf %446, %520 : vector<8x128xf32>
    %c7_i32_125 = arith.constant 7 : i32
    %522 = arith.subi %c7_i32_125, %c6_i32 : i32
    %c8_i32_126 = arith.constant 8 : i32
    %523 = arith.muli %522, %c8_i32_126 : i32
    %524 = tpu.assume_multiple %523, 8 : i32
    %525 = arith.index_cast %524 : i32 to index
    %c0_127 = arith.constant 0 : index
    %526 = vector.load %arg21[%525, %c0_127] : memref<64x384xf32, #tpu.memory_space<vmem>>, vector<8x384xf32>
    %cst_128 = arith.constant dense<0.000000e+00> : vector<8x384xf32>
    %527 = tpu.matmul %479, %20, %cst_128 {dimension_numbers = #tpu.dot_dimension_numbers<[1], [0], [0], [1], [0, 0, 1, 1], [], []>} : vector<8x128xf32>, vector<128x384xf32>, vector<8x384xf32> -> vector<8x384xf32>
    %528 = vector.extract_strided_slice %526 {offsets = [0, 0], sizes = [8, 256], strides = [1, 1]} : vector<8x384xf32> to vector<8x256xf32>
    %529 = vector.extract_strided_slice %527 {offsets = [0, 0], sizes = [8, 256], strides = [1, 1]} : vector<8x384xf32> to vector<8x256xf32>
    %530 = arith.addf %528, %529 : vector<8x256xf32>
    %531 = arith.negf %530 : vector<8x256xf32>
    %532 = math.exp %531 : vector<8x256xf32>
    %cst_129 = arith.constant 1.000000e+00 : f32
    %533 = vector.broadcast %cst_129 : f32 to vector<8x256xf32>
    %534 = arith.addf %533, %532 : vector<8x256xf32>
    %535 = arith.divf %533, %534 : vector<8x256xf32>
    %536 = vector.extract_strided_slice %535 {offsets = [0, 0], sizes = [8, 128], strides = [1, 1]} : vector<8x256xf32> to vector<8x128xf32>
    %537 = vector.extract_strided_slice %535 {offsets = [0, 128], sizes = [8, 128], strides = [1, 1]} : vector<8x256xf32> to vector<8x128xf32>
    %538 = vector.extract_strided_slice %526 {offsets = [0, 256], sizes = [8, 128], strides = [1, 1]} : vector<8x384xf32> to vector<8x128xf32>
    %539 = vector.extract_strided_slice %527 {offsets = [0, 256], sizes = [8, 128], strides = [1, 1]} : vector<8x384xf32> to vector<8x128xf32>
    %540 = arith.addf %539, %26 : vector<8x128xf32>
    %541 = arith.mulf %536, %540 : vector<8x128xf32>
    %542 = arith.addf %538, %541 : vector<8x128xf32>
    %543 = math.tanh %542 : vector<8x128xf32>
    %cst_130 = arith.constant 1.000000e+00 : f32
    %544 = vector.broadcast %cst_130 : f32 to vector<8x128xf32>
    %545 = arith.subf %544, %537 : vector<8x128xf32>
    %546 = arith.mulf %545, %543 : vector<8x128xf32>
    %547 = arith.mulf %537, %479 : vector<8x128xf32>
    %548 = arith.addf %546, %547 : vector<8x128xf32>
    %549 = arith.addi %30, %522 : i32
    %550 = vector.broadcast %549 : i32 to vector<8x1xi32>
    %551 = arith.cmpi slt, %550, %27 : vector<8x1xi32>
    %552 = vector.shape_cast %551 : vector<8x1xi1> to vector<8x1xi1>
    %553 = vector.broadcast %552 : vector<8x1xi1> to vector<8x128xi1>
    %554 = arith.select %553, %548, %479 : vector<8x128xi1>, vector<8x128xf32>
    %cst_131 = arith.constant 0.000000e+00 : f32
    %555 = vector.shape_cast %551 : vector<8x1xi1> to vector<8x1xi1>
    %556 = vector.broadcast %555 : vector<8x1xi1> to vector<8x128xi1>
    %557 = vector.broadcast %cst_131 : f32 to vector<8x128xf32>
    %558 = arith.select %556, %554, %557 : vector<8x128xi1>, vector<8x128xf32>
    %559 = arith.addf %484, %558 : vector<8x128xf32>
    %c7_i32_132 = arith.constant 7 : i32
    %c8_i32_133 = arith.constant 8 : i32
    %560 = arith.muli %c7_i32_132, %c8_i32_133 : i32
    %561 = tpu.assume_multiple %560, 8 : i32
    %562 = arith.index_cast %561 : i32 to index
    %c0_134 = arith.constant 0 : index
    %563 = vector.load %arg20[%562, %c0_134] : memref<64x384xf32, #tpu.memory_space<vmem>>, vector<8x384xf32>
    %cst_135 = arith.constant dense<0.000000e+00> : vector<8x384xf32>
    %564 = tpu.matmul %516, %19, %cst_135 {dimension_numbers = #tpu.dot_dimension_numbers<[1], [0], [0], [1], [0, 0, 1, 1], [], []>} : vector<8x128xf32>, vector<128x384xf32>, vector<8x384xf32> -> vector<8x384xf32>
    %565 = vector.extract_strided_slice %563 {offsets = [0, 0], sizes = [8, 256], strides = [1, 1]} : vector<8x384xf32> to vector<8x256xf32>
    %566 = vector.extract_strided_slice %564 {offsets = [0, 0], sizes = [8, 256], strides = [1, 1]} : vector<8x384xf32> to vector<8x256xf32>
    %567 = arith.addf %565, %566 : vector<8x256xf32>
    %568 = arith.negf %567 : vector<8x256xf32>
    %569 = math.exp %568 : vector<8x256xf32>
    %cst_136 = arith.constant 1.000000e+00 : f32
    %570 = vector.broadcast %cst_136 : f32 to vector<8x256xf32>
    %571 = arith.addf %570, %569 : vector<8x256xf32>
    %572 = arith.divf %570, %571 : vector<8x256xf32>
    %573 = vector.extract_strided_slice %572 {offsets = [0, 0], sizes = [8, 128], strides = [1, 1]} : vector<8x256xf32> to vector<8x128xf32>
    %574 = vector.extract_strided_slice %572 {offsets = [0, 128], sizes = [8, 128], strides = [1, 1]} : vector<8x256xf32> to vector<8x128xf32>
    %575 = vector.extract_strided_slice %563 {offsets = [0, 256], sizes = [8, 128], strides = [1, 1]} : vector<8x384xf32> to vector<8x128xf32>
    %576 = vector.extract_strided_slice %564 {offsets = [0, 256], sizes = [8, 128], strides = [1, 1]} : vector<8x384xf32> to vector<8x128xf32>
    %577 = arith.addf %576, %23 : vector<8x128xf32>
    %578 = arith.mulf %573, %577 : vector<8x128xf32>
    %579 = arith.addf %575, %578 : vector<8x128xf32>
    %580 = math.tanh %579 : vector<8x128xf32>
    %cst_137 = arith.constant 1.000000e+00 : f32
    %581 = vector.broadcast %cst_137 : f32 to vector<8x128xf32>
    %582 = arith.subf %581, %574 : vector<8x128xf32>
    %583 = arith.mulf %582, %580 : vector<8x128xf32>
    %584 = arith.mulf %574, %516 : vector<8x128xf32>
    %585 = arith.addf %583, %584 : vector<8x128xf32>
    %586 = arith.addi %28, %c7_i32_132 : i32
    %587 = vector.broadcast %586 : i32 to vector<8x1xi32>
    %588 = arith.cmpi slt, %587, %27 : vector<8x1xi32>
    %589 = vector.shape_cast %588 : vector<8x1xi1> to vector<8x1xi1>
    %590 = vector.broadcast %589 : vector<8x1xi1> to vector<8x128xi1>
    %591 = arith.select %590, %585, %516 : vector<8x128xi1>, vector<8x128xf32>
    %cst_138 = arith.constant 0.000000e+00 : f32
    %592 = vector.shape_cast %588 : vector<8x1xi1> to vector<8x1xi1>
    %593 = vector.broadcast %592 : vector<8x1xi1> to vector<8x128xi1>
    %594 = vector.broadcast %cst_138 : f32 to vector<8x128xf32>
    %595 = arith.select %593, %591, %594 : vector<8x128xi1>, vector<8x128xf32>
    %596 = arith.addf %521, %595 : vector<8x128xf32>
    %c7_i32_139 = arith.constant 7 : i32
    %597 = arith.subi %c7_i32_139, %c7_i32_132 : i32
    %c8_i32_140 = arith.constant 8 : i32
    %598 = arith.muli %597, %c8_i32_140 : i32
    %599 = tpu.assume_multiple %598, 8 : i32
    %600 = arith.index_cast %599 : i32 to index
    %c0_141 = arith.constant 0 : index
    %601 = vector.load %arg21[%600, %c0_141] : memref<64x384xf32, #tpu.memory_space<vmem>>, vector<8x384xf32>
    %cst_142 = arith.constant dense<0.000000e+00> : vector<8x384xf32>
    %602 = tpu.matmul %554, %20, %cst_142 {dimension_numbers = #tpu.dot_dimension_numbers<[1], [0], [0], [1], [0, 0, 1, 1], [], []>} : vector<8x128xf32>, vector<128x384xf32>, vector<8x384xf32> -> vector<8x384xf32>
    %603 = vector.extract_strided_slice %601 {offsets = [0, 0], sizes = [8, 256], strides = [1, 1]} : vector<8x384xf32> to vector<8x256xf32>
    %604 = vector.extract_strided_slice %602 {offsets = [0, 0], sizes = [8, 256], strides = [1, 1]} : vector<8x384xf32> to vector<8x256xf32>
    %605 = arith.addf %603, %604 : vector<8x256xf32>
    %606 = arith.negf %605 : vector<8x256xf32>
    %607 = math.exp %606 : vector<8x256xf32>
    %cst_143 = arith.constant 1.000000e+00 : f32
    %608 = vector.broadcast %cst_143 : f32 to vector<8x256xf32>
    %609 = arith.addf %608, %607 : vector<8x256xf32>
    %610 = arith.divf %608, %609 : vector<8x256xf32>
    %611 = vector.extract_strided_slice %610 {offsets = [0, 0], sizes = [8, 128], strides = [1, 1]} : vector<8x256xf32> to vector<8x128xf32>
    %612 = vector.extract_strided_slice %610 {offsets = [0, 128], sizes = [8, 128], strides = [1, 1]} : vector<8x256xf32> to vector<8x128xf32>
    %613 = vector.extract_strided_slice %601 {offsets = [0, 256], sizes = [8, 128], strides = [1, 1]} : vector<8x384xf32> to vector<8x128xf32>
    %614 = vector.extract_strided_slice %602 {offsets = [0, 256], sizes = [8, 128], strides = [1, 1]} : vector<8x384xf32> to vector<8x128xf32>
    %615 = arith.addf %614, %26 : vector<8x128xf32>
    %616 = arith.mulf %611, %615 : vector<8x128xf32>
    %617 = arith.addf %613, %616 : vector<8x128xf32>
    %618 = math.tanh %617 : vector<8x128xf32>
    %cst_144 = arith.constant 1.000000e+00 : f32
    %619 = vector.broadcast %cst_144 : f32 to vector<8x128xf32>
    %620 = arith.subf %619, %612 : vector<8x128xf32>
    %621 = arith.mulf %620, %618 : vector<8x128xf32>
    %622 = arith.mulf %612, %554 : vector<8x128xf32>
    %623 = arith.addf %621, %622 : vector<8x128xf32>
    %624 = arith.addi %30, %597 : i32
    %625 = vector.broadcast %624 : i32 to vector<8x1xi32>
    %626 = arith.cmpi slt, %625, %27 : vector<8x1xi32>
    %627 = vector.shape_cast %626 : vector<8x1xi1> to vector<8x1xi1>
    %628 = vector.broadcast %627 : vector<8x1xi1> to vector<8x128xi1>
    %629 = arith.select %628, %623, %554 : vector<8x128xi1>, vector<8x128xf32>
    %cst_145 = arith.constant 0.000000e+00 : f32
    %630 = vector.shape_cast %626 : vector<8x1xi1> to vector<8x1xi1>
    %631 = vector.broadcast %630 : vector<8x1xi1> to vector<8x128xi1>
    %632 = vector.broadcast %cst_145 : f32 to vector<8x128xf32>
    %633 = arith.select %631, %629, %632 : vector<8x128xi1>, vector<8x128xf32>
    %634 = arith.addf %559, %633 : vector<8x128xf32>
    %c8_i32_146 = arith.constant 8 : i32
    %c0_147 = arith.constant 0 : index
    %c0_148 = arith.constant 0 : index
    %635 = vector.load %arg22[%c0_147, %c0_148] : memref<8x128xf32, #tpu.memory_space<vmem>>, vector<8x128xf32>
    tpu.vector_store %arg22[%c0_147, %c0_148], %591 {strides = array<i32>} : memref<8x128xf32, #tpu.memory_space<vmem>>, vector<8x128xf32>,
    %c0_149 = arith.constant 0 : index
    %c0_150 = arith.constant 0 : index
    %636 = vector.load %arg23[%c0_149, %c0_150] : memref<8x128xf32, #tpu.memory_space<vmem>>, vector<8x128xf32>
    tpu.vector_store %arg23[%c0_149, %c0_150], %596 {strides = array<i32>} : memref<8x128xf32, #tpu.memory_space<vmem>>, vector<8x128xf32>,
    %c0_151 = arith.constant 0 : index
    %c0_152 = arith.constant 0 : index
    %637 = vector.load %arg24[%c0_151, %c0_152] : memref<8x128xf32, #tpu.memory_space<vmem>>, vector<8x128xf32>
    tpu.vector_store %arg24[%c0_151, %c0_152], %629 {strides = array<i32>} : memref<8x128xf32, #tpu.memory_space<vmem>>, vector<8x128xf32>,
    %c0_153 = arith.constant 0 : index
    %c0_154 = arith.constant 0 : index
    %638 = vector.load %arg25[%c0_153, %c0_154] : memref<8x128xf32, #tpu.memory_space<vmem>>, vector<8x128xf32>
    tpu.vector_store %arg25[%c0_153, %c0_154], %634 {strides = array<i32>} : memref<8x128xf32, #tpu.memory_space<vmem>>, vector<8x128xf32>,
    %c1_i32_155 = arith.constant 1 : i32
    %639 = arith.cmpi eq, %arg1, %c1_i32_155 : i32
    %640 = arith.extui %639 : i1 to i32
    %c0_i32_156 = arith.constant 0 : i32
    %641 = arith.cmpi ne, %640, %c0_i32_156 : i32
    scf.if %641 {
      %642 = arith.sitofp %27 : vector<8x1xi32> to vector<8x1xf32>
      %cst_157 = arith.constant 1.000000e+00 : f32
      %643 = vector.broadcast %cst_157 : f32 to vector<8x1xf32>
      %644 = arith.maximumf %642, %643 : vector<8x1xf32>
      %cst_158 = arith.constant 1.000000e+00 : f32
      %645 = vector.broadcast %cst_158 : f32 to vector<8x1xf32>
      %646 = arith.divf %645, %644 : vector<8x1xf32>
      %647 = vector.broadcast %646 : vector<8x1xf32> to vector<8x128xf32>
      %648 = arith.mulf %596, %647 : vector<8x128xf32>
      %649 = vector.broadcast %646 : vector<8x1xf32> to vector<8x128xf32>
      %650 = arith.mulf %634, %649 : vector<8x128xf32>
      %651 = tpu.concatenate %648, %650 in 1 : vector<8x128xf32>, vector<8x128xf32> -> vector<8x256xf32>
      %c0_159 = arith.constant 0 : index
      %c0_160 = arith.constant 0 : index
      %652 = vector.load %arg19[%c0_159, %c0_160] : memref<8x256xf32, #tpu.memory_space<vmem>>, vector<8x256xf32>
      tpu.vector_store %arg19[%c0_159, %c0_160], %651 {strides = array<i32>} : memref<8x256xf32, #tpu.memory_space<vmem>>, vector<8x256xf32>,
      %c0_161 = arith.constant 0 : index
      %c0_162 = arith.constant 0 : index
      %653 = vector.load %arg13[%c0_161, %c0_162] : memref<256x8xf32, #tpu.memory_space<vmem>>, vector<256x8xf32>
      %cst_163 = arith.constant dense<0.000000e+00> : vector<8x8xf32>
      %654 = tpu.matmul %651, %653, %cst_163 {dimension_numbers = #tpu.dot_dimension_numbers<[1], [0], [0], [1], [0, 0, 1, 1], [], []>} : vector<8x256xf32>, vector<256x8xf32>, vector<8x8xf32> -> vector<8x8xf32>
      %c0_164 = arith.constant 0 : index
      %c0_165 = arith.constant 0 : index
      %655 = vector.load %arg14[%c0_164, %c0_165] : memref<1x8xf32, #tpu.memory_space<vmem>>, vector<1x8xf32>
      %656 = vector.broadcast %655 : vector<1x8xf32> to vector<8x8xf32>
      %657 = arith.addf %654, %656 : vector<8x8xf32>
      %c0_166 = arith.constant 0 : index
      %c0_167 = arith.constant 0 : index
      %658 = vector.load %arg17[%c0_166, %c0_167] : memref<8x8xf32, #tpu.memory_space<vmem>>, vector<8x8xf32>
      tpu.vector_store %arg17[%c0_166, %c0_167], %657 {strides = array<i32>} : memref<8x8xf32, #tpu.memory_space<vmem>>, vector<8x8xf32>,
      %c0_168 = arith.constant 0 : index
      %c0_169 = arith.constant 0 : index
      %659 = vector.load %arg15[%c0_168, %c0_169] : memref<256x8xf32, #tpu.memory_space<vmem>>, vector<256x8xf32>
      %cst_170 = arith.constant dense<0.000000e+00> : vector<8x8xf32>
      %660 = tpu.matmul %651, %659, %cst_170 {dimension_numbers = #tpu.dot_dimension_numbers<[1], [0], [0], [1], [0, 0, 1, 1], [], []>} : vector<8x256xf32>, vector<256x8xf32>, vector<8x8xf32> -> vector<8x8xf32>
      %c0_171 = arith.constant 0 : index
      %c0_172 = arith.constant 0 : index
      %661 = vector.load %arg16[%c0_171, %c0_172] : memref<1x8xf32, #tpu.memory_space<vmem>>, vector<1x8xf32>
      %662 = vector.broadcast %661 : vector<1x8xf32> to vector<8x8xf32>
      %663 = arith.addf %660, %662 : vector<8x8xf32>
      %cst_173 = arith.constant 0.000000e+00 : f32
      %664 = vector.broadcast %cst_173 : f32 to vector<8x8xf32>
      %665 = arith.maximumf %663, %664 : vector<8x8xf32>
      %666 = math.absf %663 : vector<8x8xf32>
      %cst_174 = arith.constant 0.000000e+00 : f32
      %667 = vector.broadcast %cst_174 : f32 to vector<8x8xf32>
      %668 = arith.subf %667, %666 : vector<8x8xf32>
      %669 = math.exp %668 : vector<8x8xf32>
      %cst_175 = arith.constant 1.000000e+00 : f32
      %670 = vector.broadcast %cst_175 : f32 to vector<8x8xf32>
      %671 = arith.addf %670, %669 : vector<8x8xf32>
      %672 = math.log %671 : vector<8x8xf32>
      %673 = arith.addf %665, %672 : vector<8x8xf32>
      %c0_176 = arith.constant 0 : index
      %c0_177 = arith.constant 0 : index
      %674 = vector.load %arg18[%c0_176, %c0_177] : memref<8x8xf32, #tpu.memory_space<vmem>>, vector<8x8xf32>
      tpu.vector_store %arg18[%c0_176, %c0_177], %673 {strides = array<i32>} : memref<8x8xf32, #tpu.memory_space<vmem>>, vector<8x8xf32>,
    } else {
    }
    return
  }
  func.func @transform_0(%arg0: i32, %arg1: i32) -> (i32, i32, i32, i32) {
    %c0_i32 = arith.constant 0 : i32
    %c0_i32_0 = arith.constant 0 : i32
    %c0_i32_1 = arith.constant 0 : i32
    return %arg0, %arg1, %c0_i32, %c0_i32_0 : i32, i32, i32, i32
  }
  func.func @transform_1(%arg0: i32, %arg1: i32) -> (i32, i32, i32, i32) {
    %c1_i32 = arith.constant 1 : i32
    %0 = arith.subi %c1_i32, %arg1 : i32
    %c0_i32 = arith.constant 0 : i32
    %c0_i32_0 = arith.constant 0 : i32
    %c0_i32_1 = arith.constant 0 : i32
    return %arg0, %0, %c0_i32, %c0_i32_0 : i32, i32, i32, i32
  }
  func.func @transform_2(%arg0: i32, %arg1: i32) -> (i32, i32) {
    %c0_i32 = arith.constant 0 : i32
    %c0_i32_0 = arith.constant 0 : i32
    return %arg0, %c0_i32 : i32, i32
  }
  func.func @transform_3(%arg0: i32, %arg1: i32) -> (i32, i32) {
    %c0_i32 = arith.constant 0 : i32
    %c0_i32_0 = arith.constant 0 : i32
    %c0_i32_1 = arith.constant 0 : i32
    return %c0_i32, %c0_i32_0 : i32, i32
  }
  func.func @transform_4(%arg0: i32, %arg1: i32) -> (i32, i32) {
    %c0_i32 = arith.constant 0 : i32
    %c0_i32_0 = arith.constant 0 : i32
    %c0_i32_1 = arith.constant 0 : i32
    return %c0_i32, %c0_i32_0 : i32, i32
  }
  func.func @transform_5(%arg0: i32, %arg1: i32) -> (i32, i32) {
    %c0_i32 = arith.constant 0 : i32
    %c0_i32_0 = arith.constant 0 : i32
    %c0_i32_1 = arith.constant 0 : i32
    return %c0_i32, %c0_i32_0 : i32, i32
  }
  func.func @transform_6(%arg0: i32, %arg1: i32) -> (i32, i32) {
    %c0_i32 = arith.constant 0 : i32
    %c0_i32_0 = arith.constant 0 : i32
    %c0_i32_1 = arith.constant 0 : i32
    return %c0_i32, %c0_i32_0 : i32, i32
  }
  func.func @transform_7(%arg0: i32, %arg1: i32) -> (i32, i32) {
    %c0_i32 = arith.constant 0 : i32
    %c0_i32_0 = arith.constant 0 : i32
    %c0_i32_1 = arith.constant 0 : i32
    return %c0_i32, %c0_i32_0 : i32, i32
  }
  func.func @transform_8(%arg0: i32, %arg1: i32) -> (i32, i32) {
    %c0_i32 = arith.constant 0 : i32
    %c0_i32_0 = arith.constant 0 : i32
    %c0_i32_1 = arith.constant 0 : i32
    return %c0_i32, %c0_i32_0 : i32, i32
  }
  func.func @transform_9(%arg0: i32, %arg1: i32) -> (i32, i32) {
    %c0_i32 = arith.constant 0 : i32
    %c0_i32_0 = arith.constant 0 : i32
    %c0_i32_1 = arith.constant 0 : i32
    return %c0_i32, %c0_i32_0 : i32, i32
  }
  func.func @transform_10(%arg0: i32, %arg1: i32) -> (i32, i32) {
    %c0_i32 = arith.constant 0 : i32
    %c0_i32_0 = arith.constant 0 : i32
    %c0_i32_1 = arith.constant 0 : i32
    return %c0_i32, %c0_i32_0 : i32, i32
  }
  func.func @transform_11(%arg0: i32, %arg1: i32) -> (i32, i32) {
    %c0_i32 = arith.constant 0 : i32
    %c0_i32_0 = arith.constant 0 : i32
    %c0_i32_1 = arith.constant 0 : i32
    return %c0_i32, %c0_i32_0 : i32, i32
  }
  func.func @transform_12(%arg0: i32, %arg1: i32) -> (i32, i32) {
    %c0_i32 = arith.constant 0 : i32
    %c0_i32_0 = arith.constant 0 : i32
    %c0_i32_1 = arith.constant 0 : i32
    return %c0_i32, %c0_i32_0 : i32, i32
  }
  func.func @transform_13(%arg0: i32, %arg1: i32) -> (i32, i32) {
    %c0_i32 = arith.constant 0 : i32
    %c0_i32_0 = arith.constant 0 : i32
    %c0_i32_1 = arith.constant 0 : i32
    return %c0_i32, %c0_i32_0 : i32, i32
  }
  func.func @transform_14(%arg0: i32, %arg1: i32) -> (i32, i32) {
    %c0_i32 = arith.constant 0 : i32
    %c0_i32_0 = arith.constant 0 : i32
    %c0_i32_1 = arith.constant 0 : i32
    return %c0_i32, %c0_i32_0 : i32, i32
  }
  func.func @transform_15(%arg0: i32, %arg1: i32) -> (i32, i32) {
    %c0_i32 = arith.constant 0 : i32
    %c0_i32_0 = arith.constant 0 : i32
    return %arg0, %c0_i32 : i32, i32
  }
  func.func @transform_16(%arg0: i32, %arg1: i32) -> (i32, i32) {
    %c0_i32 = arith.constant 0 : i32
    %c0_i32_0 = arith.constant 0 : i32
    return %arg0, %c0_i32 : i32, i32
  }
  func.func @transform_17(%arg0: i32, %arg1: i32) -> (i32, i32) {
    %c0_i32 = arith.constant 0 : i32
    %c0_i32_0 = arith.constant 0 : i32
    return %arg0, %c0_i32 : i32, i32
  }
}

</mosaic_0001>

<llo_original>
// kernel: tpu_custom_call.1
$region0: #{tpu_custom_call.1}
  #allocation0 [shape = 'u32[]', space=smem, size = 0x4, offset = 0x4, fixed_abs, tag = 'smem constant byte address 0x4 - core index']
  #allocation1 [shape = 'u32[144,128]{1,0:T(1,128)}', space=vmem, size = 0x12000, scoped, tag = 'internal scratch']
  #allocation2 [shape = 'f32[64,384]{1,0:T(8,128)}', space=vmem, size = 0x18000, scoped, tag = 'scratch operand']
  #allocation3 [shape = 'f32[64,384]{1,0:T(8,128)}', space=vmem, size = 0x18000, scoped, tag = 'scratch operand']
  #allocation4 [shape = 'f32[8,128]{1,0:T(8,128)}', space=vmem, size = 0x1000, scoped, tag = 'scratch operand']
  #allocation5 [shape = 'f32[8,128]{1,0:T(8,128)}', space=vmem, size = 0x1000, scoped, tag = 'scratch operand']
  #allocation6 [shape = 'f32[8,128]{1,0:T(8,128)}', space=vmem, size = 0x1000, scoped, tag = 'scratch operand']
  #allocation7 [shape = 'f32[8,128]{1,0:T(8,128)}', space=vmem, size = 0x1000, scoped, tag = 'scratch operand']
  %s0 = inlined_call_operand.vmem [shape: f32[1,2,64,4], index: 0, kind: input, shape index: {}]
  %s1 = inlined_call_operand.vmem [shape: f32[1,2,64,4], index: 1, kind: input, shape index: {}]
  %s2 = inlined_call_operand.vmem [shape: s32[8,1], index: 2, kind: input, shape index: {}]
  %s3 = inlined_call_operand.vmem [shape: f32[4,384], index: 3, kind: input, shape index: {}]
  %s4 = inlined_call_operand.vmem [shape: f32[1,384], index: 4, kind: input, shape index: {}]
  %s5 = inlined_call_operand.vmem [shape: f32[1,128], index: 5, kind: input, shape index: {}]
  %s6 = inlined_call_operand.vmem [shape: f32[128,384], index: 6, kind: input, shape index: {}]
  %s7 = inlined_call_operand.vmem [shape: f32[4,384], index: 7, kind: input, shape index: {}]
  %s8 = inlined_call_operand.vmem [shape: f32[1,384], index: 8, kind: input, shape index: {}]
  %s9 = inlined_call_operand.vmem [shape: f32[1,128], index: 9, kind: input, shape index: {}]
  %s10 = inlined_call_operand.vmem [shape: f32[128,384], index: 10, kind: input, shape index: {}]
  %s11 = inlined_call_operand.vmem [shape: f32[256,8], index: 11, kind: input, shape index: {}]
  %s12 = inlined_call_operand.vmem [shape: f32[1,8], index: 12, kind: input, shape index: {}]
  %s13 = inlined_call_operand.vmem [shape: f32[256,8], index: 13, kind: input, shape index: {}]
  %s14 = inlined_call_operand.vmem [shape: f32[1,8], index: 14, kind: input, shape index: {}]
  %s15 = inlined_call_operand.hbm [shape: f32[8,8], index: 15, kind: output, shape index: {0}]
  %s16 = inlined_call_operand.hbm [shape: f32[8,8], index: 16, kind: output, shape index: {1}]
  %s17 = inlined_call_operand.hbm [shape: f32[8,256], index: 17, kind: output, shape index: {2}]
  %18 = xla_tuple %s15, %s16, %s17
  %s19 = sld [smem:[#allocation0]]
  $region117: #{tpu_custom_call.1} parent=0
    _
  %s21 = ssub.s32 1, %s19
  %s22 = scalar_select 0, %s21, %s19
  $region1: #{tpu_custom_call.1} parent=0
    #allocation8 [shape = 'u8[4096]{0}', space=vmem, size = 0x1000, scoped, tag = 'output window, operand 0, single buffered']
    #allocation9 [shape = 's32[2]{0}', space=sflag, size = 0x8, scoped, tag = 'scoped memory for tpu_custom_call.1']
    #allocation10 [shape = 'u8[4096]{0}', space=vmem, size = 0x1000, scoped, tag = 'output window, operand 1, single buffered']
    #allocation11 [shape = 's32[1]{0}', space=sflag, size = 0x4, scoped, tag = 'scoped memory for tpu_custom_call.1']
    #allocation12 [shape = 'u8[8192]{0}', space=vmem, size = 0x2000, scoped, tag = 'output window, operand 2, single buffered']
    %23 = vsyncpa [#allocation9], 0
    %24 = vsyncpa [#allocation11], 0
    loop: start=0, step=1, limit=4
    $region2: #{tpu_custom_call.1} parent=1 // loop_pre_header
      _
    $region3: #{tpu_custom_call.1} parent=1 // loop_header
      %s26 = sphi 0, %s30
      %p27 = scmp.ge.s32.totalorder %s26, 4
      %s33 = sphi 0, %s45
      %s34 = sphi 0, %s41
      %s35 = sphi 0, %s33
      %s36 = sphi 0, %s34
      %s37 = sphi 0, %s35
      %s38 = sphi 0, %s36
      %s50 = sphi 0, %s52
      %s53 = sphi 0, %s50
      %s54 = sphi 0, %s53
      %s70 = sphi 0, %s54
      %s80 = sphi 0, %s82
      %s83 = sphi 0, %s80
      %s84 = sphi 0, %s83
      %s100 = sphi 0, %s84
      %s106 = sphi 0, %s108
      %s109 = sphi 0, %s106
      %s110 = sphi 0, %s109
      %s126 = sphi 0, %s110
      %s130 = sphi 0, %s130
      %s132 = sphi 0, %s130
      %s133 = sphi 0, %s132
      %s147 = sphi 0, %s133
      %s151 = sphi 0, %s151
      %s153 = sphi 0, %s151
      %s154 = sphi 0, %s153
      %s168 = sphi 0, %s154
      %s172 = sphi 0, %s172
      %s174 = sphi 0, %s172
      %s175 = sphi 0, %s174
      %s189 = sphi 0, %s175
      %s193 = sphi 0, %s193
      %s195 = sphi 0, %s193
      %s196 = sphi 0, %s195
      %s210 = sphi 0, %s196
      %s214 = sphi 0, %s214
      %s216 = sphi 0, %s214
      %s217 = sphi 0, %s216
      %s231 = sphi 0, %s217
      %s235 = sphi 0, %s235
      %s237 = sphi 0, %s235
      %s238 = sphi 0, %s237
      %s252 = sphi 0, %s238
      %s256 = sphi 0, %s256
      %s258 = sphi 0, %s256
      %s259 = sphi 0, %s258
      %s273 = sphi 0, %s259
      %s277 = sphi 0, %s277
      %s279 = sphi 0, %s277
      %s280 = sphi 0, %s279
      %s294 = sphi 0, %s280
      %s298 = sphi 0, %s298
      %s300 = sphi 0, %s298
      %s301 = sphi 0, %s300
      %s315 = sphi 0, %s301
      %s319 = sphi 0, %s319
      %s321 = sphi 0, %s319
      %s322 = sphi 0, %s321
      %s336 = sphi 0, %s322
      %s340 = sphi 0, %s340
      %s342 = sphi 0, %s340
      %s343 = sphi 0, %s342
      %s357 = sphi 0, %s343
      %s361 = sphi 0, %s361
      %s363 = sphi 0, %s361
      %s364 = sphi 0, %s363
      %s378 = sphi 0, %s364
      %s384 = sphi 0, %s386
      %s387 = sphi 0, %s384
      %s388 = sphi 0, %s387
      %s404 = sphi 0, %s388
      %s410 = sphi 0, %s412
      %s413 = sphi 0, %s410
      %s414 = sphi 0, %s413
      %s430 = sphi 0, %s414
      %s436 = sphi 0, %s438
      %s439 = sphi 0, %s436
      %s440 = sphi 0, %s439
      %s456 = sphi 0, %s440
    $region4: #{tpu_custom_call.1} parent=1 // loop_header_branch
      %29 = sbr.rel (%p27) target = $region8
    $region5: #{tpu_custom_call.1} parent=1 // loop_body
      %s31 = ssub.s32 %s26, 1
      %s32 = ssub.s32 %s26, 2
      %s39 = sadd.s32 1, %s34
      %p40 = scmp.ge.s32.totalorder %s39, 2
      %s41 = scalar_select %p40, 0, %s39
      %s42 = sadd.s32 1, %s33
      %s43 = scalar_select %p40, %s42, %s33
      %p44 = scmp.ge.s32.totalorder %s43, 1
      %s45 = scalar_select %p44, 0, %s43
      %s46 = ssub.s32 %s33, %s45
      %s47 = ssub.s32 %s34, %s41
      %s48 = sor.u32 %s46, %s47
      %p49 = scmp.eq.s32.totalorder %s48, 0
      %s51 = sadd.s32 %s50, 1
      %s52 = scalar_select %p49, %s50, %s51
      %p55 = pneg %p49
      %p56 = scmp.eq.s32.totalorder %s26, 1
      %p57 = por %p55, %p56
      %p58 = scmp.ne.s32.totalorder %s50, %s53
      %p59 = scmp.eq.s32.totalorder %s26, 0
      %p60 = por %p58, %p59
      %p61 = scmp.ne.s32.totalorder %s50, %s53
      %p62 = scmp.eq.s32.totalorder %s31, 1
      %p63 = por %p61, %p62
      %p64 = scmp.ne.s32.totalorder %s53, %s54
      %p65 = scmp.eq.s32.totalorder %s31, 0
      %p66 = por %p64, %p65
      %p67 = scmp.ne.s32.totalorder %s53, %s54
      %p68 = scmp.eq.s32.totalorder %s32, 1
      %p69 = por %p67, %p68
      %p71 = scmp.ne.s32.totalorder %s54, %s70
      %p72 = scmp.eq.s32.totalorder %s32, 0
      %p73 = por %p71, %p72
      %s74 = ssub.s32 1, %s34
      %s75 = ssub.s32 1, %s41
      %s76 = ssub.s32 %s33, %s45
      %s77 = ssub.s32 %s74, %s75
      %s78 = sor.u32 %s76, %s77
      %p79 = scmp.eq.s32.totalorder %s78, 0
      %s81 = sadd.s32 %s80, 1
      %s82 = scalar_select %p79, %s80, %s81
      %p85 = pneg %p79
      %p86 = scmp.eq.s32.totalorder %s26, 1
      %p87 = por %p85, %p86
      %p88 = scmp.ne.s32.totalorder %s80, %s83
      %p89 = scmp.eq.s32.totalorder %s26, 0
      %p90 = por %p88, %p89
      %p91 = scmp.ne.s32.totalorder %s80, %s83
      %p92 = scmp.eq.s32.totalorder %s31, 1
      %p93 = por %p91, %p92
      %p94 = scmp.ne.s32.totalorder %s83, %s84
      %p95 = scmp.eq.s32.totalorder %s31, 0
      %p96 = por %p94, %p95
      %p97 = scmp.ne.s32.totalorder %s83, %s84
      %p98 = scmp.eq.s32.totalorder %s32, 1
      %p99 = por %p97, %p98
      %p101 = scmp.ne.s32.totalorder %s84, %s100
      %p102 = scmp.eq.s32.totalorder %s32, 0
      %p103 = por %p101, %p102
      %s104 = ssub.s32 %s33, %s45
      %p105 = scmp.eq.s32.totalorder %s104, 0
      %s107 = sadd.s32 %s106, 1
      %s108 = scalar_select %p105, %s106, %s107
      %p111 = pneg %p105
      %p112 = scmp.eq.s32.totalorder %s26, 1
      %p113 = por %p111, %p112
      %p114 = scmp.ne.s32.totalorder %s106, %s109
      %p115 = scmp.eq.s32.totalorder %s26, 0
      %p116 = por %p114, %p115
      %p117 = scmp.ne.s32.totalorder %s106, %s109
      %p118 = scmp.eq.s32.totalorder %s31, 1
      %p119 = por %p117, %p118
      %p120 = scmp.ne.s32.totalorder %s109, %s110
      %p121 = scmp.eq.s32.totalorder %s31, 0
      %p122 = por %p120, %p121
      %p123 = scmp.ne.s32.totalorder %s109, %s110
      %p124 = scmp.eq.s32.totalorder %s32, 1
      %p125 = por %p123, %p124
      %p127 = scmp.ne.s32.totalorder %s110, %s126
      %p128 = scmp.eq.s32.totalorder %s32, 0
      %p129 = por %p127, %p128
      %s131 = sadd.s32 %s130, 1
      %p134 = scmp.eq.s32.totalorder %s26, 1
      %p135 = scmp.ne.s32.totalorder %s130, %s132
      %p136 = scmp.eq.s32.totalorder %s26, 0
      %p137 = por %p135, %p136
      %p138 = scmp.ne.s32.totalorder %s130, %s132
      %p139 = scmp.eq.s32.totalorder %s31, 1
      %p140 = por %p138, %p139
      %p141 = scmp.ne.s32.totalorder %s132, %s133
      %p142 = scmp.eq.s32.totalorder %s31, 0
      %p143 = por %p141, %p142
      %p144 = scmp.ne.s32.totalorder %s132, %s133
      %p145 = scmp.eq.s32.totalorder %s32, 1
      %p146 = por %p144, %p145
      %p148 = scmp.ne.s32.totalorder %s133, %s147
      %p149 = scmp.eq.s32.totalorder %s32, 0
      %p150 = por %p148, %p149
      %s152 = sadd.s32 %s151, 1
      %p155 = scmp.eq.s32.totalorder %s26, 1
      %p156 = scmp.ne.s32.totalorder %s151, %s153
      %p157 = scmp.eq.s32.totalorder %s26, 0
      %p158 = por %p156, %p157
      %p159 = scmp.ne.s32.totalorder %s151, %s153
      %p160 = scmp.eq.s32.totalorder %s31, 1
      %p161 = por %p159, %p160
      %p162 = scmp.ne.s32.totalorder %s153, %s154
      %p163 = scmp.eq.s32.totalorder %s31, 0
      %p164 = por %p162, %p163
      %p165 = scmp.ne.s32.totalorder %s153, %s154
      %p166 = scmp.eq.s32.totalorder %s32, 1
      %p167 = por %p165, %p166
      %p169 = scmp.ne.s32.totalorder %s154, %s168
      %p170 = scmp.eq.s32.totalorder %s32, 0
      %p171 = por %p169, %p170
      %s173 = sadd.s32 %s172, 1
      %p176 = scmp.eq.s32.totalorder %s26, 1
      %p177 = scmp.ne.s32.totalorder %s172, %s174
      %p178 = scmp.eq.s32.totalorder %s26, 0
      %p179 = por %p177, %p178
      %p180 = scmp.ne.s32.totalorder %s172, %s174
      %p181 = scmp.eq.s32.totalorder %s31, 1
      %p182 = por %p180, %p181
      %p183 = scmp.ne.s32.totalorder %s174, %s175
      %p184 = scmp.eq.s32.totalorder %s31, 0
      %p185 = por %p183, %p184
      %p186 = scmp.ne.s32.totalorder %s174, %s175
      %p187 = scmp.eq.s32.totalorder %s32, 1
      %p188 = por %p186, %p187
      %p190 = scmp.ne.s32.totalorder %s175, %s189
      %p191 = scmp.eq.s32.totalorder %s32, 0
      %p192 = por %p190, %p191
      %s194 = sadd.s32 %s193, 1
      %p197 = scmp.eq.s32.totalorder %s26, 1
      %p198 = scmp.ne.s32.totalorder %s193, %s195
      %p199 = scmp.eq.s32.totalorder %s26, 0
      %p200 = por %p198, %p199
      %p201 = scmp.ne.s32.totalorder %s193, %s195
      %p202 = scmp.eq.s32.totalorder %s31, 1
      %p203 = por %p201, %p202
      %p204 = scmp.ne.s32.totalorder %s195, %s196
      %p205 = scmp.eq.s32.totalorder %s31, 0
      %p206 = por %p204, %p205
      %p207 = scmp.ne.s32.totalorder %s195, %s196
      %p208 = scmp.eq.s32.totalorder %s32, 1
      %p209 = por %p207, %p208
      %p211 = scmp.ne.s32.totalorder %s196, %s210
      %p212 = scmp.eq.s32.totalorder %s32, 0
      %p213 = por %p211, %p212
      %s215 = sadd.s32 %s214, 1
      %p218 = scmp.eq.s32.totalorder %s26, 1
      %p219 = scmp.ne.s32.totalorder %s214, %s216
      %p220 = scmp.eq.s32.totalorder %s26, 0
      %p221 = por %p219, %p220
      %p222 = scmp.ne.s32.totalorder %s214, %s216
      %p223 = scmp.eq.s32.totalorder %s31, 1
      %p224 = por %p222, %p223
      %p225 = scmp.ne.s32.totalorder %s216, %s217
      %p226 = scmp.eq.s32.totalorder %s31, 0
      %p227 = por %p225, %p226
      %p228 = scmp.ne.s32.totalorder %s216, %s217
      %p229 = scmp.eq.s32.totalorder %s32, 1
      %p230 = por %p228, %p229
      %p232 = scmp.ne.s32.totalorder %s217, %s231
      %p233 = scmp.eq.s32.totalorder %s32, 0
      %p234 = por %p232, %p233
      %s236 = sadd.s32 %s235, 1
      %p239 = scmp.eq.s32.totalorder %s26, 1
      %p240 = scmp.ne.s32.totalorder %s235, %s237
      %p241 = scmp.eq.s32.totalorder %s26, 0
      %p242 = por %p240, %p241
      %p243 = scmp.ne.s32.totalorder %s235, %s237
      %p244 = scmp.eq.s32.totalorder %s31, 1
      %p245 = por %p243, %p244
      %p246 = scmp.ne.s32.totalorder %s237, %s238
      %p247 = scmp.eq.s32.totalorder %s31, 0
      %p248 = por %p246, %p247
      %p249 = scmp.ne.s32.totalorder %s237, %s238
      %p250 = scmp.eq.s32.totalorder %s32, 1
      %p251 = por %p249, %p250
      %p253 = scmp.ne.s32.totalorder %s238, %s252
      %p254 = scmp.eq.s32.totalorder %s32, 0
      %p255 = por %p253, %p254
      %s257 = sadd.s32 %s256, 1
      %p260 = scmp.eq.s32.totalorder %s26, 1
      %p261 = scmp.ne.s32.totalorder %s256, %s258
      %p262 = scmp.eq.s32.totalorder %s26, 0
      %p263 = por %p261, %p262
      %p264 = scmp.ne.s32.totalorder %s256, %s258
      %p265 = scmp.eq.s32.totalorder %s31, 1
      %p266 = por %p264, %p265
      %p267 = scmp.ne.s32.totalorder %s258, %s259
      %p268 = scmp.eq.s32.totalorder %s31, 0
      %p269 = por %p267, %p268
      %p270 = scmp.ne.s32.totalorder %s258, %s259
      %p271 = scmp.eq.s32.totalorder %s32, 1
      %p272 = por %p270, %p271
      %p274 = scmp.ne.s32.totalorder %s259, %s273
      %p275 = scmp.eq.s32.totalorder %s32, 0
      %p276 = por %p274, %p275
      %s278 = sadd.s32 %s277, 1
      %p281 = scmp.eq.s32.totalorder %s26, 1
      %p282 = scmp.ne.s32.totalorder %s277, %s279
      %p283 = scmp.eq.s32.totalorder %s26, 0
      %p284 = por %p282, %p283
      %p285 = scmp.ne.s32.totalorder %s277, %s279
      %p286 = scmp.eq.s32.totalorder %s31, 1
      %p287 = por %p285, %p286
      %p288 = scmp.ne.s32.totalorder %s279, %s280
      %p289 = scmp.eq.s32.totalorder %s31, 0
      %p290 = por %p288, %p289
      %p291 = scmp.ne.s32.totalorder %s279, %s280
      %p292 = scmp.eq.s32.totalorder %s32, 1
      %p293 = por %p291, %p292
      %p295 = scmp.ne.s32.totalorder %s280, %s294
      %p296 = scmp.eq.s32.totalorder %s32, 0
      %p297 = por %p295, %p296
      %s299 = sadd.s32 %s298, 1
      %p302 = scmp.eq.s32.totalorder %s26, 1
      %p303 = scmp.ne.s32.totalorder %s298, %s300
      %p304 = scmp.eq.s32.totalorder %s26, 0
      %p305 = por %p303, %p304
      %p306 = scmp.ne.s32.totalorder %s298, %s300
      %p307 = scmp.eq.s32.totalorder %s31, 1
      %p308 = por %p306, %p307
      %p309 = scmp.ne.s32.totalorder %s300, %s301
      %p310 = scmp.eq.s32.totalorder %s31, 0
      %p311 = por %p309, %p310
      %p312 = scmp.ne.s32.totalorder %s300, %s301
      %p313 = scmp.eq.s32.totalorder %s32, 1
      %p314 = por %p312, %p313
      %p316 = scmp.ne.s32.totalorder %s301, %s315
      %p317 = scmp.eq.s32.totalorder %s32, 0
      %p318 = por %p316, %p317
      %s320 = sadd.s32 %s319, 1
      %p323 = scmp.eq.s32.totalorder %s26, 1
      %p324 = scmp.ne.s32.totalorder %s319, %s321
      %p325 = scmp.eq.s32.totalorder %s26, 0
      %p326 = por %p324, %p325
      %p327 = scmp.ne.s32.totalorder %s319, %s321
      %p328 = scmp.eq.s32.totalorder %s31, 1
      %p329 = por %p327, %p328
      %p330 = scmp.ne.s32.totalorder %s321, %s322
      %p331 = scmp.eq.s32.totalorder %s31, 0
      %p332 = por %p330, %p331
      %p333 = scmp.ne.s32.totalorder %s321, %s322
      %p334 = scmp.eq.s32.totalorder %s32, 1
      %p335 = por %p333, %p334
      %p337 = scmp.ne.s32.totalorder %s322, %s336
      %p338 = scmp.eq.s32.totalorder %s32, 0
      %p339 = por %p337, %p338
      %s341 = sadd.s32 %s340, 1
      %p344 = scmp.eq.s32.totalorder %s26, 1
      %p345 = scmp.ne.s32.totalorder %s340, %s342
      %p346 = scmp.eq.s32.totalorder %s26, 0
      %p347 = por %p345, %p346
      %p348 = scmp.ne.s32.totalorder %s340, %s342
      %p349 = scmp.eq.s32.totalorder %s31, 1
      %p350 = por %p348, %p349
      %p351 = scmp.ne.s32.totalorder %s342, %s343
      %p352 = scmp.eq.s32.totalorder %s31, 0
      %p353 = por %p351, %p352
      %p354 = scmp.ne.s32.totalorder %s342, %s343
      %p355 = scmp.eq.s32.totalorder %s32, 1
      %p356 = por %p354, %p355
      %p358 = scmp.ne.s32.totalorder %s343, %s357
      %p359 = scmp.eq.s32.totalorder %s32, 0
      %p360 = por %p358, %p359
      %s362 = sadd.s32 %s361, 1
      %p365 = scmp.eq.s32.totalorder %s26, 1
      %p366 = scmp.ne.s32.totalorder %s361, %s363
      %p367 = scmp.eq.s32.totalorder %s26, 0
      %p368 = por %p366, %p367
      %p369 = scmp.ne.s32.totalorder %s361, %s363
      %p370 = scmp.eq.s32.totalorder %s31, 1
      %p371 = por %p369, %p370
      %p372 = scmp.ne.s32.totalorder %s363, %s364
      %p373 = scmp.eq.s32.totalorder %s31, 0
      %p374 = por %p372, %p373
      %p375 = scmp.ne.s32.totalorder %s363, %s364
      %p376 = scmp.eq.s32.totalorder %s32, 1
      %p377 = por %p375, %p376
      %p379 = scmp.ne.s32.totalorder %s364, %s378
      %p380 = scmp.eq.s32.totalorder %s32, 0
      %p381 = por %p379, %p380
      %s382 = ssub.s32 %s33, %s45
      %p383 = scmp.eq.s32.totalorder %s382, 0
      %s385 = sadd.s32 %s384, 1
      %s386 = scalar_select %p383, %s384, %s385
      %p389 = pneg %p383
      %p390 = scmp.eq.s32.totalorder %s26, 1
      %p391 = por %p389, %p390
      %p392 = scmp.ne.s32.totalorder %s384, %s387
      %p393 = scmp.eq.s32.totalorder %s26, 0
      %p394 = por %p392, %p393
      %p395 = scmp.ne.s32.totalorder %s384, %s387
      %p396 = scmp.eq.s32.totalorder %s31, 1
      %p397 = por %p395, %p396
      %p398 = scmp.ne.s32.totalorder %s387, %s388
      %p399 = scmp.eq.s32.totalorder %s31, 0
      %p400 = por %p398, %p399
      %p401 = scmp.ne.s32.totalorder %s387, %s388
      %p402 = scmp.eq.s32.totalorder %s32, 1
      %p403 = por %p401, %p402
      %p405 = scmp.ne.s32.totalorder %s388, %s404
      %p406 = scmp.eq.s32.totalorder %s32, 0
      %p407 = por %p405, %p406
      %s408 = ssub.s32 %s33, %s45
      %p409 = scmp.eq.s32.totalorder %s408, 0
      %s411 = sadd.s32 %s410, 1
      %s412 = scalar_select %p409, %s410, %s411
      %p415 = pneg %p409
      %p416 = scmp.eq.s32.totalorder %s26, 1
      %p417 = por %p415, %p416
      %p418 = scmp.ne.s32.totalorder %s410, %s413
      %p419 = scmp.eq.s32.totalorder %s26, 0
      %p420 = por %p418, %p419
      %p421 = scmp.ne.s32.totalorder %s410, %s413
      %p422 = scmp.eq.s32.totalorder %s31, 1
      %p423 = por %p421, %p422
      %p424 = scmp.ne.s32.totalorder %s413, %s414
      %p425 = scmp.eq.s32.totalorder %s31, 0
      %p426 = por %p424, %p425
      %p427 = scmp.ne.s32.totalorder %s413, %s414
      %p428 = scmp.eq.s32.totalorder %s32, 1
      %p429 = por %p427, %p428
      %p431 = scmp.ne.s32.totalorder %s414, %s430
      %p432 = scmp.eq.s32.totalorder %s32, 0
      %p433 = por %p431, %p432
      %s434 = ssub.s32 %s33, %s45
      %p435 = scmp.eq.s32.totalorder %s434, 0
      %s437 = sadd.s32 %s436, 1
      %s438 = scalar_select %p435, %s436, %s437
      %p441 = pneg %p435
      %p442 = scmp.eq.s32.totalorder %s26, 1
      %p443 = por %p441, %p442
      %p444 = scmp.ne.s32.totalorder %s436, %s439
      %p445 = scmp.eq.s32.totalorder %s26, 0
      %p446 = por %p444, %p445
      %p447 = scmp.ne.s32.totalorder %s436, %s439
      %p448 = scmp.eq.s32.totalorder %s31, 1
      %p449 = por %p447, %p448
      %p450 = scmp.ne.s32.totalorder %s439, %s440
      %p451 = scmp.eq.s32.totalorder %s31, 0
      %p452 = por %p450, %p451
      %p453 = scmp.ne.s32.totalorder %s439, %s440
      %p454 = scmp.eq.s32.totalorder %s32, 1
      %p455 = por %p453, %p454
      %p457 = scmp.ne.s32.totalorder %s440, %s456
      %p458 = scmp.eq.s32.totalorder %s32, 0
      %p459 = por %p457, %p458
      %p460 = scmp.le.s32.totalorder 1, %s26
      %p461 = scmp.lt.s32.totalorder %s26, 3
      %p462 = pnand %p460, %p461
      %p463 = pneg %p462
      // Predicated region
      $region9: #{tpu_custom_call.1} parent=5 // pred_check
        _
      $region10: #{tpu_custom_call.1} parent=5 // pred_check_branch
        %465 = sbr.rel (%p462) target = $region12
      $region11: #{tpu_custom_call.1} parent=5 // pred_region
        %s466 = ssub.s32 %s26, 1
        // Predicated region
        $region13: #{tpu_custom_call.1} parent=11 // pred_check
          %p467 = pneg %p122
        $region14: #{tpu_custom_call.1} parent=11 // pred_check_branch
          %469 = sbr.rel (%p467) target = $region16
        $region15: #{tpu_custom_call.1} parent=11 // pred_region
          %p470 = scmp.lt.s32.totalorder %s35, 0
          %s471 = scalar_select %p470, %s35, 0
          %s472 = smul.addr %s471, 8
          %s473 = scalar_lea.vmem %s2, %s472
        $region16: #{tpu_custom_call.1} parent=11 // pred_fallthru
          _
        // Predicated region
        $region17: #{tpu_custom_call.1} parent=11 // pred_check
          %p474 = pneg %p143
        $region18: #{tpu_custom_call.1} parent=11 // pred_check_branch
          %476 = sbr.rel (%p474) target = $region20
        $region19: #{tpu_custom_call.1} parent=11 // pred_region
          _
        $region20: #{tpu_custom_call.1} parent=11 // pred_fallthru
          _
        // Predicated region
        $region21: #{tpu_custom_call.1} parent=11 // pred_check
          %p477 = pneg %p164
        $region22: #{tpu_custom_call.1} parent=11 // pred_check_branch
          %479 = sbr.rel (%p477) target = $region24
        $region23: #{tpu_custom_call.1} parent=11 // pred_region
          _
        $region24: #{tpu_custom_call.1} parent=11 // pred_fallthru
          _
        // Predicated region
        $region25: #{tpu_custom_call.1} parent=11 // pred_check
          %p480 = pneg %p185
        $region26: #{tpu_custom_call.1} parent=11 // pred_check_branch
          %482 = sbr.rel (%p480) target = $region28
        $region27: #{tpu_custom_call.1} parent=11 // pred_region
          _
        $region28: #{tpu_custom_call.1} parent=11 // pred_fallthru
          _
        // Predicated region
        $region29: #{tpu_custom_call.1} parent=11 // pred_check
          %p483 = pneg %p206
        $region30: #{tpu_custom_call.1} parent=11 // pred_check_branch
          %485 = sbr.rel (%p483) target = $region32
        $region31: #{tpu_custom_call.1} parent=11 // pred_region
          _
        $region32: #{tpu_custom_call.1} parent=11 // pred_fallthru
          _
        // Predicated region
        $region33: #{tpu_custom_call.1} parent=11 // pred_check
          %p486 = pneg %p227
        $region34: #{tpu_custom_call.1} parent=11 // pred_check_branch
          %488 = sbr.rel (%p486) target = $region36
        $region35: #{tpu_custom_call.1} parent=11 // pred_region
          _
        $region36: #{tpu_custom_call.1} parent=11 // pred_fallthru
          _
        // Predicated region
        $region37: #{tpu_custom_call.1} parent=11 // pred_check
          %p489 = pneg %p248
        $region38: #{tpu_custom_call.1} parent=11 // pred_check_branch
          %491 = sbr.rel (%p489) target = $region40
        $region39: #{tpu_custom_call.1} parent=11 // pred_region
          _
        $region40: #{tpu_custom_call.1} parent=11 // pred_fallthru
          _
        // Predicated region
        $region41: #{tpu_custom_call.1} parent=11 // pred_check
          %p492 = pneg %p269
        $region42: #{tpu_custom_call.1} parent=11 // pred_check_branch
          %494 = sbr.rel (%p492) target = $region44
        $region43: #{tpu_custom_call.1} parent=11 // pred_region
          _
        $region44: #{tpu_custom_call.1} parent=11 // pred_fallthru
          _
        // Predicated region
        $region45: #{tpu_custom_call.1} parent=11 // pred_check
          %p495 = pneg %p290
        $region46: #{tpu_custom_call.1} parent=11 // pred_check_branch
          %497 = sbr.rel (%p495) target = $region48
        $region47: #{tpu_custom_call.1} parent=11 // pred_region
          _
        $region48: #{tpu_custom_call.1} parent=11 // pred_fallthru
          _
        // Predicated region
        $region49: #{tpu_custom_call.1} parent=11 // pred_check
          %p498 = pneg %p311
        $region50: #{tpu_custom_call.1} parent=11 // pred_check_branch
          %500 = sbr.rel (%p498) target = $region52
        $region51: #{tpu_custom_call.1} parent=11 // pred_region
          _
        $region52: #{tpu_custom_call.1} parent=11 // pred_fallthru
          _
        // Predicated region
        $region53: #{tpu_custom_call.1} parent=11 // pred_check
          %p501 = pneg %p332
        $region54: #{tpu_custom_call.1} parent=11 // pred_check_branch
          %503 = sbr.rel (%p501) target = $region56
        $region55: #{tpu_custom_call.1} parent=11 // pred_region
          _
        $region56: #{tpu_custom_call.1} parent=11 // pred_fallthru
          _
        // Predicated region
        $region57: #{tpu_custom_call.1} parent=11 // pred_check
          %p504 = pneg %p353
        $region58: #{tpu_custom_call.1} parent=11 // pred_check_branch
          %506 = sbr.rel (%p504) target = $region60
        $region59: #{tpu_custom_call.1} parent=11 // pred_region
          _
        $region60: #{tpu_custom_call.1} parent=11 // pred_fallthru
          _
        // Predicated region
        $region61: #{tpu_custom_call.1} parent=11 // pred_check
          %p507 = pneg %p374
        $region62: #{tpu_custom_call.1} parent=11 // pred_check_branch
          %509 = sbr.rel (%p507) target = $region64
        $region63: #{tpu_custom_call.1} parent=11 // pred_region
          _
        $region64: #{tpu_custom_call.1} parent=11 // pred_fallthru
          _
      $region12: #{tpu_custom_call.1} parent=5 // pred_fallthru
        _
      %p510 = scmp.lt.s32.totalorder %s26, 2
      // Predicated region
      $region65: #{tpu_custom_call.1} parent=5 // pred_check
        %p511 = pneg %p510
      $region66: #{tpu_custom_call.1} parent=5 // pred_check_branch
        %513 = sbr.rel (%p511) target = $region68
      $region67: #{tpu_custom_call.1} parent=5 // pred_region
        // Predicated region
        $region69: #{tpu_custom_call.1} parent=67 // pred_check
          %p514 = pneg %p60
        $region70: #{tpu_custom_call.1} parent=67 // pred_check_branch
          %516 = sbr.rel (%p514) target = $region72
        $region71: #{tpu_custom_call.1} parent=67 // pred_region
          %p517 = scmp.lt.s32.totalorder %s33, 0
          %s518 = scalar_select %p517, %s33, 0
          %p519 = scmp.lt.s32.totalorder %s34, 1
          %s520 = scalar_select %p519, %s34, 1
          %s521 = smul.addr %s520, 8
          %s522 = smul.addr %s518, 16
          %s523 = sadd.s32 %s521, %s522
          %s524 = smul.addr %s523, 8
          %s525 = scalar_lea.vmem %s0, %s524
        $region72: #{tpu_custom_call.1} parent=67 // pred_fallthru
          _
        // Predicated region
        $region73: #{tpu_custom_call.1} parent=67 // pred_check
          %p526 = pneg %p90
        $region74: #{tpu_custom_call.1} parent=67 // pred_check_branch
          %528 = sbr.rel (%p526) target = $region76
        $region75: #{tpu_custom_call.1} parent=67 // pred_region
          %s529 = ssub.s32 1, %s34
          %p530 = scmp.lt.s32.totalorder %s33, 0
          %s531 = scalar_select %p530, %s33, 0
          %p532 = scmp.lt.s32.totalorder %s529, 1
          %s533 = scalar_select %p532, %s529, 1
          %s534 = smul.addr %s533, 8
          %s535 = smul.addr %s531, 16
          %s536 = sadd.s32 %s534, %s535
          %s537 = smul.addr %s536, 8
          %s538 = scalar_lea.vmem %s1, %s537
          %s539 = ssub.s32 1, %s34
        $region76: #{tpu_custom_call.1} parent=67 // pred_fallthru
          _
      $region68: #{tpu_custom_call.1} parent=5 // pred_fallthru
        _
      %p540 = scmp.le.s32.totalorder 1, %s26
      %p541 = scmp.lt.s32.totalorder %s26, 3
      %p542 = pnand %p540, %p541
      %p543 = pneg %p542
      // Predicated region
      $region77: #{tpu_custom_call.1} parent=5 // pred_check
        _
      $region78: #{tpu_custom_call.1} parent=5 // pred_check_branch
        %545 = sbr.rel (%p542) target = $region80
      $region79: #{tpu_custom_call.1} parent=5 // pred_region
        %s546 = ssub.s32 %s26, 1
        %p547 = scmp.lt.s32.totalorder %s35, 0
        %s548 = scalar_select %p547, %s35, 0
        %p549 = scmp.lt.s32.totalorder %s36, 1
        %s550 = scalar_select %p549, %s36, 1
        %s551 = smul.addr %s550, 8
        %s552 = smul.addr %s548, 16
        %s553 = sadd.s32 %s551, %s552
        %s554 = smul.addr %s553, 8
        %s555 = scalar_lea.vmem %s0, %s554
        %p556 = pneg %p66
        %p557 = pneg %p63
        %s558 = ssub.s32 1, %s36
        %p559 = scmp.lt.s32.totalorder %s35, 0
        %s560 = scalar_select %p559, %s35, 0
        %p561 = scmp.lt.s32.totalorder %s558, 1
        %s562 = scalar_select %p561, %s558, 1
        %s563 = smul.addr %s562, 8
        %s564 = smul.addr %s560, 16
        %s565 = sadd.s32 %s563, %s564
        %s566 = smul.addr %s565, 8
        %s567 = scalar_lea.vmem %s1, %s566
        %p568 = pneg %p96
        %p569 = pneg %p93
        %p570 = scmp.lt.s32.totalorder %s35, 0
        %s571 = scalar_select %p570, %s35, 0
        %s572 = smul.addr %s571, 8
        %s573 = scalar_lea.vmem %s2, %s572
        %p574 = pneg %p122
        %p575 = pneg %p119
        %p576 = pneg %p143
        %p577 = pneg %p140
        %p578 = pneg %p164
        %p579 = pneg %p161
        %p580 = pneg %p185
        %p581 = pneg %p182
        %p582 = pneg %p206
        %p583 = pneg %p203
        %p584 = pneg %p227
        %p585 = pneg %p224
        %p586 = pneg %p248
        %p587 = pneg %p245
        %p588 = pneg %p269
        %p589 = pneg %p266
        %p590 = pneg %p290
        %p591 = pneg %p287
        %p592 = pneg %p311
        %p593 = pneg %p308
        %p594 = pneg %p332
        %p595 = pneg %p329
        %p596 = pneg %p353
        %p597 = pneg %p350
        %p598 = pneg %p374
        %p599 = pneg %p371
        %p600 = pneg %p400
        %p601 = pneg %p397
        %p602 = pneg %p426
        %p603 = pneg %p423
        %p604 = pneg %p452
        %p605 = pneg %p449
        %p606 = scmp.lt.s32.totalorder %s35, 0
        %s607 = scalar_select %p606, %s35, 0
        %p608 = scmp.lt.s32.totalorder %s36, 1
        %s609 = scalar_select %p608, %s36, 1
        %s610 = smul.addr %s609, 8
        %s611 = smul.addr %s607, 16
        %s612 = sadd.s32 %s610, %s611
        %s613 = smul.addr %s612, 8
        %s614 = scalar_lea.vmem %s0, %s613
        %s615 = ssub.s32 1, %s36
        %p616 = scmp.lt.s32.totalorder %s35, 0
        %s617 = scalar_select %p616, %s35, 0
        %p618 = scmp.lt.s32.totalorder %s615, 1
        %s619 = scalar_select %p618, %s615, 1
        %s620 = smul.addr %s619, 8
        %s621 = smul.addr %s617, 16
        %s622 = sadd.s32 %s620, %s621
        %s623 = smul.addr %s622, 8
        %s624 = scalar_lea.vmem %s1, %s623
        %s625 = ssub.s32 1, %s36
        %p626 = scmp.lt.s32.totalorder %s35, 0
        %s627 = scalar_select %p626, %s35, 0
        %s628 = smul.addr %s627, 8
        %s629 = scalar_lea.vmem %s2, %s628
        %p630 = scmp.eq.s32.totalorder %s36, 0
        // Predicated region
        $region81: #{tpu_custom_call.1} parent=79 // pred_check
          %p631 = pneg %p630
        $region82: #{tpu_custom_call.1} parent=79 // pred_check_branch
          %633 = sbr.rel (%p631) target = $region84
        $region83: #{tpu_custom_call.1} parent=79 // pred_region
          %634 = vst [vmem:[#allocation4] sm:$0xff] 0.0
          %635 = vst [vmem:[#allocation5] sm:$0xff] 0.0
          %636 = vst [vmem:[#allocation6] sm:$0xff] 0.0
          %637 = vst [vmem:[#allocation7] sm:$0xff] 0.0
        $region84: #{tpu_custom_call.1} parent=79 // pred_fallthru
          _
        %v638 = vld [vmem:[%s614] sm:$0xff]
        %v639 = vld [vmem:[%s614 + $0x8] sm:$0xff]
        %v640 = vld [vmem:[%s614 + $0x10] sm:$0xff]
        %v641 = vld [vmem:[%s614 + $0x18] sm:$0xff]
        %v642 = vld [vmem:[%s614 + $0x20] sm:$0xff]
        %v643 = vld [vmem:[%s614 + $0x28] sm:$0xff]
        %v644 = vld [vmem:[%s614 + $0x30] sm:$0xff]
        %v645 = vld [vmem:[%s614 + $0x38] sm:$0xff]
        %v646 = vld [vmem:[%s3] sm:$0xff]
        %v647 = vld [vmem:[%s3 + $0x8] sm:$0xf]
        %v648 = vld [vmem:[%s4] sm:$0x7]
        %v650 = vlaneseq
        %v651 = vshrl.u32 %v650, 7
        %v652 = vsub.s32 0, %v651
        %v653 = vrot.slane %v648, %v652
        %v654 = vlaneseq
        %v655 = vshrl.u32 %v654, 7
        %v656 = vsub.s32 1, %v655
        %v657 = vrot.slane %v648, %v656
        %v658 = vlaneseq
        %v659 = vshrl.u32 %v658, 7
        %v660 = vsub.s32 2, %v659
        %v661 = vrot.slane %v648, %v660
        %v667 = vcombine.high %v646, %v646
        %vm668 = vcmask 31744
        %v670 = vsel %vm668, %v638, 0
        %v673 = vsel %vm668, %v639, 0
        %v676 = vsel %vm668, %v640, 0
        %v679 = vsel %vm668, %v641, 0
        %v682 = vsel %vm668, %v642, 0
        %v685 = vsel %vm668, %v643, 0
        %v688 = vsel %vm668, %v644, 0
        %v691 = vsel %vm668, %v645, 0
        %vm693 = vcmask 1043456
        %v694 = vsel %vm693, %v646, 0
        %v696 = vsel %vm693, %v667, 0
        %v698 = vsel %vm693, %v647, 0
        %700 = vmatprep.subr.mxu0 %v696
        %701 = vmatpush1.msra.mxu0 %v694
        %702 = vmatprep.subr.mxu0 0.0
        %703 = vmatpush1.msra.mxu0 0.0
        %704 = vmatprep.subr.mxu0 0.0
        %705 = vmatpush1.msra.mxu0 0.0
        %706 = vmatprep.subr.mxu0 0.0
        %707 = vmatpush1.msra.mxu0 0.0
        %708 = vmatprep.subr.mxu0 0.0
        %709 = vmatpush1.msra.mxu0 0.0
        %710 = vmatprep.subr.mxu0 0.0
        %711 = vmatpush1.msra.mxu0 0.0
        %712 = vmatprep.subr.mxu0 0.0
        %713 = vmatpush1.msra.mxu0 0.0
        %714 = vmatprep.subr.mxu0 0.0
        %715 = vmatpush1.msra.mxu0 0.0
        %716 = vmatprep.subr.mxu0 0.0
        %717 = vmatpush1.msra.mxu0 0.0
        %718 = vmatprep.subr.mxu0 0.0
        %719 = vmatpush1.msra.mxu0 0.0
        %720 = vmatprep.subr.mxu0 0.0
        %721 = vmatpush1.msra.mxu0 0.0
        %722 = vmatprep.subr.mxu0 0.0
        %723 = vmatpush1.msra.mxu0 0.0
        %724 = vmatprep.subr.mxu0 0.0
        %725 = vmatpush1.msra.mxu0 0.0
        %726 = vmatprep.subr.mxu0 0.0
        %727 = vmatpush1.msra.mxu0 0.0
        %728 = vmatprep.subr.mxu0 0.0
        %729 = vmatpush1.msra.mxu0 0.0
        %730 = vmatprep.subr.mxu0 0.0
        %731 = vmatpush1.msra.mxu0 0.0
        %732 = vmatprep.subr.mxu0 0.0
        %733 = vmatpush1.msra.mxu0 0.0
        %734 = vmatprep.subr.mxu0 0.0
        %735 = vmatpush1.msra.mxu0 0.0
        %736 = vmatprep.subr.mxu0 0.0
        %737 = vmatpush1.msra.mxu0 0.0
        %738 = vmatprep.subr.mxu0 0.0
        %739 = vmatpush1.msra.mxu0 0.0
        %740 = vmatprep.subr.mxu0 0.0
        %741 = vmatpush1.msra.mxu0 0.0
        %742 = vmatprep.subr.mxu0 0.0
        %743 = vmatpush1.msra.mxu0 0.0
        %744 = vmatprep.subr.mxu0 0.0
        %745 = vmatpush1.msra.mxu0 0.0
        %746 = vmatprep.subr.mxu0 0.0
        %747 = vmatpush1.msra.mxu0 0.0
        %748 = vmatprep.subr.mxu0 0.0
        %749 = vmatpush1.msra.mxu0 0.0
        %750 = vmatprep.subr.mxu0 0.0
        %751 = vmatpush1.msra.mxu0 0.0
        %752 = vmatprep.subr.mxu0 0.0
        %753 = vmatpush1.msra.mxu0 0.0
        %754 = vmatprep.subr.mxu0 0.0
        %755 = vmatpush1.msra.mxu0 0.0
        %756 = vmatprep.subr.mxu0 0.0
        %757 = vmatpush1.msra.mxu0 0.0
        %758 = vmatprep.subr.mxu0 0.0
        %759 = vmatpush1.msra.mxu0 0.0
        %760 = vmatprep.subr.mxu0 0.0
        %761 = vmatpush1.msra.mxu0 0.0
        %762 = vmatprep.subr.mxu0 0.0
        %763 = vmatpush1.msra.mxu0 0.0
        %764 = vmatprep.mubr.f32.mxu0 0.0
        %765 = vmatmul.mubr.f32.gmra.mrb[0].mxu0 %v670
        %v766 = vpop.f32.mrb[0].mxu0
        %v767 = vadd.f32 %v653, %v766
        %v768 = vpop.f32.mrb[0].mxu0
        %v769 = vadd.f32 %v657, %v768
        %770 = vmatprep.mubr.f32.mxu0 0.0
        %771 = vmatmul.mubr.f32.gmra.mrb[0].mxu0 %v673
        %v772 = vpop.f32.mrb[0].mxu0
        %v773 = vadd.f32 %v653, %v772
        %v774 = vpop.f32.mrb[0].mxu0
        %v775 = vadd.f32 %v657, %v774
        %776 = vmatprep.mubr.f32.mxu0 0.0
        %777 = vmatmul.mubr.f32.gmra.mrb[0].mxu0 %v676
        %v778 = vpop.f32.mrb[0].mxu0
        %v779 = vadd.f32 %v653, %v778
        %v780 = vpop.f32.mrb[0].mxu0
        %v781 = vadd.f32 %v657, %v780
        %782 = vmatprep.mubr.f32.mxu0 0.0
        %783 = vmatmul.mubr.f32.gmra.mrb[0].mxu0 %v679
        %v784 = vpop.f32.mrb[0].mxu0
        %v785 = vadd.f32 %v653, %v784
        %v786 = vpop.f32.mrb[0].mxu0
        %v787 = vadd.f32 %v657, %v786
        %788 = vmatprep.mubr.f32.mxu0 0.0
        %789 = vmatmul.mubr.f32.gmra.mrb[0].mxu0 %v682
        %v790 = vpop.f32.mrb[0].mxu0
        %v791 = vadd.f32 %v653, %v790
        %v792 = vpop.f32.mrb[0].mxu0
        %v793 = vadd.f32 %v657, %v792
        %794 = vmatprep.mubr.f32.mxu0 0.0
        %795 = vmatmul.mubr.f32.gmra.mrb[0].mxu0 %v685
        %v796 = vpop.f32.mrb[0].mxu0
        %v797 = vadd.f32 %v653, %v796
        %v798 = vpop.f32.mrb[0].mxu0
        %v799 = vadd.f32 %v657, %v798
        %800 = vmatprep.mubr.f32.mxu0 0.0
        %801 = vmatmul.mubr.f32.gmra.mrb[0].mxu0 %v688
        %v802 = vpop.f32.mrb[0].mxu0
        %v803 = vadd.f32 %v653, %v802
        %v804 = vpop.f32.mrb[0].mxu0
        %v805 = vadd.f32 %v657, %v804
        %806 = vmatprep.mubr.f32.mxu0 0.0
        %807 = vmatmul.mubr.f32.gmra.mrb[0].mxu0 %v691
        %v808 = vpop.f32.mrb[0].mxu0
        %v809 = vadd.f32 %v653, %v808
        %v810 = vpop.f32.mrb[0].mxu0
        %v811 = vadd.f32 %v657, %v810
        %812 = vdwg.mxu0
        %813 = vmatprep.subr.mxu0 0.0
        %814 = vmatpush1.msra.mxu0 %v698
        %815 = vmatprep.subr.mxu0 0.0
        %816 = vmatpush1.msra.mxu0 0.0
        %817 = vmatprep.subr.mxu0 0.0
        %818 = vmatpush1.msra.mxu0 0.0
        %819 = vmatprep.subr.mxu0 0.0
        %820 = vmatpush1.msra.mxu0 0.0
        %821 = vmatprep.subr.mxu0 0.0
        %822 = vmatpush1.msra.mxu0 0.0
        %823 = vmatprep.subr.mxu0 0.0
        %824 = vmatpush1.msra.mxu0 0.0
        %825 = vmatprep.subr.mxu0 0.0
        %826 = vmatpush1.msra.mxu0 0.0
        %827 = vmatprep.subr.mxu0 0.0
        %828 = vmatpush1.msra.mxu0 0.0
        %829 = vmatprep.subr.mxu0 0.0
        %830 = vmatpush1.msra.mxu0 0.0
        %831 = vmatprep.subr.mxu0 0.0
        %832 = vmatpush1.msra.mxu0 0.0
        %833 = vmatprep.subr.mxu0 0.0
        %834 = vmatpush1.msra.mxu0 0.0
        %835 = vmatprep.subr.mxu0 0.0
        %836 = vmatpush1.msra.mxu0 0.0
        %837 = vmatprep.subr.mxu0 0.0
        %838 = vmatpush1.msra.mxu0 0.0
        %839 = vmatprep.subr.mxu0 0.0
        %840 = vmatpush1.msra.mxu0 0.0
        %841 = vmatprep.subr.mxu0 0.0
        %842 = vmatpush1.msra.mxu0 0.0
        %843 = vmatprep.subr.mxu0 0.0
        %844 = vmatpush1.msra.mxu0 0.0
        %845 = vmatprep.subr.mxu0 0.0
        %846 = vmatpush1.msra.mxu0 0.0
        %847 = vmatprep.subr.mxu0 0.0
        %848 = vmatpush1.msra.mxu0 0.0
        %849 = vmatprep.subr.mxu0 0.0
        %850 = vmatpush1.msra.mxu0 0.0
        %851 = vmatprep.subr.mxu0 0.0
        %852 = vmatpush1.msra.mxu0 0.0
        %853 = vmatprep.subr.mxu0 0.0
        %854 = vmatpush1.msra.mxu0 0.0
        %855 = vmatprep.subr.mxu0 0.0
        %856 = vmatpush1.msra.mxu0 0.0
        %857 = vmatprep.subr.mxu0 0.0
        %858 = vmatpush1.msra.mxu0 0.0
        %859 = vmatprep.subr.mxu0 0.0
        %860 = vmatpush1.msra.mxu0 0.0
        %861 = vmatprep.subr.mxu0 0.0
        %862 = vmatpush1.msra.mxu0 0.0
        %863 = vmatprep.subr.mxu0 0.0
        %864 = vmatpush1.msra.mxu0 0.0
        %865 = vmatprep.subr.mxu0 0.0
        %866 = vmatpush1.msra.mxu0 0.0
        %867 = vmatprep.subr.mxu0 0.0
        %868 = vmatpush1.msra.mxu0 0.0
        %869 = vmatprep.subr.mxu0 0.0
        %870 = vmatpush1.msra.mxu0 0.0
        %871 = vmatprep.subr.mxu0 0.0
        %872 = vmatpush1.msra.mxu0 0.0
        %873 = vmatprep.subr.mxu0 0.0
        %874 = vmatpush1.msra.mxu0 0.0
        %875 = vmatprep.subr.mxu0 0.0
        %876 = vmatpush1.msra.mxu0 0.0
        %877 = vmatprep.mubr.f32.mxu0 0.0
        %878 = vmatmul.mubr.f32.gmra.mrb[0].mxu0 %v670
        %v879 = vpop.f32.mrb[0].mxu0
        %v880 = vadd.f32 %v661, %v879
        %v881 = vpop.f32.mrb[0].mxu0
        %882 = vmatprep.mubr.f32.mxu0 0.0
        %883 = vmatmul.mubr.f32.gmra.mrb[0].mxu0 %v673
        %v884 = vpop.f32.mrb[0].mxu0
        %v885 = vadd.f32 %v661, %v884
        %v886 = vpop.f32.mrb[0].mxu0
        %887 = vmatprep.mubr.f32.mxu0 0.0
        %888 = vmatmul.mubr.f32.gmra.mrb[0].mxu0 %v676
        %v889 = vpop.f32.mrb[0].mxu0
        %v890 = vadd.f32 %v661, %v889
        %v891 = vpop.f32.mrb[0].mxu0
        %892 = vmatprep.mubr.f32.mxu0 0.0
        %893 = vmatmul.mubr.f32.gmra.mrb[0].mxu0 %v679
        %v894 = vpop.f32.mrb[0].mxu0
        %v895 = vadd.f32 %v661, %v894
        %v896 = vpop.f32.mrb[0].mxu0
        %897 = vmatprep.mubr.f32.mxu0 0.0
        %898 = vmatmul.mubr.f32.gmra.mrb[0].mxu0 %v682
        %v899 = vpop.f32.mrb[0].mxu0
        %v900 = vadd.f32 %v661, %v899
        %v901 = vpop.f32.mrb[0].mxu0
        %902 = vmatprep.mubr.f32.mxu0 0.0
        %903 = vmatmul.mubr.f32.gmra.mrb[0].mxu0 %v685
        %v904 = vpop.f32.mrb[0].mxu0
        %v905 = vadd.f32 %v661, %v904
        %v906 = vpop.f32.mrb[0].mxu0
        %907 = vmatprep.mubr.f32.mxu0 0.0
        %908 = vmatmul.mubr.f32.gmra.mrb[0].mxu0 %v688
        %v909 = vpop.f32.mrb[0].mxu0
        %v910 = vadd.f32 %v661, %v909
        %v911 = vpop.f32.mrb[0].mxu0
        %912 = vmatprep.mubr.f32.mxu0 0.0
        %913 = vmatmul.mubr.f32.gmra.mrb[0].mxu0 %v691
        %v914 = vpop.f32.mrb[0].mxu0
        %v915 = vadd.f32 %v661, %v914
        %v916 = vpop.f32.mrb[0].mxu0
        %917 = vdwg.mxu0
        %918 = vst [vmem:[#allocation2] sm:$0xff] %v767
        %919 = vst [vmem:[#allocation2 + $0x8] sm:$0xff] %v769
        %920 = vst [vmem:[#allocation2 + $0x10] sm:$0xff] %v880
        %921 = vst [vmem:[#allocation2 + $0x18] sm:$0xff] %v773
        %922 = vst [vmem:[#allocation2 + $0x20] sm:$0xff] %v775
        %923 = vst [vmem:[#allocation2 + $0x28] sm:$0xff] %v885
        %924 = vst [vmem:[#allocation2 + $0x30] sm:$0xff] %v779
        %925 = vst [vmem:[#allocation2 + $0x38] sm:$0xff] %v781
        %926 = vst [vmem:[#allocation2 + $0x40] sm:$0xff] %v890
        %927 = vst [vmem:[#allocation2 + $0x48] sm:$0xff] %v785
        %928 = vst [vmem:[#allocation2 + $0x50] sm:$0xff] %v787
        %929 = vst [vmem:[#allocation2 + $0x58] sm:$0xff] %v895
        %930 = vst [vmem:[#allocation2 + $0x60] sm:$0xff] %v791
        %931 = vst [vmem:[#allocation2 + $0x68] sm:$0xff] %v793
        %932 = vst [vmem:[#allocation2 + $0x70] sm:$0xff] %v900
        %933 = vst [vmem:[#allocation2 + $0x78] sm:$0xff] %v797
        %934 = vst [vmem:[#allocation2 + $0x80] sm:$0xff] %v799
        %935 = vst [vmem:[#allocation2 + $0x88] sm:$0xff] %v905
        %936 = vst [vmem:[#allocation2 + $0x90] sm:$0xff] %v803
        %937 = vst [vmem:[#allocation2 + $0x98] sm:$0xff] %v805
        %938 = vst [vmem:[#allocation2 + $0xa0] sm:$0xff] %v910
        %939 = vst [vmem:[#allocation2 + $0xa8] sm:$0xff] %v809
        %940 = vst [vmem:[#allocation2 + $0xb0] sm:$0xff] %v811
        %941 = vst [vmem:[#allocation2 + $0xb8] sm:$0xff] %v915
        %v942 = vld [vmem:[%s624] sm:$0xff]
        %v943 = vld [vmem:[%s624 + $0x8] sm:$0xff]
        %v944 = vld [vmem:[%s624 + $0x10] sm:$0xff]
        %v945 = vld [vmem:[%s624 + $0x18] sm:$0xff]
        %v946 = vld [vmem:[%s624 + $0x20] sm:$0xff]
        %v947 = vld [vmem:[%s624 + $0x28] sm:$0xff]
        %v948 = vld [vmem:[%s624 + $0x30] sm:$0xff]
        %v949 = vld [vmem:[%s624 + $0x38] sm:$0xff]
        %v950 = vld [vmem:[%s7] sm:$0xff]
        %v951 = vld [vmem:[%s7 + $0x8] sm:$0xf]
        %v952 = vld [vmem:[%s8] sm:$0x7]
        %v954 = vlaneseq
        %v955 = vshrl.u32 %v954, 7
        %v956 = vsub.s32 0, %v955
        %v957 = vrot.slane %v952, %v956
        %v958 = vlaneseq
        %v959 = vshrl.u32 %v958, 7
        %v960 = vsub.s32 1, %v959
        %v961 = vrot.slane %v952, %v960
        %v962 = vlaneseq
        %v963 = vshrl.u32 %v962, 7
        %v964 = vsub.s32 2, %v963
        %v965 = vrot.slane %v952, %v964
        %v971 = vcombine.high %v950, %v950
        %v973 = vsel %vm668, %v942, 0
        %v976 = vsel %vm668, %v943, 0
        %v979 = vsel %vm668, %v944, 0
        %v982 = vsel %vm668, %v945, 0
        %v985 = vsel %vm668, %v946, 0
        %v988 = vsel %vm668, %v947, 0
        %v991 = vsel %vm668, %v948, 0
        %v994 = vsel %vm668, %v949, 0
        %v996 = vsel %vm693, %v950, 0
        %v998 = vsel %vm693, %v971, 0
        %v1000 = vsel %vm693, %v951, 0
        %1002 = vmatprep.subr.mxu0 %v998
        %1003 = vmatpush1.msra.mxu0 %v996
        %1004 = vmatprep.subr.mxu0 0.0
        %1005 = vmatpush1.msra.mxu0 0.0
        %1006 = vmatprep.subr.mxu0 0.0
        %1007 = vmatpush1.msra.mxu0 0.0
        %1008 = vmatprep.subr.mxu0 0.0
        %1009 = vmatpush1.msra.mxu0 0.0
        %1010 = vmatprep.subr.mxu0 0.0
        %1011 = vmatpush1.msra.mxu0 0.0
        %1012 = vmatprep.subr.mxu0 0.0
        %1013 = vmatpush1.msra.mxu0 0.0
        %1014 = vmatprep.subr.mxu0 0.0
        %1015 = vmatpush1.msra.mxu0 0.0
        %1016 = vmatprep.subr.mxu0 0.0
        %1017 = vmatpush1.msra.mxu0 0.0
        %1018 = vmatprep.subr.mxu0 0.0
        %1019 = vmatpush1.msra.mxu0 0.0
        %1020 = vmatprep.subr.mxu0 0.0
        %1021 = vmatpush1.msra.mxu0 0.0
        %1022 = vmatprep.subr.mxu0 0.0
        %1023 = vmatpush1.msra.mxu0 0.0
        %1024 = vmatprep.subr.mxu0 0.0
        %1025 = vmatpush1.msra.mxu0 0.0
        %1026 = vmatprep.subr.mxu0 0.0
        %1027 = vmatpush1.msra.mxu0 0.0
        %1028 = vmatprep.subr.mxu0 0.0
        %1029 = vmatpush1.msra.mxu0 0.0
        %1030 = vmatprep.subr.mxu0 0.0
        %1031 = vmatpush1.msra.mxu0 0.0
        %1032 = vmatprep.subr.mxu0 0.0
        %1033 = vmatpush1.msra.mxu0 0.0
        %1034 = vmatprep.subr.mxu0 0.0
        %1035 = vmatpush1.msra.mxu0 0.0
        %1036 = vmatprep.subr.mxu0 0.0
        %1037 = vmatpush1.msra.mxu0 0.0
        %1038 = vmatprep.subr.mxu0 0.0
        %1039 = vmatpush1.msra.mxu0 0.0
        %1040 = vmatprep.subr.mxu0 0.0
        %1041 = vmatpush1.msra.mxu0 0.0
        %1042 = vmatprep.subr.mxu0 0.0
        %1043 = vmatpush1.msra.mxu0 0.0
        %1044 = vmatprep.subr.mxu0 0.0
        %1045 = vmatpush1.msra.mxu0 0.0
        %1046 = vmatprep.subr.mxu0 0.0
        %1047 = vmatpush1.msra.mxu0 0.0
        %1048 = vmatprep.subr.mxu0 0.0
        %1049 = vmatpush1.msra.mxu0 0.0
        %1050 = vmatprep.subr.mxu0 0.0
        %1051 = vmatpush1.msra.mxu0 0.0
        %1052 = vmatprep.subr.mxu0 0.0
        %1053 = vmatpush1.msra.mxu0 0.0
        %1054 = vmatprep.subr.mxu0 0.0
        %1055 = vmatpush1.msra.mxu0 0.0
        %1056 = vmatprep.subr.mxu0 0.0
        %1057 = vmatpush1.msra.mxu0 0.0
        %1058 = vmatprep.subr.mxu0 0.0
        %1059 = vmatpush1.msra.mxu0 0.0
        %1060 = vmatprep.subr.mxu0 0.0
        %1061 = vmatpush1.msra.mxu0 0.0
        %1062 = vmatprep.subr.mxu0 0.0
        %1063 = vmatpush1.msra.mxu0 0.0
        %1064 = vmatprep.subr.mxu0 0.0
        %1065 = vmatpush1.msra.mxu0 0.0
        %1066 = vmatprep.mubr.f32.mxu0 0.0
        %1067 = vmatmul.mubr.f32.gmra.mrb[0].mxu0 %v973
        %v1068 = vpop.f32.mrb[0].mxu0
        %v1069 = vadd.f32 %v957, %v1068
        %v1070 = vpop.f32.mrb[0].mxu0
        %v1071 = vadd.f32 %v961, %v1070
        %1072 = vmatprep.mubr.f32.mxu0 0.0
        %1073 = vmatmul.mubr.f32.gmra.mrb[0].mxu0 %v976
        %v1074 = vpop.f32.mrb[0].mxu0
        %v1075 = vadd.f32 %v957, %v1074
        %v1076 = vpop.f32.mrb[0].mxu0
        %v1077 = vadd.f32 %v961, %v1076
        %1078 = vmatprep.mubr.f32.mxu0 0.0
        %1079 = vmatmul.mubr.f32.gmra.mrb[0].mxu0 %v979
        %v1080 = vpop.f32.mrb[0].mxu0
        %v1081 = vadd.f32 %v957, %v1080
        %v1082 = vpop.f32.mrb[0].mxu0
        %v1083 = vadd.f32 %v961, %v1082
        %1084 = vmatprep.mubr.f32.mxu0 0.0
        %1085 = vmatmul.mubr.f32.gmra.mrb[0].mxu0 %v982
        %v1086 = vpop.f32.mrb[0].mxu0
        %v1087 = vadd.f32 %v957, %v1086
        %v1088 = vpop.f32.mrb[0].mxu0
        %v1089 = vadd.f32 %v961, %v1088
        %1090 = vmatprep.mubr.f32.mxu0 0.0
        %1091 = vmatmul.mubr.f32.gmra.mrb[0].mxu0 %v985
        %v1092 = vpop.f32.mrb[0].mxu0
        %v1093 = vadd.f32 %v957, %v1092
        %v1094 = vpop.f32.mrb[0].mxu0
        %v1095 = vadd.f32 %v961, %v1094
        %1096 = vmatprep.mubr.f32.mxu0 0.0
        %1097 = vmatmul.mubr.f32.gmra.mrb[0].mxu0 %v988
        %v1098 = vpop.f32.mrb[0].mxu0
        %v1099 = vadd.f32 %v957, %v1098
        %v1100 = vpop.f32.mrb[0].mxu0
        %v1101 = vadd.f32 %v961, %v1100
        %1102 = vmatprep.mubr.f32.mxu0 0.0
        %1103 = vmatmul.mubr.f32.gmra.mrb[0].mxu0 %v991
        %v1104 = vpop.f32.mrb[0].mxu0
        %v1105 = vadd.f32 %v957, %v1104
        %v1106 = vpop.f32.mrb[0].mxu0
        %v1107 = vadd.f32 %v961, %v1106
        %1108 = vmatprep.mubr.f32.mxu0 0.0
        %1109 = vmatmul.mubr.f32.gmra.mrb[0].mxu0 %v994
        %v1110 = vpop.f32.mrb[0].mxu0
        %v1111 = vadd.f32 %v957, %v1110
        %v1112 = vpop.f32.mrb[0].mxu0
        %v1113 = vadd.f32 %v961, %v1112
        %1114 = vdwg.mxu0
        %1115 = vmatprep.subr.mxu0 0.0
        %1116 = vmatpush1.msra.mxu0 %v1000
        %1117 = vmatprep.subr.mxu0 0.0
        %1118 = vmatpush1.msra.mxu0 0.0
        %1119 = vmatprep.subr.mxu0 0.0
        %1120 = vmatpush1.msra.mxu0 0.0
        %1121 = vmatprep.subr.mxu0 0.0
        %1122 = vmatpush1.msra.mxu0 0.0
        %1123 = vmatprep.subr.mxu0 0.0
        %1124 = vmatpush1.msra.mxu0 0.0
        %1125 = vmatprep.subr.mxu0 0.0
        %1126 = vmatpush1.msra.mxu0 0.0
        %1127 = vmatprep.subr.mxu0 0.0
        %1128 = vmatpush1.msra.mxu0 0.0
        %1129 = vmatprep.subr.mxu0 0.0
        %1130 = vmatpush1.msra.mxu0 0.0
        %1131 = vmatprep.subr.mxu0 0.0
        %1132 = vmatpush1.msra.mxu0 0.0
        %1133 = vmatprep.subr.mxu0 0.0
        %1134 = vmatpush1.msra.mxu0 0.0
        %1135 = vmatprep.subr.mxu0 0.0
        %1136 = vmatpush1.msra.mxu0 0.0
        %1137 = vmatprep.subr.mxu0 0.0
        %1138 = vmatpush1.msra.mxu0 0.0
        %1139 = vmatprep.subr.mxu0 0.0
        %1140 = vmatpush1.msra.mxu0 0.0
        %1141 = vmatprep.subr.mxu0 0.0
        %1142 = vmatpush1.msra.mxu0 0.0
        %1143 = vmatprep.subr.mxu0 0.0
        %1144 = vmatpush1.msra.mxu0 0.0
        %1145 = vmatprep.subr.mxu0 0.0
        %1146 = vmatpush1.msra.mxu0 0.0
        %1147 = vmatprep.subr.mxu0 0.0
        %1148 = vmatpush1.msra.mxu0 0.0
        %1149 = vmatprep.subr.mxu0 0.0
        %1150 = vmatpush1.msra.mxu0 0.0
        %1151 = vmatprep.subr.mxu0 0.0
        %1152 = vmatpush1.msra.mxu0 0.0
        %1153 = vmatprep.subr.mxu0 0.0
        %1154 = vmatpush1.msra.mxu0 0.0
        %1155 = vmatprep.subr.mxu0 0.0
        %1156 = vmatpush1.msra.mxu0 0.0
        %1157 = vmatprep.subr.mxu0 0.0
        %1158 = vmatpush1.msra.mxu0 0.0
        %1159 = vmatprep.subr.mxu0 0.0
        %1160 = vmatpush1.msra.mxu0 0.0
        %1161 = vmatprep.subr.mxu0 0.0
        %1162 = vmatpush1.msra.mxu0 0.0
        %1163 = vmatprep.subr.mxu0 0.0
        %1164 = vmatpush1.msra.mxu0 0.0
        %1165 = vmatprep.subr.mxu0 0.0
        %1166 = vmatpush1.msra.mxu0 0.0
        %1167 = vmatprep.subr.mxu0 0.0
        %1168 = vmatpush1.msra.mxu0 0.0
        %1169 = vmatprep.subr.mxu0 0.0
        %1170 = vmatpush1.msra.mxu0 0.0
        %1171 = vmatprep.subr.mxu0 0.0
        %1172 = vmatpush1.msra.mxu0 0.0
        %1173 = vmatprep.subr.mxu0 0.0
        %1174 = vmatpush1.msra.mxu0 0.0
        %1175 = vmatprep.subr.mxu0 0.0
        %1176 = vmatpush1.msra.mxu0 0.0
        %1177 = vmatprep.subr.mxu0 0.0
        %1178 = vmatpush1.msra.mxu0 0.0
        %1179 = vmatprep.mubr.f32.mxu0 0.0
        %1180 = vmatmul.mubr.f32.gmra.mrb[0].mxu0 %v973
        %v1181 = vpop.f32.mrb[0].mxu0
        %v1182 = vadd.f32 %v965, %v1181
        %v1183 = vpop.f32.mrb[0].mxu0
        %1184 = vmatprep.mubr.f32.mxu0 0.0
        %1185 = vmatmul.mubr.f32.gmra.mrb[0].mxu0 %v976
        %v1186 = vpop.f32.mrb[0].mxu0
        %v1187 = vadd.f32 %v965, %v1186
        %v1188 = vpop.f32.mrb[0].mxu0
        %1189 = vmatprep.mubr.f32.mxu0 0.0
        %1190 = vmatmul.mubr.f32.gmra.mrb[0].mxu0 %v979
        %v1191 = vpop.f32.mrb[0].mxu0
        %v1192 = vadd.f32 %v965, %v1191
        %v1193 = vpop.f32.mrb[0].mxu0
        %1194 = vmatprep.mubr.f32.mxu0 0.0
        %1195 = vmatmul.mubr.f32.gmra.mrb[0].mxu0 %v982
        %v1196 = vpop.f32.mrb[0].mxu0
        %v1197 = vadd.f32 %v965, %v1196
        %v1198 = vpop.f32.mrb[0].mxu0
        %1199 = vmatprep.mubr.f32.mxu0 0.0
        %1200 = vmatmul.mubr.f32.gmra.mrb[0].mxu0 %v985
        %v1201 = vpop.f32.mrb[0].mxu0
        %v1202 = vadd.f32 %v965, %v1201
        %v1203 = vpop.f32.mrb[0].mxu0
        %1204 = vmatprep.mubr.f32.mxu0 0.0
        %1205 = vmatmul.mubr.f32.gmra.mrb[0].mxu0 %v988
        %v1206 = vpop.f32.mrb[0].mxu0
        %v1207 = vadd.f32 %v965, %v1206
        %v1208 = vpop.f32.mrb[0].mxu0
        %1209 = vmatprep.mubr.f32.mxu0 0.0
        %1210 = vmatmul.mubr.f32.gmra.mrb[0].mxu0 %v991
        %v1211 = vpop.f32.mrb[0].mxu0
        %v1212 = vadd.f32 %v965, %v1211
        %v1213 = vpop.f32.mrb[0].mxu0
        %1214 = vmatprep.mubr.f32.mxu0 0.0
        %1215 = vmatmul.mubr.f32.gmra.mrb[0].mxu0 %v994
        %v1216 = vpop.f32.mrb[0].mxu0
        %v1217 = vadd.f32 %v965, %v1216
        %v1218 = vpop.f32.mrb[0].mxu0
        %1219 = vdwg.mxu0
        %1220 = vst [vmem:[#allocation3] sm:$0xff] %v1069
        %1221 = vst [vmem:[#allocation3 + $0x8] sm:$0xff] %v1071
        %1222 = vst [vmem:[#allocation3 + $0x10] sm:$0xff] %v1182
        %1223 = vst [vmem:[#allocation3 + $0x18] sm:$0xff] %v1075
        %1224 = vst [vmem:[#allocation3 + $0x20] sm:$0xff] %v1077
        %1225 = vst [vmem:[#allocation3 + $0x28] sm:$0xff] %v1187
        %1226 = vst [vmem:[#allocation3 + $0x30] sm:$0xff] %v1081
        %1227 = vst [vmem:[#allocation3 + $0x38] sm:$0xff] %v1083
        %1228 = vst [vmem:[#allocation3 + $0x40] sm:$0xff] %v1192
        %1229 = vst [vmem:[#allocation3 + $0x48] sm:$0xff] %v1087
        %1230 = vst [vmem:[#allocation3 + $0x50] sm:$0xff] %v1089
        %1231 = vst [vmem:[#allocation3 + $0x58] sm:$0xff] %v1197
        %1232 = vst [vmem:[#allocation3 + $0x60] sm:$0xff] %v1093
        %1233 = vst [vmem:[#allocation3 + $0x68] sm:$0xff] %v1095
        %1234 = vst [vmem:[#allocation3 + $0x70] sm:$0xff] %v1202
        %1235 = vst [vmem:[#allocation3 + $0x78] sm:$0xff] %v1099
        %1236 = vst [vmem:[#allocation3 + $0x80] sm:$0xff] %v1101
        %1237 = vst [vmem:[#allocation3 + $0x88] sm:$0xff] %v1207
        %1238 = vst [vmem:[#allocation3 + $0x90] sm:$0xff] %v1105
        %1239 = vst [vmem:[#allocation3 + $0x98] sm:$0xff] %v1107
        %1240 = vst [vmem:[#allocation3 + $0xa0] sm:$0xff] %v1212
        %1241 = vst [vmem:[#allocation3 + $0xa8] sm:$0xff] %v1111
        %1242 = vst [vmem:[#allocation3 + $0xb0] sm:$0xff] %v1113
        %1243 = vst [vmem:[#allocation3 + $0xb8] sm:$0xff] %v1217
        %v1244 = vld [vmem:[%s6] sm:$0xff]
        %v1245 = vld [vmem:[%s6 + $0x8] sm:$0xff]
        %v1246 = vld [vmem:[%s6 + $0x10] sm:$0xff]
        %v1247 = vld [vmem:[%s6 + $0x18] sm:$0xff]
        %v1248 = vld [vmem:[%s6 + $0x20] sm:$0xff]
        %v1249 = vld [vmem:[%s6 + $0x28] sm:$0xff]
        %v1250 = vld [vmem:[%s6 + $0x30] sm:$0xff]
        %v1251 = vld [vmem:[%s6 + $0x38] sm:$0xff]
        %v1252 = vld [vmem:[%s6 + $0x40] sm:$0xff]
        %v1253 = vld [vmem:[%s6 + $0x48] sm:$0xff]
        %v1254 = vld [vmem:[%s6 + $0x50] sm:$0xff]
        %v1255 = vld [vmem:[%s6 + $0x58] sm:$0xff]
        %v1256 = vld [vmem:[%s6 + $0x60] sm:$0xff]
        %v1257 = vld [vmem:[%s6 + $0x68] sm:$0xff]
        %v1258 = vld [vmem:[%s6 + $0x70] sm:$0xff]
        %v1259 = vld [vmem:[%s6 + $0x78] sm:$0xff]
        %v1260 = vld [vmem:[%s6 + $0x80] sm:$0xff]
        %v1261 = vld [vmem:[%s6 + $0x88] sm:$0xff]
        %v1262 = vld [vmem:[%s6 + $0x90] sm:$0xff]
        %v1263 = vld [vmem:[%s6 + $0x98] sm:$0xff]
        %v1264 = vld [vmem:[%s6 + $0xa0] sm:$0xff]
        %v1265 = vld [vmem:[%s6 + $0xa8] sm:$0xff]
        %v1266 = vld [vmem:[%s6 + $0xb0] sm:$0xff]
        %v1267 = vld [vmem:[%s6 + $0xb8] sm:$0xff]
        %v1268 = vld [vmem:[%s6 + $0xc0] sm:$0xff]
        %v1269 = vld [vmem:[%s6 + $0xc8] sm:$0xff]
        %v1270 = vld [vmem:[%s6 + $0xd0] sm:$0xff]
        %v1271 = vld [vmem:[%s6 + $0xd8] sm:$0xff]
        %v1272 = vld [vmem:[%s6 + $0xe0] sm:$0xff]
        %v1273 = vld [vmem:[%s6 + $0xe8] sm:$0xff]
        %v1274 = vld [vmem:[%s6 + $0xf0] sm:$0xff]
        %v1275 = vld [vmem:[%s6 + $0xf8] sm:$0xff]
        %v1276 = vld [vmem:[%s6 + $0x100] sm:$0xff]
        %v1277 = vld [vmem:[%s6 + $0x108] sm:$0xff]
        %v1278 = vld [vmem:[%s6 + $0x110] sm:$0xff]
        %v1279 = vld [vmem:[%s6 + $0x118] sm:$0xff]
        %v1280 = vld [vmem:[%s6 + $0x120] sm:$0xff]
        %v1281 = vld [vmem:[%s6 + $0x128] sm:$0xff]
        %v1282 = vld [vmem:[%s6 + $0x130] sm:$0xff]
        %v1283 = vld [vmem:[%s6 + $0x138] sm:$0xff]
        %v1284 = vld [vmem:[%s6 + $0x140] sm:$0xff]
        %v1285 = vld [vmem:[%s6 + $0x148] sm:$0xff]
        %v1286 = vld [vmem:[%s6 + $0x150] sm:$0xff]
        %v1287 = vld [vmem:[%s6 + $0x158] sm:$0xff]
        %v1288 = vld [vmem:[%s6 + $0x160] sm:$0xff]
        %v1289 = vld [vmem:[%s6 + $0x168] sm:$0xff]
        %v1290 = vld [vmem:[%s6 + $0x170] sm:$0xff]
        %v1291 = vld [vmem:[%s6 + $0x178] sm:$0xff]
        %v1292 = vld [vmem:[%s10] sm:$0xff]
        %v1293 = vld [vmem:[%s10 + $0x8] sm:$0xff]
        %v1294 = vld [vmem:[%s10 + $0x10] sm:$0xff]
        %v1295 = vld [vmem:[%s10 + $0x18] sm:$0xff]
        %v1296 = vld [vmem:[%s10 + $0x20] sm:$0xff]
        %v1297 = vld [vmem:[%s10 + $0x28] sm:$0xff]
        %v1298 = vld [vmem:[%s10 + $0x30] sm:$0xff]
        %v1299 = vld [vmem:[%s10 + $0x38] sm:$0xff]
        %v1300 = vld [vmem:[%s10 + $0x40] sm:$0xff]
        %v1301 = vld [vmem:[%s10 + $0x48] sm:$0xff]
        %v1302 = vld [vmem:[%s10 + $0x50] sm:$0xff]
        %v1303 = vld [vmem:[%s10 + $0x58] sm:$0xff]
        %v1304 = vld [vmem:[%s10 + $0x60] sm:$0xff]
        %v1305 = vld [vmem:[%s10 + $0x68] sm:$0xff]
        %v1306 = vld [vmem:[%s10 + $0x70] sm:$0xff]
        %v1307 = vld [vmem:[%s10 + $0x78] sm:$0xff]
        %v1308 = vld [vmem:[%s10 + $0x80] sm:$0xff]
        %v1309 = vld [vmem:[%s10 + $0x88] sm:$0xff]
        %v1310 = vld [vmem:[%s10 + $0x90] sm:$0xff]
        %v1311 = vld [vmem:[%s10 + $0x98] sm:$0xff]
        %v1312 = vld [vmem:[%s10 + $0xa0] sm:$0xff]
        %v1313 = vld [vmem:[%s10 + $0xa8] sm:$0xff]
        %v1314 = vld [vmem:[%s10 + $0xb0] sm:$0xff]
        %v1315 = vld [vmem:[%s10 + $0xb8] sm:$0xff]
        %v1316 = vld [vmem:[%s10 + $0xc0] sm:$0xff]
        %v1317 = vld [vmem:[%s10 + $0xc8] sm:$0xff]
        %v1318 = vld [vmem:[%s10 + $0xd0] sm:$0xff]
        %v1319 = vld [vmem:[%s10 + $0xd8] sm:$0xff]
        %v1320 = vld [vmem:[%s10 + $0xe0] sm:$0xff]
        %v1321 = vld [vmem:[%s10 + $0xe8] sm:$0xff]
        %v1322 = vld [vmem:[%s10 + $0xf0] sm:$0xff]
        %v1323 = vld [vmem:[%s10 + $0xf8] sm:$0xff]
        %v1324 = vld [vmem:[%s10 + $0x100] sm:$0xff]
        %v1325 = vld [vmem:[%s10 + $0x108] sm:$0xff]
        %v1326 = vld [vmem:[%s10 + $0x110] sm:$0xff]
        %v1327 = vld [vmem:[%s10 + $0x118] sm:$0xff]
        %v1328 = vld [vmem:[%s10 + $0x120] sm:$0xff]
        %v1329 = vld [vmem:[%s10 + $0x128] sm:$0xff]
        %v1330 = vld [vmem:[%s10 + $0x130] sm:$0xff]
        %v1331 = vld [vmem:[%s10 + $0x138] sm:$0xff]
        %v1332 = vld [vmem:[%s10 + $0x140] sm:$0xff]
        %v1333 = vld [vmem:[%s10 + $0x148] sm:$0xff]
        %v1334 = vld [vmem:[%s10 + $0x150] sm:$0xff]
        %v1335 = vld [vmem:[%s10 + $0x158] sm:$0xff]
        %v1336 = vld [vmem:[%s10 + $0x160] sm:$0xff]
        %v1337 = vld [vmem:[%s10 + $0x168] sm:$0xff]
        %v1338 = vld [vmem:[%s10 + $0x170] sm:$0xff]
        %v1339 = vld [vmem:[%s10 + $0x178] sm:$0xff]
        %v1340 = vld [vmem:[%s5] sm:$0x1]
        %v1342 = vlaneseq
        %v1343 = vshrl.u32 %v1342, 7
        %v1344 = vsub.s32 0, %v1343
        %v1345 = vrot.slane %v1340, %v1344
        %v1347 = vld [vmem:[%s9] sm:$0x1]
        %v1349 = vlaneseq
        %v1350 = vshrl.u32 %v1349, 7
        %v1351 = vsub.s32 0, %v1350
        %v1352 = vrot.slane %v1347, %v1351
        %v1354 = vld [vmem:[%s629] sm:$0xff]
        %s1355 = smul.u32 %s36, 8
        %s1356 = ssub.s32 1, %s36
        %s1357 = smul.u32 %s1356, 8
        %v1358 = vld [vmem:[#allocation4] sm:$0xff]
        %v1359 = vld [vmem:[#allocation5] sm:$0xff]
        %v1360 = vld [vmem:[#allocation6] sm:$0xff]
        %v1361 = vld [vmem:[#allocation7] sm:$0xff]
        %s1362 = smul.u32 0, 3
        %s1363 = smul.addr %s1362, 8
        %s1364 = scalar_lea.vmem [#allocation2], %s1363
        %v1365 = vld [vmem:[%s1364] sm:$0xff]
        %v1366 = vld [vmem:[%s1364 + $0x8] sm:$0xff]
        %v1367 = vld [vmem:[%s1364 + $0x10] sm:$0xff]
        %1368 = vmatprep.subr.mxu0 %v1245
        %1369 = vmatpush1.msra.mxu0 %v1244
        %1370 = vmatprep.subr.mxu0 %v1248
        %1371 = vmatpush1.msra.mxu0 %v1247
        %1372 = vmatprep.subr.mxu0 %v1251
        %1373 = vmatpush1.msra.mxu0 %v1250
        %1374 = vmatprep.subr.mxu0 %v1254
        %1375 = vmatpush1.msra.mxu0 %v1253
        %1376 = vmatprep.subr.mxu0 %v1257
        %1377 = vmatpush1.msra.mxu0 %v1256
        %1378 = vmatprep.subr.mxu0 %v1260
        %1379 = vmatpush1.msra.mxu0 %v1259
        %1380 = vmatprep.subr.mxu0 %v1263
        %1381 = vmatpush1.msra.mxu0 %v1262
        %1382 = vmatprep.subr.mxu0 %v1266
        %1383 = vmatpush1.msra.mxu0 %v1265
        %1384 = vmatprep.subr.mxu0 %v1269
        %1385 = vmatpush1.msra.mxu0 %v1268
        %1386 = vmatprep.subr.mxu0 %v1272
        %1387 = vmatpush1.msra.mxu0 %v1271
        %1388 = vmatprep.subr.mxu0 %v1275
        %1389 = vmatpush1.msra.mxu0 %v1274
        %1390 = vmatprep.subr.mxu0 %v1278
        %1391 = vmatpush1.msra.mxu0 %v1277
        %1392 = vmatprep.subr.mxu0 %v1281
        %1393 = vmatpush1.msra.mxu0 %v1280
        %1394 = vmatprep.subr.mxu0 %v1284
        %1395 = vmatpush1.msra.mxu0 %v1283
        %1396 = vmatprep.subr.mxu0 %v1287
        %1397 = vmatpush1.msra.mxu0 %v1286
        %1398 = vmatprep.subr.mxu0 %v1290
        %1399 = vmatpush1.msra.mxu0 %v1289
        %1400 = vmatprep.subr.mxu0 0.0
        %1401 = vmatpush1.msra.mxu0 0.0
        %1402 = vmatprep.subr.mxu0 0.0
        %1403 = vmatpush1.msra.mxu0 0.0
        %1404 = vmatprep.subr.mxu0 0.0
        %1405 = vmatpush1.msra.mxu0 0.0
        %1406 = vmatprep.subr.mxu0 0.0
        %1407 = vmatpush1.msra.mxu0 0.0
        %1408 = vmatprep.subr.mxu0 0.0
        %1409 = vmatpush1.msra.mxu0 0.0
        %1410 = vmatprep.subr.mxu0 0.0
        %1411 = vmatpush1.msra.mxu0 0.0
        %1412 = vmatprep.subr.mxu0 0.0
        %1413 = vmatpush1.msra.mxu0 0.0
        %1414 = vmatprep.subr.mxu0 0.0
        %1415 = vmatpush1.msra.mxu0 0.0
        %1416 = vmatprep.subr.mxu0 0.0
        %1417 = vmatpush1.msra.mxu0 0.0
        %1418 = vmatprep.subr.mxu0 0.0
        %1419 = vmatpush1.msra.mxu0 0.0
        %1420 = vmatprep.subr.mxu0 0.0
        %1421 = vmatpush1.msra.mxu0 0.0
        %1422 = vmatprep.subr.mxu0 0.0
        %1423 = vmatpush1.msra.mxu0 0.0
        %1424 = vmatprep.subr.mxu0 0.0
        %1425 = vmatpush1.msra.mxu0 0.0
        %1426 = vmatprep.subr.mxu0 0.0
        %1427 = vmatpush1.msra.mxu0 0.0
        %1428 = vmatprep.subr.mxu0 0.0
        %1429 = vmatpush1.msra.mxu0 0.0
        %1430 = vmatprep.subr.mxu0 0.0
        %1431 = vmatpush1.msra.mxu0 0.0
        %1432 = vmatprep.mubr.f32.mxu0 0.0
        %1433 = vmatmul.mubr.f32.gmra.mrb[0].mxu0 %v1358
        %v1434 = vpop.f32.mrb[0].mxu0
        %v1435 = vadd.f32 0.0, %v1434
        %v1436 = vpop.f32.mrb[0].mxu0
        %v1437 = vadd.f32 0.0, %v1436
        %1438 = vdwg.mxu0
        %1439 = vmatprep.subr.mxu0 0.0
        %1440 = vmatpush1.msra.mxu0 %v1246
        %1441 = vmatprep.subr.mxu0 0.0
        %1442 = vmatpush1.msra.mxu0 %v1249
        %1443 = vmatprep.subr.mxu0 0.0
        %1444 = vmatpush1.msra.mxu0 %v1252
        %1445 = vmatprep.subr.mxu0 0.0
        %1446 = vmatpush1.msra.mxu0 %v1255
        %1447 = vmatprep.subr.mxu0 0.0
        %1448 = vmatpush1.msra.mxu0 %v1258
        %1449 = vmatprep.subr.mxu0 0.0
        %1450 = vmatpush1.msra.mxu0 %v1261
        %1451 = vmatprep.subr.mxu0 0.0
        %1452 = vmatpush1.msra.mxu0 %v1264
        %1453 = vmatprep.subr.mxu0 0.0
        %1454 = vmatpush1.msra.mxu0 %v1267
        %1455 = vmatprep.subr.mxu0 0.0
        %1456 = vmatpush1.msra.mxu0 %v1270
        %1457 = vmatprep.subr.mxu0 0.0
        %1458 = vmatpush1.msra.mxu0 %v1273
        %1459 = vmatprep.subr.mxu0 0.0
        %1460 = vmatpush1.msra.mxu0 %v1276
        %1461 = vmatprep.subr.mxu0 0.0
        %1462 = vmatpush1.msra.mxu0 %v1279
        %1463 = vmatprep.subr.mxu0 0.0
        %1464 = vmatpush1.msra.mxu0 %v1282
        %1465 = vmatprep.subr.mxu0 0.0
        %1466 = vmatpush1.msra.mxu0 %v1285
        %1467 = vmatprep.subr.mxu0 0.0
        %1468 = vmatpush1.msra.mxu0 %v1288
        %1469 = vmatprep.subr.mxu0 0.0
        %1470 = vmatpush1.msra.mxu0 %v1291
        %1471 = vmatprep.subr.mxu0 0.0
        %1472 = vmatpush1.msra.mxu0 0.0
        %1473 = vmatprep.subr.mxu0 0.0
        %1474 = vmatpush1.msra.mxu0 0.0
        %1475 = vmatprep.subr.mxu0 0.0
        %1476 = vmatpush1.msra.mxu0 0.0
        %1477 = vmatprep.subr.mxu0 0.0
        %1478 = vmatpush1.msra.mxu0 0.0
        %1479 = vmatprep.subr.mxu0 0.0
        %1480 = vmatpush1.msra.mxu0 0.0
        %1481 = vmatprep.subr.mxu0 0.0
        %1482 = vmatpush1.msra.mxu0 0.0
        %1483 = vmatprep.subr.mxu0 0.0
        %1484 = vmatpush1.msra.mxu0 0.0
        %1485 = vmatprep.subr.mxu0 0.0
        %1486 = vmatpush1.msra.mxu0 0.0
        %1487 = vmatprep.subr.mxu0 0.0
        %1488 = vmatpush1.msra.mxu0 0.0
        %1489 = vmatprep.subr.mxu0 0.0
        %1490 = vmatpush1.msra.mxu0 0.0
        %1491 = vmatprep.subr.mxu0 0.0
        %1492 = vmatpush1.msra.mxu0 0.0
        %1493 = vmatprep.subr.mxu0 0.0
        %1494 = vmatpush1.msra.mxu0 0.0
        %1495 = vmatprep.subr.mxu0 0.0
        %1496 = vmatpush1.msra.mxu0 0.0
        %1497 = vmatprep.subr.mxu0 0.0
        %1498 = vmatpush1.msra.mxu0 0.0
        %1499 = vmatprep.subr.mxu0 0.0
        %1500 = vmatpush1.msra.mxu0 0.0
        %1501 = vmatprep.subr.mxu0 0.0
        %1502 = vmatpush1.msra.mxu0 0.0
        %1503 = vmatprep.mubr.f32.mxu0 0.0
        %1504 = vmatmul.mubr.f32.gmra.mrb[0].mxu0 %v1358
        %v1505 = vpop.f32.mrb[0].mxu0
        %v1506 = vadd.f32 0.0, %v1505
        %v1507 = vpop.f32.mrb[0].mxu0
        %1508 = vdwg.mxu0
        %v1509 = vadd.f32 %v1365, %v1435
        %v1510 = vadd.f32 %v1366, %v1437
        %v1511 = vxor.u32 %v1509, 2147483648
        %v1512 = vxor.u32 %v1510, 2147483648
        %v1513 = vmul.f32 %v1511, 1.442695
        %v1514 = vpow.pop %v1513
        %v1515 = vmul.f32 %v1512, 1.442695
        %v1516 = vpow.pop %v1515
        %v1517 = vadd.f32 %v1514, 1.0
        %v1518 = vadd.f32 %v1516, 1.0
        %v1519 = vrcp.pop %v1517
        %v1520 = vmul.f32 1.0, %v1519
        %v1521 = vrcp.pop %v1518
        %v1522 = vmul.f32 1.0, %v1521
        %v1523 = vadd.f32 %v1506, %v1345
        %v1524 = vmul.f32 %v1520, %v1523
        %v1525 = vadd.f32 %v1367, %v1524
        %v1526 = vtanh.pop %v1525
        %v1527 = vsub.f32 1.0, %v1522
        %v1528 = vmul.f32 %v1527, %v1526
        %v1529 = vmul.f32 %v1522, %v1358
        %v1530 = vadd.f32 %v1528, %v1529
        %v1531 = vstv %s1355
        %vm1532 = vcmp.lt.s32.totalorder %v1531, %v1354
        %v1533 = vsel %vm1532, 1, 0
        %1534 = vset.pattern.permute.xlu0 0
        %1535 = vperm.xlu0 %1534, %v1533
        %v1536 = vpop.permute.xlu0 %1535
        %vm1537 = vcmp.eq.s32.totalorder %v1536, 1
        %v1538 = vsel %vm1537, %v1530, %v1358
        %v1539 = vsel %vm1537, %v1530, 0.0
        %v1540 = vadd.f32 %v1359, %v1539
        %s1541 = smul.u32 7, 3
        %s1542 = smul.addr %s1541, 8
        %s1543 = scalar_lea.vmem [#allocation3], %s1542
        %v1544 = vld [vmem:[%s1543] sm:$0xff]
        %v1545 = vld [vmem:[%s1543 + $0x8] sm:$0xff]
        %v1546 = vld [vmem:[%s1543 + $0x10] sm:$0xff]
        %1547 = vmatprep.subr.mxu0 %v1293
        %1548 = vmatpush1.msra.mxu0 %v1292
        %1549 = vmatprep.subr.mxu0 %v1296
        %1550 = vmatpush1.msra.mxu0 %v1295
        %1551 = vmatprep.subr.mxu0 %v1299
        %1552 = vmatpush1.msra.mxu0 %v1298
        %1553 = vmatprep.subr.mxu0 %v1302
        %1554 = vmatpush1.msra.mxu0 %v1301
        %1555 = vmatprep.subr.mxu0 %v1305
        %1556 = vmatpush1.msra.mxu0 %v1304
        %1557 = vmatprep.subr.mxu0 %v1308
        %1558 = vmatpush1.msra.mxu0 %v1307
        %1559 = vmatprep.subr.mxu0 %v1311
        %1560 = vmatpush1.msra.mxu0 %v1310
        %1561 = vmatprep.subr.mxu0 %v1314
        %1562 = vmatpush1.msra.mxu0 %v1313
        %1563 = vmatprep.subr.mxu0 %v1317
        %1564 = vmatpush1.msra.mxu0 %v1316
        %1565 = vmatprep.subr.mxu0 %v1320
        %1566 = vmatpush1.msra.mxu0 %v1319
        %1567 = vmatprep.subr.mxu0 %v1323
        %1568 = vmatpush1.msra.mxu0 %v1322
        %1569 = vmatprep.subr.mxu0 %v1326
        %1570 = vmatpush1.msra.mxu0 %v1325
        %1571 = vmatprep.subr.mxu0 %v1329
        %1572 = vmatpush1.msra.mxu0 %v1328
        %1573 = vmatprep.subr.mxu0 %v1332
        %1574 = vmatpush1.msra.mxu0 %v1331
        %1575 = vmatprep.subr.mxu0 %v1335
        %1576 = vmatpush1.msra.mxu0 %v1334
        %1577 = vmatprep.subr.mxu0 %v1338
        %1578 = vmatpush1.msra.mxu0 %v1337
        %1579 = vmatprep.subr.mxu0 0.0
        %1580 = vmatpush1.msra.mxu0 0.0
        %1581 = vmatprep.subr.mxu0 0.0
        %1582 = vmatpush1.msra.mxu0 0.0
        %1583 = vmatprep.subr.mxu0 0.0
        %1584 = vmatpush1.msra.mxu0 0.0
        %1585 = vmatprep.subr.mxu0 0.0
        %1586 = vmatpush1.msra.mxu0 0.0
        %1587 = vmatprep.subr.mxu0 0.0
        %1588 = vmatpush1.msra.mxu0 0.0
        %1589 = vmatprep.subr.mxu0 0.0
        %1590 = vmatpush1.msra.mxu0 0.0
        %1591 = vmatprep.subr.mxu0 0.0
        %1592 = vmatpush1.msra.mxu0 0.0
        %1593 = vmatprep.subr.mxu0 0.0
        %1594 = vmatpush1.msra.mxu0 0.0
        %1595 = vmatprep.subr.mxu0 0.0
        %1596 = vmatpush1.msra.mxu0 0.0
        %1597 = vmatprep.subr.mxu0 0.0
        %1598 = vmatpush1.msra.mxu0 0.0
        %1599 = vmatprep.subr.mxu0 0.0
        %1600 = vmatpush1.msra.mxu0 0.0
        %1601 = vmatprep.subr.mxu0 0.0
        %1602 = vmatpush1.msra.mxu0 0.0
        %1603 = vmatprep.subr.mxu0 0.0
        %1604 = vmatpush1.msra.mxu0 0.0
        %1605 = vmatprep.subr.mxu0 0.0
        %1606 = vmatpush1.msra.mxu0 0.0
        %1607 = vmatprep.subr.mxu0 0.0
        %1608 = vmatpush1.msra.mxu0 0.0
        %1609 = vmatprep.subr.mxu0 0.0
        %1610 = vmatpush1.msra.mxu0 0.0
        %1611 = vmatprep.mubr.f32.mxu0 0.0
        %1612 = vmatmul.mubr.f32.gmra.mrb[0].mxu0 %v1360
        %v1613 = vpop.f32.mrb[0].mxu0
        %v1614 = vadd.f32 0.0, %v1613
        %v1615 = vpop.f32.mrb[0].mxu0
        %v1616 = vadd.f32 0.0, %v1615
        %1617 = vdwg.mxu0
        %1618 = vmatprep.subr.mxu0 0.0
        %1619 = vmatpush1.msra.mxu0 %v1294
        %1620 = vmatprep.subr.mxu0 0.0
        %1621 = vmatpush1.msra.mxu0 %v1297
        %1622 = vmatprep.subr.mxu0 0.0
        %1623 = vmatpush1.msra.mxu0 %v1300
        %1624 = vmatprep.subr.mxu0 0.0
        %1625 = vmatpush1.msra.mxu0 %v1303
        %1626 = vmatprep.subr.mxu0 0.0
        %1627 = vmatpush1.msra.mxu0 %v1306
        %1628 = vmatprep.subr.mxu0 0.0
        %1629 = vmatpush1.msra.mxu0 %v1309
        %1630 = vmatprep.subr.mxu0 0.0
        %1631 = vmatpush1.msra.mxu0 %v1312
        %1632 = vmatprep.subr.mxu0 0.0
        %1633 = vmatpush1.msra.mxu0 %v1315
        %1634 = vmatprep.subr.mxu0 0.0
        %1635 = vmatpush1.msra.mxu0 %v1318
        %1636 = vmatprep.subr.mxu0 0.0
        %1637 = vmatpush1.msra.mxu0 %v1321
        %1638 = vmatprep.subr.mxu0 0.0
        %1639 = vmatpush1.msra.mxu0 %v1324
        %1640 = vmatprep.subr.mxu0 0.0
        %1641 = vmatpush1.msra.mxu0 %v1327
        %1642 = vmatprep.subr.mxu0 0.0
        %1643 = vmatpush1.msra.mxu0 %v1330
        %1644 = vmatprep.subr.mxu0 0.0
        %1645 = vmatpush1.msra.mxu0 %v1333
        %1646 = vmatprep.subr.mxu0 0.0
        %1647 = vmatpush1.msra.mxu0 %v1336
        %1648 = vmatprep.subr.mxu0 0.0
        %1649 = vmatpush1.msra.mxu0 %v1339
        %1650 = vmatprep.subr.mxu0 0.0
        %1651 = vmatpush1.msra.mxu0 0.0
        %1652 = vmatprep.subr.mxu0 0.0
        %1653 = vmatpush1.msra.mxu0 0.0
        %1654 = vmatprep.subr.mxu0 0.0
        %1655 = vmatpush1.msra.mxu0 0.0
        %1656 = vmatprep.subr.mxu0 0.0
        %1657 = vmatpush1.msra.mxu0 0.0
        %1658 = vmatprep.subr.mxu0 0.0
        %1659 = vmatpush1.msra.mxu0 0.0
        %1660 = vmatprep.subr.mxu0 0.0
        %1661 = vmatpush1.msra.mxu0 0.0
        %1662 = vmatprep.subr.mxu0 0.0
        %1663 = vmatpush1.msra.mxu0 0.0
        %1664 = vmatprep.subr.mxu0 0.0
        %1665 = vmatpush1.msra.mxu0 0.0
        %1666 = vmatprep.subr.mxu0 0.0
        %1667 = vmatpush1.msra.mxu0 0.0
        %1668 = vmatprep.subr.mxu0 0.0
        %1669 = vmatpush1.msra.mxu0 0.0
        %1670 = vmatprep.subr.mxu0 0.0
        %1671 = vmatpush1.msra.mxu0 0.0
        %1672 = vmatprep.subr.mxu0 0.0
        %1673 = vmatpush1.msra.mxu0 0.0
        %1674 = vmatprep.subr.mxu0 0.0
        %1675 = vmatpush1.msra.mxu0 0.0
        %1676 = vmatprep.subr.mxu0 0.0
        %1677 = vmatpush1.msra.mxu0 0.0
        %1678 = vmatprep.subr.mxu0 0.0
        %1679 = vmatpush1.msra.mxu0 0.0
        %1680 = vmatprep.subr.mxu0 0.0
        %1681 = vmatpush1.msra.mxu0 0.0
        %1682 = vmatprep.mubr.f32.mxu0 0.0
        %1683 = vmatmul.mubr.f32.gmra.mrb[0].mxu0 %v1360
        %v1684 = vpop.f32.mrb[0].mxu0
        %v1685 = vadd.f32 0.0, %v1684
        %v1686 = vpop.f32.mrb[0].mxu0
        %1687 = vdwg.mxu0
        %v1688 = vadd.f32 %v1544, %v1614
        %v1689 = vadd.f32 %v1545, %v1616
        %v1690 = vxor.u32 %v1688, 2147483648
        %v1691 = vxor.u32 %v1689, 2147483648
        %v1692 = vmul.f32 %v1690, 1.442695
        %v1693 = vpow.pop %v1692
        %v1694 = vmul.f32 %v1691, 1.442695
        %v1695 = vpow.pop %v1694
        %v1696 = vadd.f32 %v1693, 1.0
        %v1697 = vadd.f32 %v1695, 1.0
        %v1698 = vrcp.pop %v1696
        %v1699 = vmul.f32 1.0, %v1698
        %v1700 = vrcp.pop %v1697
        %v1701 = vmul.f32 1.0, %v1700
        %v1702 = vadd.f32 %v1685, %v1352
        %v1703 = vmul.f32 %v1699, %v1702
        %v1704 = vadd.f32 %v1546, %v1703
        %v1705 = vtanh.pop %v1704
        %v1706 = vsub.f32 1.0, %v1701
        %v1707 = vmul.f32 %v1706, %v1705
        %v1708 = vmul.f32 %v1701, %v1360
        %v1709 = vadd.f32 %v1707, %v1708
        %s1710 = sadd.s32 %s1357, 7
        %v1711 = vstv %s1710
        %vm1712 = vcmp.lt.s32.totalorder %v1711, %v1354
        %v1713 = vsel %vm1712, 1, 0
        %1714 = vset.pattern.permute.xlu0 0
        %1715 = vperm.xlu0 %1714, %v1713
        %v1716 = vpop.permute.xlu0 %1715
        %vm1717 = vcmp.eq.s32.totalorder %v1716, 1
        %v1718 = vsel %vm1717, %v1709, %v1360
        %v1719 = vsel %vm1717, %v1709, 0.0
        %v1720 = vadd.f32 %v1361, %v1719
        %s1721 = smul.u32 1, 3
        %s1722 = smul.addr %s1721, 8
        %s1723 = scalar_lea.vmem [#allocation2], %s1722
        %v1724 = vld [vmem:[%s1723] sm:$0xff]
        %v1725 = vld [vmem:[%s1723 + $0x8] sm:$0xff]
        %v1726 = vld [vmem:[%s1723 + $0x10] sm:$0xff]
        %1727 = vmatprep.subr.mxu0 %v1245
        %1728 = vmatpush1.msra.mxu0 %v1244
        %1729 = vmatprep.subr.mxu0 %v1248
        %1730 = vmatpush1.msra.mxu0 %v1247
        %1731 = vmatprep.subr.mxu0 %v1251
        %1732 = vmatpush1.msra.mxu0 %v1250
        %1733 = vmatprep.subr.mxu0 %v1254
        %1734 = vmatpush1.msra.mxu0 %v1253
        %1735 = vmatprep.subr.mxu0 %v1257
        %1736 = vmatpush1.msra.mxu0 %v1256
        %1737 = vmatprep.subr.mxu0 %v1260
        %1738 = vmatpush1.msra.mxu0 %v1259
        %1739 = vmatprep.subr.mxu0 %v1263
        %1740 = vmatpush1.msra.mxu0 %v1262
        %1741 = vmatprep.subr.mxu0 %v1266
        %1742 = vmatpush1.msra.mxu0 %v1265
        %1743 = vmatprep.subr.mxu0 %v1269
        %1744 = vmatpush1.msra.mxu0 %v1268
        %1745 = vmatprep.subr.mxu0 %v1272
        %1746 = vmatpush1.msra.mxu0 %v1271
        %1747 = vmatprep.subr.mxu0 %v1275
        %1748 = vmatpush1.msra.mxu0 %v1274
        %1749 = vmatprep.subr.mxu0 %v1278
        %1750 = vmatpush1.msra.mxu0 %v1277
        %1751 = vmatprep.subr.mxu0 %v1281
        %1752 = vmatpush1.msra.mxu0 %v1280
        %1753 = vmatprep.subr.mxu0 %v1284
        %1754 = vmatpush1.msra.mxu0 %v1283
        %1755 = vmatprep.subr.mxu0 %v1287
        %1756 = vmatpush1.msra.mxu0 %v1286
        %1757 = vmatprep.subr.mxu0 %v1290
        %1758 = vmatpush1.msra.mxu0 %v1289
        %1759 = vmatprep.subr.mxu0 0.0
        %1760 = vmatpush1.msra.mxu0 0.0
        %1761 = vmatprep.subr.mxu0 0.0
        %1762 = vmatpush1.msra.mxu0 0.0
        %1763 = vmatprep.subr.mxu0 0.0
        %1764 = vmatpush1.msra.mxu0 0.0
        %1765 = vmatprep.subr.mxu0 0.0
        %1766 = vmatpush1.msra.mxu0 0.0
        %1767 = vmatprep.subr.mxu0 0.0
        %1768 = vmatpush1.msra.mxu0 0.0
        %1769 = vmatprep.subr.mxu0 0.0
        %1770 = vmatpush1.msra.mxu0 0.0
        %1771 = vmatprep.subr.mxu0 0.0
        %1772 = vmatpush1.msra.mxu0 0.0
        %1773 = vmatprep.subr.mxu0 0.0
        %1774 = vmatpush1.msra.mxu0 0.0
        %1775 = vmatprep.subr.mxu0 0.0
        %1776 = vmatpush1.msra.mxu0 0.0
        %1777 = vmatprep.subr.mxu0 0.0
        %1778 = vmatpush1.msra.mxu0 0.0
        %1779 = vmatprep.subr.mxu0 0.0
        %1780 = vmatpush1.msra.mxu0 0.0
        %1781 = vmatprep.subr.mxu0 0.0
        %1782 = vmatpush1.msra.mxu0 0.0
        %1783 = vmatprep.subr.mxu0 0.0
        %1784 = vmatpush1.msra.mxu0 0.0
        %1785 = vmatprep.subr.mxu0 0.0
        %1786 = vmatpush1.msra.mxu0 0.0
        %1787 = vmatprep.subr.mxu0 0.0
        %1788 = vmatpush1.msra.mxu0 0.0
        %1789 = vmatprep.subr.mxu0 0.0
        %1790 = vmatpush1.msra.mxu0 0.0
        %1791 = vmatprep.mubr.f32.mxu0 0.0
        %1792 = vmatmul.mubr.f32.gmra.mrb[0].mxu0 %v1538
        %v1793 = vpop.f32.mrb[0].mxu0
        %v1794 = vadd.f32 0.0, %v1793
        %v1795 = vpop.f32.mrb[0].mxu0
        %v1796 = vadd.f32 0.0, %v1795
        %1797 = vdwg.mxu0
        %1798 = vmatprep.subr.mxu0 0.0
        %1799 = vmatpush1.msra.mxu0 %v1246
        %1800 = vmatprep.subr.mxu0 0.0
        %1801 = vmatpush1.msra.mxu0 %v1249
        %1802 = vmatprep.subr.mxu0 0.0
        %1803 = vmatpush1.msra.mxu0 %v1252
        %1804 = vmatprep.subr.mxu0 0.0
        %1805 = vmatpush1.msra.mxu0 %v1255
        %1806 = vmatprep.subr.mxu0 0.0
        %1807 = vmatpush1.msra.mxu0 %v1258
        %1808 = vmatprep.subr.mxu0 0.0
        %1809 = vmatpush1.msra.mxu0 %v1261
        %1810 = vmatprep.subr.mxu0 0.0
        %1811 = vmatpush1.msra.mxu0 %v1264
        %1812 = vmatprep.subr.mxu0 0.0
        %1813 = vmatpush1.msra.mxu0 %v1267
        %1814 = vmatprep.subr.mxu0 0.0
        %1815 = vmatpush1.msra.mxu0 %v1270
        %1816 = vmatprep.subr.mxu0 0.0
        %1817 = vmatpush1.msra.mxu0 %v1273
        %1818 = vmatprep.subr.mxu0 0.0
        %1819 = vmatpush1.msra.mxu0 %v1276
        %1820 = vmatprep.subr.mxu0 0.0
        %1821 = vmatpush1.msra.mxu0 %v1279
        %1822 = vmatprep.subr.mxu0 0.0
        %1823 = vmatpush1.msra.mxu0 %v1282
        %1824 = vmatprep.subr.mxu0 0.0
        %1825 = vmatpush1.msra.mxu0 %v1285
        %1826 = vmatprep.subr.mxu0 0.0
        %1827 = vmatpush1.msra.mxu0 %v1288
        %1828 = vmatprep.subr.mxu0 0.0
        %1829 = vmatpush1.msra.mxu0 %v1291
        %1830 = vmatprep.subr.mxu0 0.0
        %1831 = vmatpush1.msra.mxu0 0.0
        %1832 = vmatprep.subr.mxu0 0.0
        %1833 = vmatpush1.msra.mxu0 0.0
        %1834 = vmatprep.subr.mxu0 0.0
        %1835 = vmatpush1.msra.mxu0 0.0
        %1836 = vmatprep.subr.mxu0 0.0
        %1837 = vmatpush1.msra.mxu0 0.0
        %1838 = vmatprep.subr.mxu0 0.0
        %1839 = vmatpush1.msra.mxu0 0.0
        %1840 = vmatprep.subr.mxu0 0.0
        %1841 = vmatpush1.msra.mxu0 0.0
        %1842 = vmatprep.subr.mxu0 0.0
        %1843 = vmatpush1.msra.mxu0 0.0
        %1844 = vmatprep.subr.mxu0 0.0
        %1845 = vmatpush1.msra.mxu0 0.0
        %1846 = vmatprep.subr.mxu0 0.0
        %1847 = vmatpush1.msra.mxu0 0.0
        %1848 = vmatprep.subr.mxu0 0.0
        %1849 = vmatpush1.msra.mxu0 0.0
        %1850 = vmatprep.subr.mxu0 0.0
        %1851 = vmatpush1.msra.mxu0 0.0
        %1852 = vmatprep.subr.mxu0 0.0
        %1853 = vmatpush1.msra.mxu0 0.0
        %1854 = vmatprep.subr.mxu0 0.0
        %1855 = vmatpush1.msra.mxu0 0.0
        %1856 = vmatprep.subr.mxu0 0.0
        %1857 = vmatpush1.msra.mxu0 0.0
        %1858 = vmatprep.subr.mxu0 0.0
        %1859 = vmatpush1.msra.mxu0 0.0
        %1860 = vmatprep.subr.mxu0 0.0
        %1861 = vmatpush1.msra.mxu0 0.0
        %1862 = vmatprep.mubr.f32.mxu0 0.0
        %1863 = vmatmul.mubr.f32.gmra.mrb[0].mxu0 %v1538
        %v1864 = vpop.f32.mrb[0].mxu0
        %v1865 = vadd.f32 0.0, %v1864
        %v1866 = vpop.f32.mrb[0].mxu0
        %1867 = vdwg.mxu0
        %v1868 = vadd.f32 %v1724, %v1794
        %v1869 = vadd.f32 %v1725, %v1796
        %v1870 = vxor.u32 %v1868, 2147483648
        %v1871 = vxor.u32 %v1869, 2147483648
        %v1872 = vmul.f32 %v1870, 1.442695
        %v1873 = vpow.pop %v1872
        %v1874 = vmul.f32 %v1871, 1.442695
        %v1875 = vpow.pop %v1874
        %v1876 = vadd.f32 %v1873, 1.0
        %v1877 = vadd.f32 %v1875, 1.0
        %v1878 = vrcp.pop %v1876
        %v1879 = vmul.f32 1.0, %v1878
        %v1880 = vrcp.pop %v1877
        %v1881 = vmul.f32 1.0, %v1880
        %v1882 = vadd.f32 %v1865, %v1345
        %v1883 = vmul.f32 %v1879, %v1882
        %v1884 = vadd.f32 %v1726, %v1883
        %v1885 = vtanh.pop %v1884
        %v1886 = vsub.f32 1.0, %v1881
        %v1887 = vmul.f32 %v1886, %v1885
        %v1888 = vmul.f32 %v1881, %v1538
        %v1889 = vadd.f32 %v1887, %v1888
        %s1890 = sadd.s32 %s1355, 1
        %v1891 = vstv %s1890
        %vm1892 = vcmp.lt.s32.totalorder %v1891, %v1354
        %v1893 = vsel %vm1892, 1, 0
        %1894 = vset.pattern.permute.xlu0 0
        %1895 = vperm.xlu0 %1894, %v1893
        %v1896 = vpop.permute.xlu0 %1895
        %vm1897 = vcmp.eq.s32.totalorder %v1896, 1
        %v1898 = vsel %vm1897, %v1889, %v1538
        %v1899 = vsel %vm1897, %v1889, 0.0
        %v1900 = vadd.f32 %v1540, %v1899
        %s1901 = smul.u32 6, 3
        %s1902 = smul.addr %s1901, 8
        %s1903 = scalar_lea.vmem [#allocation3], %s1902
        %v1904 = vld [vmem:[%s1903] sm:$0xff]
        %v1905 = vld [vmem:[%s1903 + $0x8] sm:$0xff]
        %v1906 = vld [vmem:[%s1903 + $0x10] sm:$0xff]
        %1907 = vmatprep.subr.mxu0 %v1293
        %1908 = vmatpush1.msra.mxu0 %v1292
        %1909 = vmatprep.subr.mxu0 %v1296
        %1910 = vmatpush1.msra.mxu0 %v1295
        %1911 = vmatprep.subr.mxu0 %v1299
        %1912 = vmatpush1.msra.mxu0 %v1298
        %1913 = vmatprep.subr.mxu0 %v1302
        %1914 = vmatpush1.msra.mxu0 %v1301
        %1915 = vmatprep.subr.mxu0 %v1305
        %1916 = vmatpush1.msra.mxu0 %v1304
        %1917 = vmatprep.subr.mxu0 %v1308
        %1918 = vmatpush1.msra.mxu0 %v1307
        %1919 = vmatprep.subr.mxu0 %v1311
        %1920 = vmatpush1.msra.mxu0 %v1310
        %1921 = vmatprep.subr.mxu0 %v1314
        %1922 = vmatpush1.msra.mxu0 %v1313
        %1923 = vmatprep.subr.mxu0 %v1317
        %1924 = vmatpush1.msra.mxu0 %v1316
        %1925 = vmatprep.subr.mxu0 %v1320
        %1926 = vmatpush1.msra.mxu0 %v1319
        %1927 = vmatprep.subr.mxu0 %v1323
        %1928 = vmatpush1.msra.mxu0 %v1322
        %1929 = vmatprep.subr.mxu0 %v1326
        %1930 = vmatpush1.msra.mxu0 %v1325
        %1931 = vmatprep.subr.mxu0 %v1329
        %1932 = vmatpush1.msra.mxu0 %v1328
        %1933 = vmatprep.subr.mxu0 %v1332
        %1934 = vmatpush1.msra.mxu0 %v1331
        %1935 = vmatprep.subr.mxu0 %v1335
        %1936 = vmatpush1.msra.mxu0 %v1334
        %1937 = vmatprep.subr.mxu0 %v1338
        %1938 = vmatpush1.msra.mxu0 %v1337
        %1939 = vmatprep.subr.mxu0 0.0
        %1940 = vmatpush1.msra.mxu0 0.0
        %1941 = vmatprep.subr.mxu0 0.0
        %1942 = vmatpush1.msra.mxu0 0.0
        %1943 = vmatprep.subr.mxu0 0.0
        %1944 = vmatpush1.msra.mxu0 0.0
        %1945 = vmatprep.subr.mxu0 0.0
        %1946 = vmatpush1.msra.mxu0 0.0
        %1947 = vmatprep.subr.mxu0 0.0
        %1948 = vmatpush1.msra.mxu0 0.0
        %1949 = vmatprep.subr.mxu0 0.0
        %1950 = vmatpush1.msra.mxu0 0.0
        %1951 = vmatprep.subr.mxu0 0.0
        %1952 = vmatpush1.msra.mxu0 0.0
        %1953 = vmatprep.subr.mxu0 0.0
        %1954 = vmatpush1.msra.mxu0 0.0
        %1955 = vmatprep.subr.mxu0 0.0
        %1956 = vmatpush1.msra.mxu0 0.0
        %1957 = vmatprep.subr.mxu0 0.0
        %1958 = vmatpush1.msra.mxu0 0.0
        %1959 = vmatprep.subr.mxu0 0.0
        %1960 = vmatpush1.msra.mxu0 0.0
        %1961 = vmatprep.subr.mxu0 0.0
        %1962 = vmatpush1.msra.mxu0 0.0
        %1963 = vmatprep.subr.mxu0 0.0
        %1964 = vmatpush1.msra.mxu0 0.0
        %1965 = vmatprep.subr.mxu0 0.0
        %1966 = vmatpush1.msra.mxu0 0.0
        %1967 = vmatprep.subr.mxu0 0.0
        %1968 = vmatpush1.msra.mxu0 0.0
        %1969 = vmatprep.subr.mxu0 0.0
        %1970 = vmatpush1.msra.mxu0 0.0
        %1971 = vmatprep.mubr.f32.mxu0 0.0
        %1972 = vmatmul.mubr.f32.gmra.mrb[0].mxu0 %v1718
        %v1973 = vpop.f32.mrb[0].mxu0
        %v1974 = vadd.f32 0.0, %v1973
        %v1975 = vpop.f32.mrb[0].mxu0
        %v1976 = vadd.f32 0.0, %v1975
        %1977 = vdwg.mxu0
        %1978 = vmatprep.subr.mxu0 0.0
        %1979 = vmatpush1.msra.mxu0 %v1294
        %1980 = vmatprep.subr.mxu0 0.0
        %1981 = vmatpush1.msra.mxu0 %v1297
        %1982 = vmatprep.subr.mxu0 0.0
        %1983 = vmatpush1.msra.mxu0 %v1300
        %1984 = vmatprep.subr.mxu0 0.0
        %1985 = vmatpush1.msra.mxu0 %v1303
        %1986 = vmatprep.subr.mxu0 0.0
        %1987 = vmatpush1.msra.mxu0 %v1306
        %1988 = vmatprep.subr.mxu0 0.0
        %1989 = vmatpush1.msra.mxu0 %v1309
        %1990 = vmatprep.subr.mxu0 0.0
        %1991 = vmatpush1.msra.mxu0 %v1312
        %1992 = vmatprep.subr.mxu0 0.0
        %1993 = vmatpush1.msra.mxu0 %v1315
        %1994 = vmatprep.subr.mxu0 0.0
        %1995 = vmatpush1.msra.mxu0 %v1318
        %1996 = vmatprep.subr.mxu0 0.0
        %1997 = vmatpush1.msra.mxu0 %v1321
        %1998 = vmatprep.subr.mxu0 0.0
        %1999 = vmatpush1.msra.mxu0 %v1324
        %2000 = vmatprep.subr.mxu0 0.0
        %2001 = vmatpush1.msra.mxu0 %v1327
        %2002 = vmatprep.subr.mxu0 0.0
        %2003 = vmatpush1.msra.mxu0 %v1330
        %2004 = vmatprep.subr.mxu0 0.0
        %2005 = vmatpush1.msra.mxu0 %v1333
        %2006 = vmatprep.subr.mxu0 0.0
        %2007 = vmatpush1.msra.mxu0 %v1336
        %2008 = vmatprep.subr.mxu0 0.0
        %2009 = vmatpush1.msra.mxu0 %v1339
        %2010 = vmatprep.subr.mxu0 0.0
        %2011 = vmatpush1.msra.mxu0 0.0
        %2012 = vmatprep.subr.mxu0 0.0
        %2013 = vmatpush1.msra.mxu0 0.0
        %2014 = vmatprep.subr.mxu0 0.0
        %2015 = vmatpush1.msra.mxu0 0.0
        %2016 = vmatprep.subr.mxu0 0.0
        %2017 = vmatpush1.msra.mxu0 0.0
        %2018 = vmatprep.subr.mxu0 0.0
        %2019 = vmatpush1.msra.mxu0 0.0
        %2020 = vmatprep.subr.mxu0 0.0
        %2021 = vmatpush1.msra.mxu0 0.0
        %2022 = vmatprep.subr.mxu0 0.0
        %2023 = vmatpush1.msra.mxu0 0.0
        %2024 = vmatprep.subr.mxu0 0.0
        %2025 = vmatpush1.msra.mxu0 0.0
        %2026 = vmatprep.subr.mxu0 0.0
        %2027 = vmatpush1.msra.mxu0 0.0
        %2028 = vmatprep.subr.mxu0 0.0
        %2029 = vmatpush1.msra.mxu0 0.0
        %2030 = vmatprep.subr.mxu0 0.0
        %2031 = vmatpush1.msra.mxu0 0.0
        %2032 = vmatprep.subr.mxu0 0.0
        %2033 = vmatpush1.msra.mxu0 0.0
        %2034 = vmatprep.subr.mxu0 0.0
        %2035 = vmatpush1.msra.mxu0 0.0
        %2036 = vmatprep.subr.mxu0 0.0
        %2037 = vmatpush1.msra.mxu0 0.0
        %2038 = vmatprep.subr.mxu0 0.0
        %2039 = vmatpush1.msra.mxu0 0.0
        %2040 = vmatprep.subr.mxu0 0.0
        %2041 = vmatpush1.msra.mxu0 0.0
        %2042 = vmatprep.mubr.f32.mxu0 0.0
        %2043 = vmatmul.mubr.f32.gmra.mrb[0].mxu0 %v1718
        %v2044 = vpop.f32.mrb[0].mxu0
        %v2045 = vadd.f32 0.0, %v2044
        %v2046 = vpop.f32.mrb[0].mxu0
        %2047 = vdwg.mxu0
        %v2048 = vadd.f32 %v1904, %v1974
        %v2049 = vadd.f32 %v1905, %v1976
        %v2050 = vxor.u32 %v2048, 2147483648
        %v2051 = vxor.u32 %v2049, 2147483648
        %v2052 = vmul.f32 %v2050, 1.442695
        %v2053 = vpow.pop %v2052
        %v2054 = vmul.f32 %v2051, 1.442695
        %v2055 = vpow.pop %v2054
        %v2056 = vadd.f32 %v2053, 1.0
        %v2057 = vadd.f32 %v2055, 1.0
        %v2058 = vrcp.pop %v2056
        %v2059 = vmul.f32 1.0, %v2058
        %v2060 = vrcp.pop %v2057
        %v2061 = vmul.f32 1.0, %v2060
        %v2062 = vadd.f32 %v2045, %v1352
        %v2063 = vmul.f32 %v2059, %v2062
        %v2064 = vadd.f32 %v1906, %v2063
        %v2065 = vtanh.pop %v2064
        %v2066 = vsub.f32 1.0, %v2061
        %v2067 = vmul.f32 %v2066, %v2065
        %v2068 = vmul.f32 %v2061, %v1718
        %v2069 = vadd.f32 %v2067, %v2068
        %s2070 = sadd.s32 %s1357, 6
        %v2071 = vstv %s2070
        %vm2072 = vcmp.lt.s32.totalorder %v2071, %v1354
        %v2073 = vsel %vm2072, 1, 0
        %2074 = vset.pattern.permute.xlu0 0
        %2075 = vperm.xlu0 %2074, %v2073
        %v2076 = vpop.permute.xlu0 %2075
        %vm2077 = vcmp.eq.s32.totalorder %v2076, 1
        %v2078 = vsel %vm2077, %v2069, %v1718
        %v2079 = vsel %vm2077, %v2069, 0.0
        %v2080 = vadd.f32 %v1720, %v2079
        %s2081 = smul.u32 2, 3
        %s2082 = smul.addr %s2081, 8
        %s2083 = scalar_lea.vmem [#allocation2], %s2082
        %v2084 = vld [vmem:[%s2083] sm:$0xff]
        %v2085 = vld [vmem:[%s2083 + $0x8] sm:$0xff]
        %v2086 = vld [vmem:[%s2083 + $0x10] sm:$0xff]
        %2087 = vmatprep.subr.mxu0 %v1245
        %2088 = vmatpush1.msra.mxu0 %v1244
        %2089 = vmatprep.subr.mxu0 %v1248
        %2090 = vmatpush1.msra.mxu0 %v1247
        %2091 = vmatprep.subr.mxu0 %v1251
        %2092 = vmatpush1.msra.mxu0 %v1250
        %2093 = vmatprep.subr.mxu0 %v1254
        %2094 = vmatpush1.msra.mxu0 %v1253
        %2095 = vmatprep.subr.mxu0 %v1257
        %2096 = vmatpush1.msra.mxu0 %v1256
        %2097 = vmatprep.subr.mxu0 %v1260
        %2098 = vmatpush1.msra.mxu0 %v1259
        %2099 = vmatprep.subr.mxu0 %v1263
        %2100 = vmatpush1.msra.mxu0 %v1262
        %2101 = vmatprep.subr.mxu0 %v1266
        %2102 = vmatpush1.msra.mxu0 %v1265
        %2103 = vmatprep.subr.mxu0 %v1269
        %2104 = vmatpush1.msra.mxu0 %v1268
        %2105 = vmatprep.subr.mxu0 %v1272
        %2106 = vmatpush1.msra.mxu0 %v1271
        %2107 = vmatprep.subr.mxu0 %v1275
        %2108 = vmatpush1.msra.mxu0 %v1274
        %2109 = vmatprep.subr.mxu0 %v1278
        %2110 = vmatpush1.msra.mxu0 %v1277
        %2111 = vmatprep.subr.mxu0 %v1281
        %2112 = vmatpush1.msra.mxu0 %v1280
        %2113 = vmatprep.subr.mxu0 %v1284
        %2114 = vmatpush1.msra.mxu0 %v1283
        %2115 = vmatprep.subr.mxu0 %v1287
        %2116 = vmatpush1.msra.mxu0 %v1286
        %2117 = vmatprep.subr.mxu0 %v1290
        %2118 = vmatpush1.msra.mxu0 %v1289
        %2119 = vmatprep.subr.mxu0 0.0
        %2120 = vmatpush1.msra.mxu0 0.0
        %2121 = vmatprep.subr.mxu0 0.0
        %2122 = vmatpush1.msra.mxu0 0.0
        %2123 = vmatprep.subr.mxu0 0.0
        %2124 = vmatpush1.msra.mxu0 0.0
        %2125 = vmatprep.subr.mxu0 0.0
        %2126 = vmatpush1.msra.mxu0 0.0
        %2127 = vmatprep.subr.mxu0 0.0
        %2128 = vmatpush1.msra.mxu0 0.0
        %2129 = vmatprep.subr.mxu0 0.0
        %2130 = vmatpush1.msra.mxu0 0.0
        %2131 = vmatprep.subr.mxu0 0.0
        %2132 = vmatpush1.msra.mxu0 0.0
        %2133 = vmatprep.subr.mxu0 0.0
        %2134 = vmatpush1.msra.mxu0 0.0
        %2135 = vmatprep.subr.mxu0 0.0
        %2136 = vmatpush1.msra.mxu0 0.0
        %2137 = vmatprep.subr.mxu0 0.0
        %2138 = vmatpush1.msra.mxu0 0.0
        %2139 = vmatprep.subr.mxu0 0.0
        %2140 = vmatpush1.msra.mxu0 0.0
        %2141 = vmatprep.subr.mxu0 0.0
        %2142 = vmatpush1.msra.mxu0 0.0
        %2143 = vmatprep.subr.mxu0 0.0
        %2144 = vmatpush1.msra.mxu0 0.0
        %2145 = vmatprep.subr.mxu0 0.0
        %2146 = vmatpush1.msra.mxu0 0.0
        %2147 = vmatprep.subr.mxu0 0.0
        %2148 = vmatpush1.msra.mxu0 0.0
        %2149 = vmatprep.subr.mxu0 0.0
        %2150 = vmatpush1.msra.mxu0 0.0
        %2151 = vmatprep.mubr.f32.mxu0 0.0
        %2152 = vmatmul.mubr.f32.gmra.mrb[0].mxu0 %v1898
        %v2153 = vpop.f32.mrb[0].mxu0
        %v2154 = vadd.f32 0.0, %v2153
        %v2155 = vpop.f32.mrb[0].mxu0
        %v2156 = vadd.f32 0.0, %v2155
        %2157 = vdwg.mxu0
        %2158 = vmatprep.subr.mxu0 0.0
        %2159 = vmatpush1.msra.mxu0 %v1246
        %2160 = vmatprep.subr.mxu0 0.0
        %2161 = vmatpush1.msra.mxu0 %v1249
        %2162 = vmatprep.subr.mxu0 0.0
        %2163 = vmatpush1.msra.mxu0 %v1252
        %2164 = vmatprep.subr.mxu0 0.0
        %2165 = vmatpush1.msra.mxu0 %v1255
        %2166 = vmatprep.subr.mxu0 0.0
        %2167 = vmatpush1.msra.mxu0 %v1258
        %2168 = vmatprep.subr.mxu0 0.0
        %2169 = vmatpush1.msra.mxu0 %v1261
        %2170 = vmatprep.subr.mxu0 0.0
        %2171 = vmatpush1.msra.mxu0 %v1264
        %2172 = vmatprep.subr.mxu0 0.0
        %2173 = vmatpush1.msra.mxu0 %v1267
        %2174 = vmatprep.subr.mxu0 0.0
        %2175 = vmatpush1.msra.mxu0 %v1270
        %2176 = vmatprep.subr.mxu0 0.0
        %2177 = vmatpush1.msra.mxu0 %v1273
        %2178 = vmatprep.subr.mxu0 0.0
        %2179 = vmatpush1.msra.mxu0 %v1276
        %2180 = vmatprep.subr.mxu0 0.0
        %2181 = vmatpush1.msra.mxu0 %v1279
        %2182 = vmatprep.subr.mxu0 0.0
        %2183 = vmatpush1.msra.mxu0 %v1282
        %2184 = vmatprep.subr.mxu0 0.0
        %2185 = vmatpush1.msra.mxu0 %v1285
        %2186 = vmatprep.subr.mxu0 0.0
        %2187 = vmatpush1.msra.mxu0 %v1288
        %2188 = vmatprep.subr.mxu0 0.0
        %2189 = vmatpush1.msra.mxu0 %v1291
        %2190 = vmatprep.subr.mxu0 0.0
        %2191 = vmatpush1.msra.mxu0 0.0
        %2192 = vmatprep.subr.mxu0 0.0
        %2193 = vmatpush1.msra.mxu0 0.0
        %2194 = vmatprep.subr.mxu0 0.0
        %2195 = vmatpush1.msra.mxu0 0.0
        %2196 = vmatprep.subr.mxu0 0.0
        %2197 = vmatpush1.msra.mxu0 0.0
        %2198 = vmatprep.subr.mxu0 0.0
        %2199 = vmatpush1.msra.mxu0 0.0
        %2200 = vmatprep.subr.mxu0 0.0
        %2201 = vmatpush1.msra.mxu0 0.0
        %2202 = vmatprep.subr.mxu0 0.0
        %2203 = vmatpush1.msra.mxu0 0.0
        %2204 = vmatprep.subr.mxu0 0.0
        %2205 = vmatpush1.msra.mxu0 0.0
        %2206 = vmatprep.subr.mxu0 0.0
        %2207 = vmatpush1.msra.mxu0 0.0
        %2208 = vmatprep.subr.mxu0 0.0
        %2209 = vmatpush1.msra.mxu0 0.0
        %2210 = vmatprep.subr.mxu0 0.0
        %2211 = vmatpush1.msra.mxu0 0.0
        %2212 = vmatprep.subr.mxu0 0.0
        %2213 = vmatpush1.msra.mxu0 0.0
        %2214 = vmatprep.subr.mxu0 0.0
        %2215 = vmatpush1.msra.mxu0 0.0
        %2216 = vmatprep.subr.mxu0 0.0
        %2217 = vmatpush1.msra.mxu0 0.0
        %2218 = vmatprep.subr.mxu0 0.0
        %2219 = vmatpush1.msra.mxu0 0.0
        %2220 = vmatprep.subr.mxu0 0.0
        %2221 = vmatpush1.msra.mxu0 0.0
        %2222 = vmatprep.mubr.f32.mxu0 0.0
        %2223 = vmatmul.mubr.f32.gmra.mrb[0].mxu0 %v1898
        %v2224 = vpop.f32.mrb[0].mxu0
        %v2225 = vadd.f32 0.0, %v2224
        %v2226 = vpop.f32.mrb[0].mxu0
        %2227 = vdwg.mxu0
        %v2228 = vadd.f32 %v2084, %v2154
        %v2229 = vadd.f32 %v2085, %v2156
        %v2230 = vxor.u32 %v2228, 2147483648
        %v2231 = vxor.u32 %v2229, 2147483648
        %v2232 = vmul.f32 %v2230, 1.442695
        %v2233 = vpow.pop %v2232
        %v2234 = vmul.f32 %v2231, 1.442695
        %v2235 = vpow.pop %v2234
        %v2236 = vadd.f32 %v2233, 1.0
        %v2237 = vadd.f32 %v2235, 1.0
        %v2238 = vrcp.pop %v2236
        %v2239 = vmul.f32 1.0, %v2238
        %v2240 = vrcp.pop %v2237
        %v2241 = vmul.f32 1.0, %v2240
        %v2242 = vadd.f32 %v2225, %v1345
        %v2243 = vmul.f32 %v2239, %v2242
        %v2244 = vadd.f32 %v2086, %v2243
        %v2245 = vtanh.pop %v2244
        %v2246 = vsub.f32 1.0, %v2241
        %v2247 = vmul.f32 %v2246, %v2245
        %v2248 = vmul.f32 %v2241, %v1898
        %v2249 = vadd.f32 %v2247, %v2248
        %s2250 = sadd.s32 %s1355, 2
        %v2251 = vstv %s2250
        %vm2252 = vcmp.lt.s32.totalorder %v2251, %v1354
        %v2253 = vsel %vm2252, 1, 0
        %2254 = vset.pattern.permute.xlu0 0
        %2255 = vperm.xlu0 %2254, %v2253
        %v2256 = vpop.permute.xlu0 %2255
        %vm2257 = vcmp.eq.s32.totalorder %v2256, 1
        %v2258 = vsel %vm2257, %v2249, %v1898
        %v2259 = vsel %vm2257, %v2249, 0.0
        %v2260 = vadd.f32 %v1900, %v2259
        %s2261 = smul.u32 5, 3
        %s2262 = smul.addr %s2261, 8
        %s2263 = scalar_lea.vmem [#allocation3], %s2262
        %v2264 = vld [vmem:[%s2263] sm:$0xff]
        %v2265 = vld [vmem:[%s2263 + $0x8] sm:$0xff]
        %v2266 = vld [vmem:[%s2263 + $0x10] sm:$0xff]
        %2267 = vmatprep.subr.mxu0 %v1293
        %2268 = vmatpush1.msra.mxu0 %v1292
        %2269 = vmatprep.subr.mxu0 %v1296
        %2270 = vmatpush1.msra.mxu0 %v1295
        %2271 = vmatprep.subr.mxu0 %v1299
        %2272 = vmatpush1.msra.mxu0 %v1298
        %2273 = vmatprep.subr.mxu0 %v1302
        %2274 = vmatpush1.msra.mxu0 %v1301
        %2275 = vmatprep.subr.mxu0 %v1305
        %2276 = vmatpush1.msra.mxu0 %v1304
        %2277 = vmatprep.subr.mxu0 %v1308
        %2278 = vmatpush1.msra.mxu0 %v1307
        %2279 = vmatprep.subr.mxu0 %v1311
        %2280 = vmatpush1.msra.mxu0 %v1310
        %2281 = vmatprep.subr.mxu0 %v1314
        %2282 = vmatpush1.msra.mxu0 %v1313
        %2283 = vmatprep.subr.mxu0 %v1317
        %2284 = vmatpush1.msra.mxu0 %v1316
        %2285 = vmatprep.subr.mxu0 %v1320
        %2286 = vmatpush1.msra.mxu0 %v1319
        %2287 = vmatprep.subr.mxu0 %v1323
        %2288 = vmatpush1.msra.mxu0 %v1322
        %2289 = vmatprep.subr.mxu0 %v1326
        %2290 = vmatpush1.msra.mxu0 %v1325
        %2291 = vmatprep.subr.mxu0 %v1329
        %2292 = vmatpush1.msra.mxu0 %v1328
        %2293 = vmatprep.subr.mxu0 %v1332
        %2294 = vmatpush1.msra.mxu0 %v1331
        %2295 = vmatprep.subr.mxu0 %v1335
        %2296 = vmatpush1.msra.mxu0 %v1334
        %2297 = vmatprep.subr.mxu0 %v1338
        %2298 = vmatpush1.msra.mxu0 %v1337
        %2299 = vmatprep.subr.mxu0 0.0
        %2300 = vmatpush1.msra.mxu0 0.0
        %2301 = vmatprep.subr.mxu0 0.0
        %2302 = vmatpush1.msra.mxu0 0.0
        %2303 = vmatprep.subr.mxu0 0.0
        %2304 = vmatpush1.msra.mxu0 0.0
        %2305 = vmatprep.subr.mxu0 0.0
        %2306 = vmatpush1.msra.mxu0 0.0
        %2307 = vmatprep.subr.mxu0 0.0
        %2308 = vmatpush1.msra.mxu0 0.0
        %2309 = vmatprep.subr.mxu0 0.0
        %2310 = vmatpush1.msra.mxu0 0.0
        %2311 = vmatprep.subr.mxu0 0.0
        %2312 = vmatpush1.msra.mxu0 0.0
        %2313 = vmatprep.subr.mxu0 0.0
        %2314 = vmatpush1.msra.mxu0 0.0
        %2315 = vmatprep.subr.mxu0 0.0
        %2316 = vmatpush1.msra.mxu0 0.0
        %2317 = vmatprep.subr.mxu0 0.0
        %2318 = vmatpush1.msra.mxu0 0.0
        %2319 = vmatprep.subr.mxu0 0.0
        %2320 = vmatpush1.msra.mxu0 0.0
        %2321 = vmatprep.subr.mxu0 0.0
        %2322 = vmatpush1.msra.mxu0 0.0
        %2323 = vmatprep.subr.mxu0 0.0
        %2324 = vmatpush1.msra.mxu0 0.0
        %2325 = vmatprep.subr.mxu0 0.0
        %2326 = vmatpush1.msra.mxu0 0.0
        %2327 = vmatprep.subr.mxu0 0.0
        %2328 = vmatpush1.msra.mxu0 0.0
        %2329 = vmatprep.subr.mxu0 0.0
        %2330 = vmatpush1.msra.mxu0 0.0
        %2331 = vmatprep.mubr.f32.mxu0 0.0
        %2332 = vmatmul.mubr.f32.gmra.mrb[0].mxu0 %v2078
        %v2333 = vpop.f32.mrb[0].mxu0
        %v2334 = vadd.f32 0.0, %v2333
        %v2335 = vpop.f32.mrb[0].mxu0
        %v2336 = vadd.f32 0.0, %v2335
        %2337 = vdwg.mxu0
        %2338 = vmatprep.subr.mxu0 0.0
        %2339 = vmatpush1.msra.mxu0 %v1294
        %2340 = vmatprep.subr.mxu0 0.0
        %2341 = vmatpush1.msra.mxu0 %v1297
        %2342 = vmatprep.subr.mxu0 0.0
        %2343 = vmatpush1.msra.mxu0 %v1300
        %2344 = vmatprep.subr.mxu0 0.0
        %2345 = vmatpush1.msra.mxu0 %v1303
        %2346 = vmatprep.subr.mxu0 0.0
        %2347 = vmatpush1.msra.mxu0 %v1306
        %2348 = vmatprep.subr.mxu0 0.0
        %2349 = vmatpush1.msra.mxu0 %v1309
        %2350 = vmatprep.subr.mxu0 0.0
        %2351 = vmatpush1.msra.mxu0 %v1312
        %2352 = vmatprep.subr.mxu0 0.0
        %2353 = vmatpush1.msra.mxu0 %v1315
        %2354 = vmatprep.subr.mxu0 0.0
        %2355 = vmatpush1.msra.mxu0 %v1318
        %2356 = vmatprep.subr.mxu0 0.0
        %2357 = vmatpush1.msra.mxu0 %v1321
        %2358 = vmatprep.subr.mxu0 0.0
        %2359 = vmatpush1.msra.mxu0 %v1324
        %2360 = vmatprep.subr.mxu0 0.0
        %2361 = vmatpush1.msra.mxu0 %v1327
        %2362 = vmatprep.subr.mxu0 0.0
        %2363 = vmatpush1.msra.mxu0 %v1330
        %2364 = vmatprep.subr.mxu0 0.0
        %2365 = vmatpush1.msra.mxu0 %v1333
        %2366 = vmatprep.subr.mxu0 0.0
        %2367 = vmatpush1.msra.mxu0 %v1336
        %2368 = vmatprep.subr.mxu0 0.0
        %2369 = vmatpush1.msra.mxu0 %v1339
        %2370 = vmatprep.subr.mxu0 0.0
        %2371 = vmatpush1.msra.mxu0 0.0
        %2372 = vmatprep.subr.mxu0 0.0
        %2373 = vmatpush1.msra.mxu0 0.0
        %2374 = vmatprep.subr.mxu0 0.0
        %2375 = vmatpush1.msra.mxu0 0.0
        %2376 = vmatprep.subr.mxu0 0.0
        %2377 = vmatpush1.msra.mxu0 0.0
        %2378 = vmatprep.subr.mxu0 0.0
        %2379 = vmatpush1.msra.mxu0 0.0
        %2380 = vmatprep.subr.mxu0 0.0
        %2381 = vmatpush1.msra.mxu0 0.0
        %2382 = vmatprep.subr.mxu0 0.0
        %2383 = vmatpush1.msra.mxu0 0.0
        %2384 = vmatprep.subr.mxu0 0.0
        %2385 = vmatpush1.msra.mxu0 0.0
        %2386 = vmatprep.subr.mxu0 0.0
        %2387 = vmatpush1.msra.mxu0 0.0
        %2388 = vmatprep.subr.mxu0 0.0
        %2389 = vmatpush1.msra.mxu0 0.0
        %2390 = vmatprep.subr.mxu0 0.0
        %2391 = vmatpush1.msra.mxu0 0.0
        %2392 = vmatprep.subr.mxu0 0.0
        %2393 = vmatpush1.msra.mxu0 0.0
        %2394 = vmatprep.subr.mxu0 0.0
        %2395 = vmatpush1.msra.mxu0 0.0
        %2396 = vmatprep.subr.mxu0 0.0
        %2397 = vmatpush1.msra.mxu0 0.0
        %2398 = vmatprep.subr.mxu0 0.0
        %2399 = vmatpush1.msra.mxu0 0.0
        %2400 = vmatprep.subr.mxu0 0.0
        %2401 = vmatpush1.msra.mxu0 0.0
        %2402 = vmatprep.mubr.f32.mxu0 0.0
        %2403 = vmatmul.mubr.f32.gmra.mrb[0].mxu0 %v2078
        %v2404 = vpop.f32.mrb[0].mxu0
        %v2405 = vadd.f32 0.0, %v2404
        %v2406 = vpop.f32.mrb[0].mxu0
        %2407 = vdwg.mxu0
        %v2408 = vadd.f32 %v2264, %v2334
        %v2409 = vadd.f32 %v2265, %v2336
        %v2410 = vxor.u32 %v2408, 2147483648
        %v2411 = vxor.u32 %v2409, 2147483648
        %v2412 = vmul.f32 %v2410, 1.442695
        %v2413 = vpow.pop %v2412
        %v2414 = vmul.f32 %v2411, 1.442695
        %v2415 = vpow.pop %v2414
        %v2416 = vadd.f32 %v2413, 1.0
        %v2417 = vadd.f32 %v2415, 1.0
        %v2418 = vrcp.pop %v2416
        %v2419 = vmul.f32 1.0, %v2418
        %v2420 = vrcp.pop %v2417
        %v2421 = vmul.f32 1.0, %v2420
        %v2422 = vadd.f32 %v2405, %v1352
        %v2423 = vmul.f32 %v2419, %v2422
        %v2424 = vadd.f32 %v2266, %v2423
        %v2425 = vtanh.pop %v2424
        %v2426 = vsub.f32 1.0, %v2421
        %v2427 = vmul.f32 %v2426, %v2425
        %v2428 = vmul.f32 %v2421, %v2078
        %v2429 = vadd.f32 %v2427, %v2428
        %s2430 = sadd.s32 %s1357, 5
        %v2431 = vstv %s2430
        %vm2432 = vcmp.lt.s32.totalorder %v2431, %v1354
        %v2433 = vsel %vm2432, 1, 0
        %2434 = vset.pattern.permute.xlu0 0
        %2435 = vperm.xlu0 %2434, %v2433
        %v2436 = vpop.permute.xlu0 %2435
        %vm2437 = vcmp.eq.s32.totalorder %v2436, 1
        %v2438 = vsel %vm2437, %v2429, %v2078
        %v2439 = vsel %vm2437, %v2429, 0.0
        %v2440 = vadd.f32 %v2080, %v2439
        %s2441 = smul.u32 3, 3
        %s2442 = smul.addr %s2441, 8
        %s2443 = scalar_lea.vmem [#allocation2], %s2442
        %v2444 = vld [vmem:[%s2443] sm:$0xff]
        %v2445 = vld [vmem:[%s2443 + $0x8] sm:$0xff]
        %v2446 = vld [vmem:[%s2443 + $0x10] sm:$0xff]
        %2447 = vmatprep.subr.mxu0 %v1245
        %2448 = vmatpush1.msra.mxu0 %v1244
        %2449 = vmatprep.subr.mxu0 %v1248
        %2450 = vmatpush1.msra.mxu0 %v1247
        %2451 = vmatprep.subr.mxu0 %v1251
        %2452 = vmatpush1.msra.mxu0 %v1250
        %2453 = vmatprep.subr.mxu0 %v1254
        %2454 = vmatpush1.msra.mxu0 %v1253
        %2455 = vmatprep.subr.mxu0 %v1257
        %2456 = vmatpush1.msra.mxu0 %v1256
        %2457 = vmatprep.subr.mxu0 %v1260
        %2458 = vmatpush1.msra.mxu0 %v1259
        %2459 = vmatprep.subr.mxu0 %v1263
        %2460 = vmatpush1.msra.mxu0 %v1262
        %2461 = vmatprep.subr.mxu0 %v1266
        %2462 = vmatpush1.msra.mxu0 %v1265
        %2463 = vmatprep.subr.mxu0 %v1269
        %2464 = vmatpush1.msra.mxu0 %v1268
        %2465 = vmatprep.subr.mxu0 %v1272
        %2466 = vmatpush1.msra.mxu0 %v1271
        %2467 = vmatprep.subr.mxu0 %v1275
        %2468 = vmatpush1.msra.mxu0 %v1274
        %2469 = vmatprep.subr.mxu0 %v1278
        %2470 = vmatpush1.msra.mxu0 %v1277
        %2471 = vmatprep.subr.mxu0 %v1281
        %2472 = vmatpush1.msra.mxu0 %v1280
        %2473 = vmatprep.subr.mxu0 %v1284
        %2474 = vmatpush1.msra.mxu0 %v1283
        %2475 = vmatprep.subr.mxu0 %v1287
        %2476 = vmatpush1.msra.mxu0 %v1286
        %2477 = vmatprep.subr.mxu0 %v1290
        %2478 = vmatpush1.msra.mxu0 %v1289
        %2479 = vmatprep.subr.mxu0 0.0
        %2480 = vmatpush1.msra.mxu0 0.0
        %2481 = vmatprep.subr.mxu0 0.0
        %2482 = vmatpush1.msra.mxu0 0.0
        %2483 = vmatprep.subr.mxu0 0.0
        %2484 = vmatpush1.msra.mxu0 0.0
        %2485 = vmatprep.subr.mxu0 0.0
        %2486 = vmatpush1.msra.mxu0 0.0
        %2487 = vmatprep.subr.mxu0 0.0
        %2488 = vmatpush1.msra.mxu0 0.0
        %2489 = vmatprep.subr.mxu0 0.0
        %2490 = vmatpush1.msra.mxu0 0.0
        %2491 = vmatprep.subr.mxu0 0.0
        %2492 = vmatpush1.msra.mxu0 0.0
        %2493 = vmatprep.subr.mxu0 0.0
        %2494 = vmatpush1.msra.mxu0 0.0
        %2495 = vmatprep.subr.mxu0 0.0
        %2496 = vmatpush1.msra.mxu0 0.0
        %2497 = vmatprep.subr.mxu0 0.0
        %2498 = vmatpush1.msra.mxu0 0.0
        %2499 = vmatprep.subr.mxu0 0.0
        %2500 = vmatpush1.msra.mxu0 0.0
        %2501 = vmatprep.subr.mxu0 0.0
        %2502 = vmatpush1.msra.mxu0 0.0
        %2503 = vmatprep.subr.mxu0 0.0
        %2504 = vmatpush1.msra.mxu0 0.0
        %2505 = vmatprep.subr.mxu0 0.0
        %2506 = vmatpush1.msra.mxu0 0.0
        %2507 = vmatprep.subr.mxu0 0.0
        %2508 = vmatpush1.msra.mxu0 0.0
        %2509 = vmatprep.subr.mxu0 0.0
        %2510 = vmatpush1.msra.mxu0 0.0
        %2511 = vmatprep.mubr.f32.mxu0 0.0
        %2512 = vmatmul.mubr.f32.gmra.mrb[0].mxu0 %v2258
        %v2513 = vpop.f32.mrb[0].mxu0
        %v2514 = vadd.f32 0.0, %v2513
        %v2515 = vpop.f32.mrb[0].mxu0
        %v2516 = vadd.f32 0.0, %v2515
        %2517 = vdwg.mxu0
        %2518 = vmatprep.subr.mxu0 0.0
        %2519 = vmatpush1.msra.mxu0 %v1246
        %2520 = vmatprep.subr.mxu0 0.0
        %2521 = vmatpush1.msra.mxu0 %v1249
        %2522 = vmatprep.subr.mxu0 0.0
        %2523 = vmatpush1.msra.mxu0 %v1252
        %2524 = vmatprep.subr.mxu0 0.0
        %2525 = vmatpush1.msra.mxu0 %v1255
        %2526 = vmatprep.subr.mxu0 0.0
        %2527 = vmatpush1.msra.mxu0 %v1258
        %2528 = vmatprep.subr.mxu0 0.0
        %2529 = vmatpush1.msra.mxu0 %v1261
        %2530 = vmatprep.subr.mxu0 0.0
        %2531 = vmatpush1.msra.mxu0 %v1264
        %2532 = vmatprep.subr.mxu0 0.0
        %2533 = vmatpush1.msra.mxu0 %v1267
        %2534 = vmatprep.subr.mxu0 0.0
        %2535 = vmatpush1.msra.mxu0 %v1270
        %2536 = vmatprep.subr.mxu0 0.0
        %2537 = vmatpush1.msra.mxu0 %v1273
        %2538 = vmatprep.subr.mxu0 0.0
        %2539 = vmatpush1.msra.mxu0 %v1276
        %2540 = vmatprep.subr.mxu0 0.0
        %2541 = vmatpush1.msra.mxu0 %v1279
        %2542 = vmatprep.subr.mxu0 0.0
        %2543 = vmatpush1.msra.mxu0 %v1282
        %2544 = vmatprep.subr.mxu0 0.0
        %2545 = vmatpush1.msra.mxu0 %v1285
        %2546 = vmatprep.subr.mxu0 0.0
        %2547 = vmatpush1.msra.mxu0 %v1288
        %2548 = vmatprep.subr.mxu0 0.0
        %2549 = vmatpush1.msra.mxu0 %v1291
        %2550 = vmatprep.subr.mxu0 0.0
        %2551 = vmatpush1.msra.mxu0 0.0
        %2552 = vmatprep.subr.mxu0 0.0
        %2553 = vmatpush1.msra.mxu0 0.0
        %2554 = vmatprep.subr.mxu0 0.0
        %2555 = vmatpush1.msra.mxu0 0.0
        %2556 = vmatprep.subr.mxu0 0.0
        %2557 = vmatpush1.msra.mxu0 0.0
        %2558 = vmatprep.subr.mxu0 0.0
        %2559 = vmatpush1.msra.mxu0 0.0
        %2560 = vmatprep.subr.mxu0 0.0
        %2561 = vmatpush1.msra.mxu0 0.0
        %2562 = vmatprep.subr.mxu0 0.0
        %2563 = vmatpush1.msra.mxu0 0.0
        %2564 = vmatprep.subr.mxu0 0.0
        %2565 = vmatpush1.msra.mxu0 0.0
        %2566 = vmatprep.subr.mxu0 0.0
        %2567 = vmatpush1.msra.mxu0 0.0
        %2568 = vmatprep.subr.mxu0 0.0
        %2569 = vmatpush1.msra.mxu0 0.0
        %2570 = vmatprep.subr.mxu0 0.0
        %2571 = vmatpush1.msra.mxu0 0.0
        %2572 = vmatprep.subr.mxu0 0.0
        %2573 = vmatpush1.msra.mxu0 0.0
        %2574 = vmatprep.subr.mxu0 0.0
        %2575 = vmatpush1.msra.mxu0 0.0
        %2576 = vmatprep.subr.mxu0 0.0
        %2577 = vmatpush1.msra.mxu0 0.0
        %2578 = vmatprep.subr.mxu0 0.0
        %2579 = vmatpush1.msra.mxu0 0.0
        %2580 = vmatprep.subr.mxu0 0.0
        %2581 = vmatpush1.msra.mxu0 0.0
        %2582 = vmatprep.mubr.f32.mxu0 0.0
        %2583 = vmatmul.mubr.f32.gmra.mrb[0].mxu0 %v2258
        %v2584 = vpop.f32.mrb[0].mxu0
        %v2585 = vadd.f32 0.0, %v2584
        %v2586 = vpop.f32.mrb[0].mxu0
        %2587 = vdwg.mxu0
        %v2588 = vadd.f32 %v2444, %v2514
        %v2589 = vadd.f32 %v2445, %v2516
        %v2590 = vxor.u32 %v2588, 2147483648
        %v2591 = vxor.u32 %v2589, 2147483648
        %v2592 = vmul.f32 %v2590, 1.442695
        %v2593 = vpow.pop %v2592
        %v2594 = vmul.f32 %v2591, 1.442695
        %v2595 = vpow.pop %v2594
        %v2596 = vadd.f32 %v2593, 1.0
        %v2597 = vadd.f32 %v2595, 1.0
        %v2598 = vrcp.pop %v2596
        %v2599 = vmul.f32 1.0, %v2598
        %v2600 = vrcp.pop %v2597
        %v2601 = vmul.f32 1.0, %v2600
        %v2602 = vadd.f32 %v2585, %v1345
        %v2603 = vmul.f32 %v2599, %v2602
        %v2604 = vadd.f32 %v2446, %v2603
        %v2605 = vtanh.pop %v2604
        %v2606 = vsub.f32 1.0, %v2601
        %v2607 = vmul.f32 %v2606, %v2605
        %v2608 = vmul.f32 %v2601, %v2258
        %v2609 = vadd.f32 %v2607, %v2608
        %s2610 = sadd.s32 %s1355, 3
        %v2611 = vstv %s2610
        %vm2612 = vcmp.lt.s32.totalorder %v2611, %v1354
        %v2613 = vsel %vm2612, 1, 0
        %2614 = vset.pattern.permute.xlu0 0
        %2615 = vperm.xlu0 %2614, %v2613
        %v2616 = vpop.permute.xlu0 %2615
        %vm2617 = vcmp.eq.s32.totalorder %v2616, 1
        %v2618 = vsel %vm2617, %v2609, %v2258
        %v2619 = vsel %vm2617, %v2609, 0.0
        %v2620 = vadd.f32 %v2260, %v2619
        %s2621 = smul.u32 4, 3
        %s2622 = smul.addr %s2621, 8
        %s2623 = scalar_lea.vmem [#allocation3], %s2622
        %v2624 = vld [vmem:[%s2623] sm:$0xff]
        %v2625 = vld [vmem:[%s2623 + $0x8] sm:$0xff]
        %v2626 = vld [vmem:[%s2623 + $0x10] sm:$0xff]
        %2627 = vmatprep.subr.mxu0 %v1293
        %2628 = vmatpush1.msra.mxu0 %v1292
        %2629 = vmatprep.subr.mxu0 %v1296
        %2630 = vmatpush1.msra.mxu0 %v1295
        %2631 = vmatprep.subr.mxu0 %v1299
        %2632 = vmatpush1.msra.mxu0 %v1298
        %2633 = vmatprep.subr.mxu0 %v1302
        %2634 = vmatpush1.msra.mxu0 %v1301
        %2635 = vmatprep.subr.mxu0 %v1305
        %2636 = vmatpush1.msra.mxu0 %v1304
        %2637 = vmatprep.subr.mxu0 %v1308
        %2638 = vmatpush1.msra.mxu0 %v1307
        %2639 = vmatprep.subr.mxu0 %v1311
        %2640 = vmatpush1.msra.mxu0 %v1310
        %2641 = vmatprep.subr.mxu0 %v1314
        %2642 = vmatpush1.msra.mxu0 %v1313
        %2643 = vmatprep.subr.mxu0 %v1317
        %2644 = vmatpush1.msra.mxu0 %v1316
        %2645 = vmatprep.subr.mxu0 %v1320
        %2646 = vmatpush1.msra.mxu0 %v1319
        %2647 = vmatprep.subr.mxu0 %v1323
        %2648 = vmatpush1.msra.mxu0 %v1322
        %2649 = vmatprep.subr.mxu0 %v1326
        %2650 = vmatpush1.msra.mxu0 %v1325
        %2651 = vmatprep.subr.mxu0 %v1329
        %2652 = vmatpush1.msra.mxu0 %v1328
        %2653 = vmatprep.subr.mxu0 %v1332
        %2654 = vmatpush1.msra.mxu0 %v1331
        %2655 = vmatprep.subr.mxu0 %v1335
        %2656 = vmatpush1.msra.mxu0 %v1334
        %2657 = vmatprep.subr.mxu0 %v1338
        %2658 = vmatpush1.msra.mxu0 %v1337
        %2659 = vmatprep.subr.mxu0 0.0
        %2660 = vmatpush1.msra.mxu0 0.0
        %2661 = vmatprep.subr.mxu0 0.0
        %2662 = vmatpush1.msra.mxu0 0.0
        %2663 = vmatprep.subr.mxu0 0.0
        %2664 = vmatpush1.msra.mxu0 0.0
        %2665 = vmatprep.subr.mxu0 0.0
        %2666 = vmatpush1.msra.mxu0 0.0
        %2667 = vmatprep.subr.mxu0 0.0
        %2668 = vmatpush1.msra.mxu0 0.0
        %2669 = vmatprep.subr.mxu0 0.0
        %2670 = vmatpush1.msra.mxu0 0.0
        %2671 = vmatprep.subr.mxu0 0.0
        %2672 = vmatpush1.msra.mxu0 0.0
        %2673 = vmatprep.subr.mxu0 0.0
        %2674 = vmatpush1.msra.mxu0 0.0
        %2675 = vmatprep.subr.mxu0 0.0
        %2676 = vmatpush1.msra.mxu0 0.0
        %2677 = vmatprep.subr.mxu0 0.0
        %2678 = vmatpush1.msra.mxu0 0.0
        %2679 = vmatprep.subr.mxu0 0.0
        %2680 = vmatpush1.msra.mxu0 0.0
        %2681 = vmatprep.subr.mxu0 0.0
        %2682 = vmatpush1.msra.mxu0 0.0
        %2683 = vmatprep.subr.mxu0 0.0
        %2684 = vmatpush1.msra.mxu0 0.0
        %2685 = vmatprep.subr.mxu0 0.0
        %2686 = vmatpush1.msra.mxu0 0.0
        %2687 = vmatprep.subr.mxu0 0.0
        %2688 = vmatpush1.msra.mxu0 0.0
        %2689 = vmatprep.subr.mxu0 0.0
        %2690 = vmatpush1.msra.mxu0 0.0
        %2691 = vmatprep.mubr.f32.mxu0 0.0
        %2692 = vmatmul.mubr.f32.gmra.mrb[0].mxu0 %v2438
        %v2693 = vpop.f32.mrb[0].mxu0
        %v2694 = vadd.f32 0.0, %v2693
        %v2695 = vpop.f32.mrb[0].mxu0
        %v2696 = vadd.f32 0.0, %v2695
        %2697 = vdwg.mxu0
        %2698 = vmatprep.subr.mxu0 0.0
        %2699 = vmatpush1.msra.mxu0 %v1294
        %2700 = vmatprep.subr.mxu0 0.0
        %2701 = vmatpush1.msra.mxu0 %v1297
        %2702 = vmatprep.subr.mxu0 0.0
        %2703 = vmatpush1.msra.mxu0 %v1300
        %2704 = vmatprep.subr.mxu0 0.0
        %2705 = vmatpush1.msra.mxu0 %v1303
        %2706 = vmatprep.subr.mxu0 0.0
        %2707 = vmatpush1.msra.mxu0 %v1306
        %2708 = vmatprep.subr.mxu0 0.0
        %2709 = vmatpush1.msra.mxu0 %v1309
        %2710 = vmatprep.subr.mxu0 0.0
        %2711 = vmatpush1.msra.mxu0 %v1312
        %2712 = vmatprep.subr.mxu0 0.0
        %2713 = vmatpush1.msra.mxu0 %v1315
        %2714 = vmatprep.subr.mxu0 0.0
        %2715 = vmatpush1.msra.mxu0 %v1318
        %2716 = vmatprep.subr.mxu0 0.0
        %2717 = vmatpush1.msra.mxu0 %v1321
        %2718 = vmatprep.subr.mxu0 0.0
        %2719 = vmatpush1.msra.mxu0 %v1324
        %2720 = vmatprep.subr.mxu0 0.0
        %2721 = vmatpush1.msra.mxu0 %v1327
        %2722 = vmatprep.subr.mxu0 0.0
        %2723 = vmatpush1.msra.mxu0 %v1330
        %2724 = vmatprep.subr.mxu0 0.0
        %2725 = vmatpush1.msra.mxu0 %v1333
        %2726 = vmatprep.subr.mxu0 0.0
        %2727 = vmatpush1.msra.mxu0 %v1336
        %2728 = vmatprep.subr.mxu0 0.0
        %2729 = vmatpush1.msra.mxu0 %v1339
        %2730 = vmatprep.subr.mxu0 0.0
        %2731 = vmatpush1.msra.mxu0 0.0
        %2732 = vmatprep.subr.mxu0 0.0
        %2733 = vmatpush1.msra.mxu0 0.0
        %2734 = vmatprep.subr.mxu0 0.0
        %2735 = vmatpush1.msra.mxu0 0.0
        %2736 = vmatprep.subr.mxu0 0.0
        %2737 = vmatpush1.msra.mxu0 0.0
        %2738 = vmatprep.subr.mxu0 0.0
        %2739 = vmatpush1.msra.mxu0 0.0
        %2740 = vmatprep.subr.mxu0 0.0
        %2741 = vmatpush1.msra.mxu0 0.0
        %2742 = vmatprep.subr.mxu0 0.0
        %2743 = vmatpush1.msra.mxu0 0.0
        %2744 = vmatprep.subr.mxu0 0.0
        %2745 = vmatpush1.msra.mxu0 0.0
        %2746 = vmatprep.subr.mxu0 0.0
        %2747 = vmatpush1.msra.mxu0 0.0
        %2748 = vmatprep.subr.mxu0 0.0
        %2749 = vmatpush1.msra.mxu0 0.0
        %2750 = vmatprep.subr.mxu0 0.0
        %2751 = vmatpush1.msra.mxu0 0.0
        %2752 = vmatprep.subr.mxu0 0.0
        %2753 = vmatpush1.msra.mxu0 0.0
        %2754 = vmatprep.subr.mxu0 0.0
        %2755 = vmatpush1.msra.mxu0 0.0
        %2756 = vmatprep.subr.mxu0 0.0
        %2757 = vmatpush1.msra.mxu0 0.0
        %2758 = vmatprep.subr.mxu0 0.0
        %2759 = vmatpush1.msra.mxu0 0.0
        %2760 = vmatprep.subr.mxu0 0.0
        %2761 = vmatpush1.msra.mxu0 0.0
        %2762 = vmatprep.mubr.f32.mxu0 0.0
        %2763 = vmatmul.mubr.f32.gmra.mrb[0].mxu0 %v2438
        %v2764 = vpop.f32.mrb[0].mxu0
        %v2765 = vadd.f32 0.0, %v2764
        %v2766 = vpop.f32.mrb[0].mxu0
        %2767 = vdwg.mxu0
        %v2768 = vadd.f32 %v2624, %v2694
        %v2769 = vadd.f32 %v2625, %v2696
        %v2770 = vxor.u32 %v2768, 2147483648
        %v2771 = vxor.u32 %v2769, 2147483648
        %v2772 = vmul.f32 %v2770, 1.442695
        %v2773 = vpow.pop %v2772
        %v2774 = vmul.f32 %v2771, 1.442695
        %v2775 = vpow.pop %v2774
        %v2776 = vadd.f32 %v2773, 1.0
        %v2777 = vadd.f32 %v2775, 1.0
        %v2778 = vrcp.pop %v2776
        %v2779 = vmul.f32 1.0, %v2778
        %v2780 = vrcp.pop %v2777
        %v2781 = vmul.f32 1.0, %v2780
        %v2782 = vadd.f32 %v2765, %v1352
        %v2783 = vmul.f32 %v2779, %v2782
        %v2784 = vadd.f32 %v2626, %v2783
        %v2785 = vtanh.pop %v2784
        %v2786 = vsub.f32 1.0, %v2781
        %v2787 = vmul.f32 %v2786, %v2785
        %v2788 = vmul.f32 %v2781, %v2438
        %v2789 = vadd.f32 %v2787, %v2788
        %s2790 = sadd.s32 %s1357, 4
        %v2791 = vstv %s2790
        %vm2792 = vcmp.lt.s32.totalorder %v2791, %v1354
        %v2793 = vsel %vm2792, 1, 0
        %2794 = vset.pattern.permute.xlu0 0
        %2795 = vperm.xlu0 %2794, %v2793
        %v2796 = vpop.permute.xlu0 %2795
        %vm2797 = vcmp.eq.s32.totalorder %v2796, 1
        %v2798 = vsel %vm2797, %v2789, %v2438
        %v2799 = vsel %vm2797, %v2789, 0.0
        %v2800 = vadd.f32 %v2440, %v2799
        %s2801 = smul.addr %s2621, 8
        %s2802 = scalar_lea.vmem [#allocation2], %s2801
        %v2803 = vld [vmem:[%s2802] sm:$0xff]
        %v2804 = vld [vmem:[%s2802 + $0x8] sm:$0xff]
        %v2805 = vld [vmem:[%s2802 + $0x10] sm:$0xff]
        %2806 = vmatprep.subr.mxu0 %v1245
        %2807 = vmatpush1.msra.mxu0 %v1244
        %2808 = vmatprep.subr.mxu0 %v1248
        %2809 = vmatpush1.msra.mxu0 %v1247
        %2810 = vmatprep.subr.mxu0 %v1251
        %2811 = vmatpush1.msra.mxu0 %v1250
        %2812 = vmatprep.subr.mxu0 %v1254
        %2813 = vmatpush1.msra.mxu0 %v1253
        %2814 = vmatprep.subr.mxu0 %v1257
        %2815 = vmatpush1.msra.mxu0 %v1256
        %2816 = vmatprep.subr.mxu0 %v1260
        %2817 = vmatpush1.msra.mxu0 %v1259
        %2818 = vmatprep.subr.mxu0 %v1263
        %2819 = vmatpush1.msra.mxu0 %v1262
        %2820 = vmatprep.subr.mxu0 %v1266
        %2821 = vmatpush1.msra.mxu0 %v1265
        %2822 = vmatprep.subr.mxu0 %v1269
        %2823 = vmatpush1.msra.mxu0 %v1268
        %2824 = vmatprep.subr.mxu0 %v1272
        %2825 = vmatpush1.msra.mxu0 %v1271
        %2826 = vmatprep.subr.mxu0 %v1275
        %2827 = vmatpush1.msra.mxu0 %v1274
        %2828 = vmatprep.subr.mxu0 %v1278
        %2829 = vmatpush1.msra.mxu0 %v1277
        %2830 = vmatprep.subr.mxu0 %v1281
        %2831 = vmatpush1.msra.mxu0 %v1280
        %2832 = vmatprep.subr.mxu0 %v1284
        %2833 = vmatpush1.msra.mxu0 %v1283
        %2834 = vmatprep.subr.mxu0 %v1287
        %2835 = vmatpush1.msra.mxu0 %v1286
        %2836 = vmatprep.subr.mxu0 %v1290
        %2837 = vmatpush1.msra.mxu0 %v1289
        %2838 = vmatprep.subr.mxu0 0.0
        %2839 = vmatpush1.msra.mxu0 0.0
        %2840 = vmatprep.subr.mxu0 0.0
        %2841 = vmatpush1.msra.mxu0 0.0
        %2842 = vmatprep.subr.mxu0 0.0
        %2843 = vmatpush1.msra.mxu0 0.0
        %2844 = vmatprep.subr.mxu0 0.0
        %2845 = vmatpush1.msra.mxu0 0.0
        %2846 = vmatprep.subr.mxu0 0.0
        %2847 = vmatpush1.msra.mxu0 0.0
        %2848 = vmatprep.subr.mxu0 0.0
        %2849 = vmatpush1.msra.mxu0 0.0
        %2850 = vmatprep.subr.mxu0 0.0
        %2851 = vmatpush1.msra.mxu0 0.0
        %2852 = vmatprep.subr.mxu0 0.0
        %2853 = vmatpush1.msra.mxu0 0.0
        %2854 = vmatprep.subr.mxu0 0.0
        %2855 = vmatpush1.msra.mxu0 0.0
        %2856 = vmatprep.subr.mxu0 0.0
        %2857 = vmatpush1.msra.mxu0 0.0
        %2858 = vmatprep.subr.mxu0 0.0
        %2859 = vmatpush1.msra.mxu0 0.0
        %2860 = vmatprep.subr.mxu0 0.0
        %2861 = vmatpush1.msra.mxu0 0.0
        %2862 = vmatprep.subr.mxu0 0.0
        %2863 = vmatpush1.msra.mxu0 0.0
        %2864 = vmatprep.subr.mxu0 0.0
        %2865 = vmatpush1.msra.mxu0 0.0
        %2866 = vmatprep.subr.mxu0 0.0
        %2867 = vmatpush1.msra.mxu0 0.0
        %2868 = vmatprep.subr.mxu0 0.0
        %2869 = vmatpush1.msra.mxu0 0.0
        %2870 = vmatprep.mubr.f32.mxu0 0.0
        %2871 = vmatmul.mubr.f32.gmra.mrb[0].mxu0 %v2618
        %v2872 = vpop.f32.mrb[0].mxu0
        %v2873 = vadd.f32 0.0, %v2872
        %v2874 = vpop.f32.mrb[0].mxu0
        %v2875 = vadd.f32 0.0, %v2874
        %2876 = vdwg.mxu0
        %2877 = vmatprep.subr.mxu0 0.0
        %2878 = vmatpush1.msra.mxu0 %v1246
        %2879 = vmatprep.subr.mxu0 0.0
        %2880 = vmatpush1.msra.mxu0 %v1249
        %2881 = vmatprep.subr.mxu0 0.0
        %2882 = vmatpush1.msra.mxu0 %v1252
        %2883 = vmatprep.subr.mxu0 0.0
        %2884 = vmatpush1.msra.mxu0 %v1255
        %2885 = vmatprep.subr.mxu0 0.0
        %2886 = vmatpush1.msra.mxu0 %v1258
        %2887 = vmatprep.subr.mxu0 0.0
        %2888 = vmatpush1.msra.mxu0 %v1261
        %2889 = vmatprep.subr.mxu0 0.0
        %2890 = vmatpush1.msra.mxu0 %v1264
        %2891 = vmatprep.subr.mxu0 0.0
        %2892 = vmatpush1.msra.mxu0 %v1267
        %2893 = vmatprep.subr.mxu0 0.0
        %2894 = vmatpush1.msra.mxu0 %v1270
        %2895 = vmatprep.subr.mxu0 0.0
        %2896 = vmatpush1.msra.mxu0 %v1273
        %2897 = vmatprep.subr.mxu0 0.0
        %2898 = vmatpush1.msra.mxu0 %v1276
        %2899 = vmatprep.subr.mxu0 0.0
        %2900 = vmatpush1.msra.mxu0 %v1279
        %2901 = vmatprep.subr.mxu0 0.0
        %2902 = vmatpush1.msra.mxu0 %v1282
        %2903 = vmatprep.subr.mxu0 0.0
        %2904 = vmatpush1.msra.mxu0 %v1285
        %2905 = vmatprep.subr.mxu0 0.0
        %2906 = vmatpush1.msra.mxu0 %v1288
        %2907 = vmatprep.subr.mxu0 0.0
        %2908 = vmatpush1.msra.mxu0 %v1291
        %2909 = vmatprep.subr.mxu0 0.0
        %2910 = vmatpush1.msra.mxu0 0.0
        %2911 = vmatprep.subr.mxu0 0.0
        %2912 = vmatpush1.msra.mxu0 0.0
        %2913 = vmatprep.subr.mxu0 0.0
        %2914 = vmatpush1.msra.mxu0 0.0
        %2915 = vmatprep.subr.mxu0 0.0
        %2916 = vmatpush1.msra.mxu0 0.0
        %2917 = vmatprep.subr.mxu0 0.0
        %2918 = vmatpush1.msra.mxu0 0.0
        %2919 = vmatprep.subr.mxu0 0.0
        %2920 = vmatpush1.msra.mxu0 0.0
        %2921 = vmatprep.subr.mxu0 0.0
        %2922 = vmatpush1.msra.mxu0 0.0
        %2923 = vmatprep.subr.mxu0 0.0
        %2924 = vmatpush1.msra.mxu0 0.0
        %2925 = vmatprep.subr.mxu0 0.0
        %2926 = vmatpush1.msra.mxu0 0.0
        %2927 = vmatprep.subr.mxu0 0.0
        %2928 = vmatpush1.msra.mxu0 0.0
        %2929 = vmatprep.subr.mxu0 0.0
        %2930 = vmatpush1.msra.mxu0 0.0
        %2931 = vmatprep.subr.mxu0 0.0
        %2932 = vmatpush1.msra.mxu0 0.0
        %2933 = vmatprep.subr.mxu0 0.0
        %2934 = vmatpush1.msra.mxu0 0.0
        %2935 = vmatprep.subr.mxu0 0.0
        %2936 = vmatpush1.msra.mxu0 0.0
        %2937 = vmatprep.subr.mxu0 0.0
        %2938 = vmatpush1.msra.mxu0 0.0
        %2939 = vmatprep.subr.mxu0 0.0
        %2940 = vmatpush1.msra.mxu0 0.0
        %2941 = vmatprep.mubr.f32.mxu0 0.0
        %2942 = vmatmul.mubr.f32.gmra.mrb[0].mxu0 %v2618
        %v2943 = vpop.f32.mrb[0].mxu0
        %v2944 = vadd.f32 0.0, %v2943
        %v2945 = vpop.f32.mrb[0].mxu0
        %2946 = vdwg.mxu0
        %v2947 = vadd.f32 %v2803, %v2873
        %v2948 = vadd.f32 %v2804, %v2875
        %v2949 = vxor.u32 %v2947, 2147483648
        %v2950 = vxor.u32 %v2948, 2147483648
        %v2951 = vmul.f32 %v2949, 1.442695
        %v2952 = vpow.pop %v2951
        %v2953 = vmul.f32 %v2950, 1.442695
        %v2954 = vpow.pop %v2953
        %v2955 = vadd.f32 %v2952, 1.0
        %v2956 = vadd.f32 %v2954, 1.0
        %v2957 = vrcp.pop %v2955
        %v2958 = vmul.f32 1.0, %v2957
        %v2959 = vrcp.pop %v2956
        %v2960 = vmul.f32 1.0, %v2959
        %v2961 = vadd.f32 %v2944, %v1345
        %v2962 = vmul.f32 %v2958, %v2961
        %v2963 = vadd.f32 %v2805, %v2962
        %v2964 = vtanh.pop %v2963
        %v2965 = vsub.f32 1.0, %v2960
        %v2966 = vmul.f32 %v2965, %v2964
        %v2967 = vmul.f32 %v2960, %v2618
        %v2968 = vadd.f32 %v2966, %v2967
        %s2969 = sadd.s32 %s1355, 4
        %v2970 = vstv %s2969
        %vm2971 = vcmp.lt.s32.totalorder %v2970, %v1354
        %v2972 = vsel %vm2971, 1, 0
        %2973 = vset.pattern.permute.xlu0 0
        %2974 = vperm.xlu0 %2973, %v2972
        %v2975 = vpop.permute.xlu0 %2974
        %vm2976 = vcmp.eq.s32.totalorder %v2975, 1
        %v2977 = vsel %vm2976, %v2968, %v2618
        %v2978 = vsel %vm2976, %v2968, 0.0
        %v2979 = vadd.f32 %v2620, %v2978
        %s2980 = smul.addr %s2441, 8
        %s2981 = scalar_lea.vmem [#allocation3], %s2980
        %v2982 = vld [vmem:[%s2981] sm:$0xff]
        %v2983 = vld [vmem:[%s2981 + $0x8] sm:$0xff]
        %v2984 = vld [vmem:[%s2981 + $0x10] sm:$0xff]
        %2985 = vmatprep.subr.mxu0 %v1293
        %2986 = vmatpush1.msra.mxu0 %v1292
        %2987 = vmatprep.subr.mxu0 %v1296
        %2988 = vmatpush1.msra.mxu0 %v1295
        %2989 = vmatprep.subr.mxu0 %v1299
        %2990 = vmatpush1.msra.mxu0 %v1298
        %2991 = vmatprep.subr.mxu0 %v1302
        %2992 = vmatpush1.msra.mxu0 %v1301
        %2993 = vmatprep.subr.mxu0 %v1305
        %2994 = vmatpush1.msra.mxu0 %v1304
        %2995 = vmatprep.subr.mxu0 %v1308
        %2996 = vmatpush1.msra.mxu0 %v1307
        %2997 = vmatprep.subr.mxu0 %v1311
        %2998 = vmatpush1.msra.mxu0 %v1310
        %2999 = vmatprep.subr.mxu0 %v1314
        %3000 = vmatpush1.msra.mxu0 %v1313
        %3001 = vmatprep.subr.mxu0 %v1317
        %3002 = vmatpush1.msra.mxu0 %v1316
        %3003 = vmatprep.subr.mxu0 %v1320
        %3004 = vmatpush1.msra.mxu0 %v1319
        %3005 = vmatprep.subr.mxu0 %v1323
        %3006 = vmatpush1.msra.mxu0 %v1322
        %3007 = vmatprep.subr.mxu0 %v1326
        %3008 = vmatpush1.msra.mxu0 %v1325
        %3009 = vmatprep.subr.mxu0 %v1329
        %3010 = vmatpush1.msra.mxu0 %v1328
        %3011 = vmatprep.subr.mxu0 %v1332
        %3012 = vmatpush1.msra.mxu0 %v1331
        %3013 = vmatprep.subr.mxu0 %v1335
        %3014 = vmatpush1.msra.mxu0 %v1334
        %3015 = vmatprep.subr.mxu0 %v1338
        %3016 = vmatpush1.msra.mxu0 %v1337
        %3017 = vmatprep.subr.mxu0 0.0
        %3018 = vmatpush1.msra.mxu0 0.0
        %3019 = vmatprep.subr.mxu0 0.0
        %3020 = vmatpush1.msra.mxu0 0.0
        %3021 = vmatprep.subr.mxu0 0.0
        %3022 = vmatpush1.msra.mxu0 0.0
        %3023 = vmatprep.subr.mxu0 0.0
        %3024 = vmatpush1.msra.mxu0 0.0
        %3025 = vmatprep.subr.mxu0 0.0
        %3026 = vmatpush1.msra.mxu0 0.0
        %3027 = vmatprep.subr.mxu0 0.0
        %3028 = vmatpush1.msra.mxu0 0.0
        %3029 = vmatprep.subr.mxu0 0.0
        %3030 = vmatpush1.msra.mxu0 0.0
        %3031 = vmatprep.subr.mxu0 0.0
        %3032 = vmatpush1.msra.mxu0 0.0
        %3033 = vmatprep.subr.mxu0 0.0
        %3034 = vmatpush1.msra.mxu0 0.0
        %3035 = vmatprep.subr.mxu0 0.0
        %3036 = vmatpush1.msra.mxu0 0.0
        %3037 = vmatprep.subr.mxu0 0.0
        %3038 = vmatpush1.msra.mxu0 0.0
        %3039 = vmatprep.subr.mxu0 0.0
        %3040 = vmatpush1.msra.mxu0 0.0
        %3041 = vmatprep.subr.mxu0 0.0
        %3042 = vmatpush1.msra.mxu0 0.0
        %3043 = vmatprep.subr.mxu0 0.0
        %3044 = vmatpush1.msra.mxu0 0.0
        %3045 = vmatprep.subr.mxu0 0.0
        %3046 = vmatpush1.msra.mxu0 0.0
        %3047 = vmatprep.subr.mxu0 0.0
        %3048 = vmatpush1.msra.mxu0 0.0
        %3049 = vmatprep.mubr.f32.mxu0 0.0
        %3050 = vmatmul.mubr.f32.gmra.mrb[0].mxu0 %v2798
        %v3051 = vpop.f32.mrb[0].mxu0
        %v3052 = vadd.f32 0.0, %v3051
        %v3053 = vpop.f32.mrb[0].mxu0
        %v3054 = vadd.f32 0.0, %v3053
        %3055 = vdwg.mxu0
        %3056 = vmatprep.subr.mxu0 0.0
        %3057 = vmatpush1.msra.mxu0 %v1294
        %3058 = vmatprep.subr.mxu0 0.0
        %3059 = vmatpush1.msra.mxu0 %v1297
        %3060 = vmatprep.subr.mxu0 0.0
        %3061 = vmatpush1.msra.mxu0 %v1300
        %3062 = vmatprep.subr.mxu0 0.0
        %3063 = vmatpush1.msra.mxu0 %v1303
        %3064 = vmatprep.subr.mxu0 0.0
        %3065 = vmatpush1.msra.mxu0 %v1306
        %3066 = vmatprep.subr.mxu0 0.0
        %3067 = vmatpush1.msra.mxu0 %v1309
        %3068 = vmatprep.subr.mxu0 0.0
        %3069 = vmatpush1.msra.mxu0 %v1312
        %3070 = vmatprep.subr.mxu0 0.0
        %3071 = vmatpush1.msra.mxu0 %v1315
        %3072 = vmatprep.subr.mxu0 0.0
        %3073 = vmatpush1.msra.mxu0 %v1318
        %3074 = vmatprep.subr.mxu0 0.0
        %3075 = vmatpush1.msra.mxu0 %v1321
        %3076 = vmatprep.subr.mxu0 0.0
        %3077 = vmatpush1.msra.mxu0 %v1324
        %3078 = vmatprep.subr.mxu0 0.0
        %3079 = vmatpush1.msra.mxu0 %v1327
        %3080 = vmatprep.subr.mxu0 0.0
        %3081 = vmatpush1.msra.mxu0 %v1330
        %3082 = vmatprep.subr.mxu0 0.0
        %3083 = vmatpush1.msra.mxu0 %v1333
        %3084 = vmatprep.subr.mxu0 0.0
        %3085 = vmatpush1.msra.mxu0 %v1336
        %3086 = vmatprep.subr.mxu0 0.0
        %3087 = vmatpush1.msra.mxu0 %v1339
        %3088 = vmatprep.subr.mxu0 0.0
        %3089 = vmatpush1.msra.mxu0 0.0
        %3090 = vmatprep.subr.mxu0 0.0
        %3091 = vmatpush1.msra.mxu0 0.0
        %3092 = vmatprep.subr.mxu0 0.0
        %3093 = vmatpush1.msra.mxu0 0.0
        %3094 = vmatprep.subr.mxu0 0.0
        %3095 = vmatpush1.msra.mxu0 0.0
        %3096 = vmatprep.subr.mxu0 0.0
        %3097 = vmatpush1.msra.mxu0 0.0
        %3098 = vmatprep.subr.mxu0 0.0
        %3099 = vmatpush1.msra.mxu0 0.0
        %3100 = vmatprep.subr.mxu0 0.0
        %3101 = vmatpush1.msra.mxu0 0.0
        %3102 = vmatprep.subr.mxu0 0.0
        %3103 = vmatpush1.msra.mxu0 0.0
        %3104 = vmatprep.subr.mxu0 0.0
        %3105 = vmatpush1.msra.mxu0 0.0
        %3106 = vmatprep.subr.mxu0 0.0
        %3107 = vmatpush1.msra.mxu0 0.0
        %3108 = vmatprep.subr.mxu0 0.0
        %3109 = vmatpush1.msra.mxu0 0.0
        %3110 = vmatprep.subr.mxu0 0.0
        %3111 = vmatpush1.msra.mxu0 0.0
        %3112 = vmatprep.subr.mxu0 0.0
        %3113 = vmatpush1.msra.mxu0 0.0
        %3114 = vmatprep.subr.mxu0 0.0
        %3115 = vmatpush1.msra.mxu0 0.0
        %3116 = vmatprep.subr.mxu0 0.0
        %3117 = vmatpush1.msra.mxu0 0.0
        %3118 = vmatprep.subr.mxu0 0.0
        %3119 = vmatpush1.msra.mxu0 0.0
        %3120 = vmatprep.mubr.f32.mxu0 0.0
        %3121 = vmatmul.mubr.f32.gmra.mrb[0].mxu0 %v2798
        %v3122 = vpop.f32.mrb[0].mxu0
        %v3123 = vadd.f32 0.0, %v3122
        %v3124 = vpop.f32.mrb[0].mxu0
        %3125 = vdwg.mxu0
        %v3126 = vadd.f32 %v2982, %v3052
        %v3127 = vadd.f32 %v2983, %v3054
        %v3128 = vxor.u32 %v3126, 2147483648
        %v3129 = vxor.u32 %v3127, 2147483648
        %v3130 = vmul.f32 %v3128, 1.442695
        %v3131 = vpow.pop %v3130
        %v3132 = vmul.f32 %v3129, 1.442695
        %v3133 = vpow.pop %v3132
        %v3134 = vadd.f32 %v3131, 1.0
        %v3135 = vadd.f32 %v3133, 1.0
        %v3136 = vrcp.pop %v3134
        %v3137 = vmul.f32 1.0, %v3136
        %v3138 = vrcp.pop %v3135
        %v3139 = vmul.f32 1.0, %v3138
        %v3140 = vadd.f32 %v3123, %v1352
        %v3141 = vmul.f32 %v3137, %v3140
        %v3142 = vadd.f32 %v2984, %v3141
        %v3143 = vtanh.pop %v3142
        %v3144 = vsub.f32 1.0, %v3139
        %v3145 = vmul.f32 %v3144, %v3143
        %v3146 = vmul.f32 %v3139, %v2798
        %v3147 = vadd.f32 %v3145, %v3146
        %s3148 = sadd.s32 %s1357, 3
        %v3149 = vstv %s3148
        %vm3150 = vcmp.lt.s32.totalorder %v3149, %v1354
        %v3151 = vsel %vm3150, 1, 0
        %3152 = vset.pattern.permute.xlu0 0
        %3153 = vperm.xlu0 %3152, %v3151
        %v3154 = vpop.permute.xlu0 %3153
        %vm3155 = vcmp.eq.s32.totalorder %v3154, 1
        %v3156 = vsel %vm3155, %v3147, %v2798
        %v3157 = vsel %vm3155, %v3147, 0.0
        %v3158 = vadd.f32 %v2800, %v3157
        %s3159 = smul.addr %s2261, 8
        %s3160 = scalar_lea.vmem [#allocation2], %s3159
        %v3161 = vld [vmem:[%s3160] sm:$0xff]
        %v3162 = vld [vmem:[%s3160 + $0x8] sm:$0xff]
        %v3163 = vld [vmem:[%s3160 + $0x10] sm:$0xff]
        %3164 = vmatprep.subr.mxu0 %v1245
        %3165 = vmatpush1.msra.mxu0 %v1244
        %3166 = vmatprep.subr.mxu0 %v1248
        %3167 = vmatpush1.msra.mxu0 %v1247
        %3168 = vmatprep.subr.mxu0 %v1251
        %3169 = vmatpush1.msra.mxu0 %v1250
        %3170 = vmatprep.subr.mxu0 %v1254
        %3171 = vmatpush1.msra.mxu0 %v1253
        %3172 = vmatprep.subr.mxu0 %v1257
        %3173 = vmatpush1.msra.mxu0 %v1256
        %3174 = vmatprep.subr.mxu0 %v1260
        %3175 = vmatpush1.msra.mxu0 %v1259
        %3176 = vmatprep.subr.mxu0 %v1263
        %3177 = vmatpush1.msra.mxu0 %v1262
        %3178 = vmatprep.subr.mxu0 %v1266
        %3179 = vmatpush1.msra.mxu0 %v1265
        %3180 = vmatprep.subr.mxu0 %v1269
        %3181 = vmatpush1.msra.mxu0 %v1268
        %3182 = vmatprep.subr.mxu0 %v1272
        %3183 = vmatpush1.msra.mxu0 %v1271
        %3184 = vmatprep.subr.mxu0 %v1275
        %3185 = vmatpush1.msra.mxu0 %v1274
        %3186 = vmatprep.subr.mxu0 %v1278
        %3187 = vmatpush1.msra.mxu0 %v1277
        %3188 = vmatprep.subr.mxu0 %v1281
        %3189 = vmatpush1.msra.mxu0 %v1280
        %3190 = vmatprep.subr.mxu0 %v1284
        %3191 = vmatpush1.msra.mxu0 %v1283
        %3192 = vmatprep.subr.mxu0 %v1287
        %3193 = vmatpush1.msra.mxu0 %v1286
        %3194 = vmatprep.subr.mxu0 %v1290
        %3195 = vmatpush1.msra.mxu0 %v1289
        %3196 = vmatprep.subr.mxu0 0.0
        %3197 = vmatpush1.msra.mxu0 0.0
        %3198 = vmatprep.subr.mxu0 0.0
        %3199 = vmatpush1.msra.mxu0 0.0
        %3200 = vmatprep.subr.mxu0 0.0
        %3201 = vmatpush1.msra.mxu0 0.0
        %3202 = vmatprep.subr.mxu0 0.0
        %3203 = vmatpush1.msra.mxu0 0.0
        %3204 = vmatprep.subr.mxu0 0.0
        %3205 = vmatpush1.msra.mxu0 0.0
        %3206 = vmatprep.subr.mxu0 0.0
        %3207 = vmatpush1.msra.mxu0 0.0
        %3208 = vmatprep.subr.mxu0 0.0
        %3209 = vmatpush1.msra.mxu0 0.0
        %3210 = vmatprep.subr.mxu0 0.0
        %3211 = vmatpush1.msra.mxu0 0.0
        %3212 = vmatprep.subr.mxu0 0.0
        %3213 = vmatpush1.msra.mxu0 0.0
        %3214 = vmatprep.subr.mxu0 0.0
        %3215 = vmatpush1.msra.mxu0 0.0
        %3216 = vmatprep.subr.mxu0 0.0
        %3217 = vmatpush1.msra.mxu0 0.0
        %3218 = vmatprep.subr.mxu0 0.0
        %3219 = vmatpush1.msra.mxu0 0.0
        %3220 = vmatprep.subr.mxu0 0.0
        %3221 = vmatpush1.msra.mxu0 0.0
        %3222 = vmatprep.subr.mxu0 0.0
        %3223 = vmatpush1.msra.mxu0 0.0
        %3224 = vmatprep.subr.mxu0 0.0
        %3225 = vmatpush1.msra.mxu0 0.0
        %3226 = vmatprep.subr.mxu0 0.0
        %3227 = vmatpush1.msra.mxu0 0.0
        %3228 = vmatprep.mubr.f32.mxu0 0.0
        %3229 = vmatmul.mubr.f32.gmra.mrb[0].mxu0 %v2977
        %v3230 = vpop.f32.mrb[0].mxu0
        %v3231 = vadd.f32 0.0, %v3230
        %v3232 = vpop.f32.mrb[0].mxu0
        %v3233 = vadd.f32 0.0, %v3232
        %3234 = vdwg.mxu0
        %3235 = vmatprep.subr.mxu0 0.0
        %3236 = vmatpush1.msra.mxu0 %v1246
        %3237 = vmatprep.subr.mxu0 0.0
        %3238 = vmatpush1.msra.mxu0 %v1249
        %3239 = vmatprep.subr.mxu0 0.0
        %3240 = vmatpush1.msra.mxu0 %v1252
        %3241 = vmatprep.subr.mxu0 0.0
        %3242 = vmatpush1.msra.mxu0 %v1255
        %3243 = vmatprep.subr.mxu0 0.0
        %3244 = vmatpush1.msra.mxu0 %v1258
        %3245 = vmatprep.subr.mxu0 0.0
        %3246 = vmatpush1.msra.mxu0 %v1261
        %3247 = vmatprep.subr.mxu0 0.0
        %3248 = vmatpush1.msra.mxu0 %v1264
        %3249 = vmatprep.subr.mxu0 0.0
        %3250 = vmatpush1.msra.mxu0 %v1267
        %3251 = vmatprep.subr.mxu0 0.0
        %3252 = vmatpush1.msra.mxu0 %v1270
        %3253 = vmatprep.subr.mxu0 0.0
        %3254 = vmatpush1.msra.mxu0 %v1273
        %3255 = vmatprep.subr.mxu0 0.0
        %3256 = vmatpush1.msra.mxu0 %v1276
        %3257 = vmatprep.subr.mxu0 0.0
        %3258 = vmatpush1.msra.mxu0 %v1279
        %3259 = vmatprep.subr.mxu0 0.0
        %3260 = vmatpush1.msra.mxu0 %v1282
        %3261 = vmatprep.subr.mxu0 0.0
        %3262 = vmatpush1.msra.mxu0 %v1285
        %3263 = vmatprep.subr.mxu0 0.0
        %3264 = vmatpush1.msra.mxu0 %v1288
        %3265 = vmatprep.subr.mxu0 0.0
        %3266 = vmatpush1.msra.mxu0 %v1291
        %3267 = vmatprep.subr.mxu0 0.0
        %3268 = vmatpush1.msra.mxu0 0.0
        %3269 = vmatprep.subr.mxu0 0.0
        %3270 = vmatpush1.msra.mxu0 0.0
        %3271 = vmatprep.subr.mxu0 0.0
        %3272 = vmatpush1.msra.mxu0 0.0
        %3273 = vmatprep.subr.mxu0 0.0
        %3274 = vmatpush1.msra.mxu0 0.0
        %3275 = vmatprep.subr.mxu0 0.0
        %3276 = vmatpush1.msra.mxu0 0.0
        %3277 = vmatprep.subr.mxu0 0.0
        %3278 = vmatpush1.msra.mxu0 0.0
        %3279 = vmatprep.subr.mxu0 0.0
        %3280 = vmatpush1.msra.mxu0 0.0
        %3281 = vmatprep.subr.mxu0 0.0
        %3282 = vmatpush1.msra.mxu0 0.0
        %3283 = vmatprep.subr.mxu0 0.0
        %3284 = vmatpush1.msra.mxu0 0.0
        %3285 = vmatprep.subr.mxu0 0.0
        %3286 = vmatpush1.msra.mxu0 0.0
        %3287 = vmatprep.subr.mxu0 0.0
        %3288 = vmatpush1.msra.mxu0 0.0
        %3289 = vmatprep.subr.mxu0 0.0
        %3290 = vmatpush1.msra.mxu0 0.0
        %3291 = vmatprep.subr.mxu0 0.0
        %3292 = vmatpush1.msra.mxu0 0.0
        %3293 = vmatprep.subr.mxu0 0.0
        %3294 = vmatpush1.msra.mxu0 0.0
        %3295 = vmatprep.subr.mxu0 0.0
        %3296 = vmatpush1.msra.mxu0 0.0
        %3297 = vmatprep.subr.mxu0 0.0
        %3298 = vmatpush1.msra.mxu0 0.0
        %3299 = vmatprep.mubr.f32.mxu0 0.0
        %3300 = vmatmul.mubr.f32.gmra.mrb[0].mxu0 %v2977
        %v3301 = vpop.f32.mrb[0].mxu0
        %v3302 = vadd.f32 0.0, %v3301
        %v3303 = vpop.f32.mrb[0].mxu0
        %3304 = vdwg.mxu0
        %v3305 = vadd.f32 %v3161, %v3231
        %v3306 = vadd.f32 %v3162, %v3233
        %v3307 = vxor.u32 %v3305, 2147483648
        %v3308 = vxor.u32 %v3306, 2147483648
        %v3309 = vmul.f32 %v3307, 1.442695
        %v3310 = vpow.pop %v3309
        %v3311 = vmul.f32 %v3308, 1.442695
        %v3312 = vpow.pop %v3311
        %v3313 = vadd.f32 %v3310, 1.0
        %v3314 = vadd.f32 %v3312, 1.0
        %v3315 = vrcp.pop %v3313
        %v3316 = vmul.f32 1.0, %v3315
        %v3317 = vrcp.pop %v3314
        %v3318 = vmul.f32 1.0, %v3317
        %v3319 = vadd.f32 %v3302, %v1345
        %v3320 = vmul.f32 %v3316, %v3319
        %v3321 = vadd.f32 %v3163, %v3320
        %v3322 = vtanh.pop %v3321
        %v3323 = vsub.f32 1.0, %v3318
        %v3324 = vmul.f32 %v3323, %v3322
        %v3325 = vmul.f32 %v3318, %v2977
        %v3326 = vadd.f32 %v3324, %v3325
        %s3327 = sadd.s32 %s1355, 5
        %v3328 = vstv %s3327
        %vm3329 = vcmp.lt.s32.totalorder %v3328, %v1354
        %v3330 = vsel %vm3329, 1, 0
        %3331 = vset.pattern.permute.xlu0 0
        %3332 = vperm.xlu0 %3331, %v3330
        %v3333 = vpop.permute.xlu0 %3332
        %vm3334 = vcmp.eq.s32.totalorder %v3333, 1
        %v3335 = vsel %vm3334, %v3326, %v2977
        %v3336 = vsel %vm3334, %v3326, 0.0
        %v3337 = vadd.f32 %v2979, %v3336
        %s3338 = smul.addr %s2081, 8
        %s3339 = scalar_lea.vmem [#allocation3], %s3338
        %v3340 = vld [vmem:[%s3339] sm:$0xff]
        %v3341 = vld [vmem:[%s3339 + $0x8] sm:$0xff]
        %v3342 = vld [vmem:[%s3339 + $0x10] sm:$0xff]
        %3343 = vmatprep.subr.mxu0 %v1293
        %3344 = vmatpush1.msra.mxu0 %v1292
        %3345 = vmatprep.subr.mxu0 %v1296
        %3346 = vmatpush1.msra.mxu0 %v1295
        %3347 = vmatprep.subr.mxu0 %v1299
        %3348 = vmatpush1.msra.mxu0 %v1298
        %3349 = vmatprep.subr.mxu0 %v1302
        %3350 = vmatpush1.msra.mxu0 %v1301
        %3351 = vmatprep.subr.mxu0 %v1305
        %3352 = vmatpush1.msra.mxu0 %v1304
        %3353 = vmatprep.subr.mxu0 %v1308
        %3354 = vmatpush1.msra.mxu0 %v1307
        %3355 = vmatprep.subr.mxu0 %v1311
        %3356 = vmatpush1.msra.mxu0 %v1310
        %3357 = vmatprep.subr.mxu0 %v1314
        %3358 = vmatpush1.msra.mxu0 %v1313
        %3359 = vmatprep.subr.mxu0 %v1317
        %3360 = vmatpush1.msra.mxu0 %v1316
        %3361 = vmatprep.subr.mxu0 %v1320
        %3362 = vmatpush1.msra.mxu0 %v1319
        %3363 = vmatprep.subr.mxu0 %v1323
        %3364 = vmatpush1.msra.mxu0 %v1322
        %3365 = vmatprep.subr.mxu0 %v1326
        %3366 = vmatpush1.msra.mxu0 %v1325
        %3367 = vmatprep.subr.mxu0 %v1329
        %3368 = vmatpush1.msra.mxu0 %v1328
        %3369 = vmatprep.subr.mxu0 %v1332
        %3370 = vmatpush1.msra.mxu0 %v1331
        %3371 = vmatprep.subr.mxu0 %v1335
        %3372 = vmatpush1.msra.mxu0 %v1334
        %3373 = vmatprep.subr.mxu0 %v1338
        %3374 = vmatpush1.msra.mxu0 %v1337
        %3375 = vmatprep.subr.mxu0 0.0
        %3376 = vmatpush1.msra.mxu0 0.0
        %3377 = vmatprep.subr.mxu0 0.0
        %3378 = vmatpush1.msra.mxu0 0.0
        %3379 = vmatprep.subr.mxu0 0.0
        %3380 = vmatpush1.msra.mxu0 0.0
        %3381 = vmatprep.subr.mxu0 0.0
        %3382 = vmatpush1.msra.mxu0 0.0
        %3383 = vmatprep.subr.mxu0 0.0
        %3384 = vmatpush1.msra.mxu0 0.0
        %3385 = vmatprep.subr.mxu0 0.0
        %3386 = vmatpush1.msra.mxu0 0.0
        %3387 = vmatprep.subr.mxu0 0.0
        %3388 = vmatpush1.msra.mxu0 0.0
        %3389 = vmatprep.subr.mxu0 0.0
        %3390 = vmatpush1.msra.mxu0 0.0
        %3391 = vmatprep.subr.mxu0 0.0
        %3392 = vmatpush1.msra.mxu0 0.0
        %3393 = vmatprep.subr.mxu0 0.0
        %3394 = vmatpush1.msra.mxu0 0.0
        %3395 = vmatprep.subr.mxu0 0.0
        %3396 = vmatpush1.msra.mxu0 0.0
        %3397 = vmatprep.subr.mxu0 0.0
        %3398 = vmatpush1.msra.mxu0 0.0
        %3399 = vmatprep.subr.mxu0 0.0
        %3400 = vmatpush1.msra.mxu0 0.0
        %3401 = vmatprep.subr.mxu0 0.0
        %3402 = vmatpush1.msra.mxu0 0.0
        %3403 = vmatprep.subr.mxu0 0.0
        %3404 = vmatpush1.msra.mxu0 0.0
        %3405 = vmatprep.subr.mxu0 0.0
        %3406 = vmatpush1.msra.mxu0 0.0
        %3407 = vmatprep.mubr.f32.mxu0 0.0
        %3408 = vmatmul.mubr.f32.gmra.mrb[0].mxu0 %v3156
        %v3409 = vpop.f32.mrb[0].mxu0
        %v3410 = vadd.f32 0.0, %v3409
        %v3411 = vpop.f32.mrb[0].mxu0
        %v3412 = vadd.f32 0.0, %v3411
        %3413 = vdwg.mxu0
        %3414 = vmatprep.subr.mxu0 0.0
        %3415 = vmatpush1.msra.mxu0 %v1294
        %3416 = vmatprep.subr.mxu0 0.0
        %3417 = vmatpush1.msra.mxu0 %v1297
        %3418 = vmatprep.subr.mxu0 0.0
        %3419 = vmatpush1.msra.mxu0 %v1300
        %3420 = vmatprep.subr.mxu0 0.0
        %3421 = vmatpush1.msra.mxu0 %v1303
        %3422 = vmatprep.subr.mxu0 0.0
        %3423 = vmatpush1.msra.mxu0 %v1306
        %3424 = vmatprep.subr.mxu0 0.0
        %3425 = vmatpush1.msra.mxu0 %v1309
        %3426 = vmatprep.subr.mxu0 0.0
        %3427 = vmatpush1.msra.mxu0 %v1312
        %3428 = vmatprep.subr.mxu0 0.0
        %3429 = vmatpush1.msra.mxu0 %v1315
        %3430 = vmatprep.subr.mxu0 0.0
        %3431 = vmatpush1.msra.mxu0 %v1318
        %3432 = vmatprep.subr.mxu0 0.0
        %3433 = vmatpush1.msra.mxu0 %v1321
        %3434 = vmatprep.subr.mxu0 0.0
        %3435 = vmatpush1.msra.mxu0 %v1324
        %3436 = vmatprep.subr.mxu0 0.0
        %3437 = vmatpush1.msra.mxu0 %v1327
        %3438 = vmatprep.subr.mxu0 0.0
        %3439 = vmatpush1.msra.mxu0 %v1330
        %3440 = vmatprep.subr.mxu0 0.0
        %3441 = vmatpush1.msra.mxu0 %v1333
        %3442 = vmatprep.subr.mxu0 0.0
        %3443 = vmatpush1.msra.mxu0 %v1336
        %3444 = vmatprep.subr.mxu0 0.0
        %3445 = vmatpush1.msra.mxu0 %v1339
        %3446 = vmatprep.subr.mxu0 0.0
        %3447 = vmatpush1.msra.mxu0 0.0
        %3448 = vmatprep.subr.mxu0 0.0
        %3449 = vmatpush1.msra.mxu0 0.0
        %3450 = vmatprep.subr.mxu0 0.0
        %3451 = vmatpush1.msra.mxu0 0.0
        %3452 = vmatprep.subr.mxu0 0.0
        %3453 = vmatpush1.msra.mxu0 0.0
        %3454 = vmatprep.subr.mxu0 0.0
        %3455 = vmatpush1.msra.mxu0 0.0
        %3456 = vmatprep.subr.mxu0 0.0
        %3457 = vmatpush1.msra.mxu0 0.0
        %3458 = vmatprep.subr.mxu0 0.0
        %3459 = vmatpush1.msra.mxu0 0.0
        %3460 = vmatprep.subr.mxu0 0.0
        %3461 = vmatpush1.msra.mxu0 0.0
        %3462 = vmatprep.subr.mxu0 0.0
        %3463 = vmatpush1.msra.mxu0 0.0
        %3464 = vmatprep.subr.mxu0 0.0
        %3465 = vmatpush1.msra.mxu0 0.0
        %3466 = vmatprep.subr.mxu0 0.0
        %3467 = vmatpush1.msra.mxu0 0.0
        %3468 = vmatprep.subr.mxu0 0.0
        %3469 = vmatpush1.msra.mxu0 0.0
        %3470 = vmatprep.subr.mxu0 0.0
        %3471 = vmatpush1.msra.mxu0 0.0
        %3472 = vmatprep.subr.mxu0 0.0
        %3473 = vmatpush1.msra.mxu0 0.0
        %3474 = vmatprep.subr.mxu0 0.0
        %3475 = vmatpush1.msra.mxu0 0.0
        %3476 = vmatprep.subr.mxu0 0.0
        %3477 = vmatpush1.msra.mxu0 0.0
        %3478 = vmatprep.mubr.f32.mxu0 0.0
        %3479 = vmatmul.mubr.f32.gmra.mrb[0].mxu0 %v3156
        %v3480 = vpop.f32.mrb[0].mxu0
        %v3481 = vadd.f32 0.0, %v3480
        %v3482 = vpop.f32.mrb[0].mxu0
        %3483 = vdwg.mxu0
        %v3484 = vadd.f32 %v3340, %v3410
        %v3485 = vadd.f32 %v3341, %v3412
        %v3486 = vxor.u32 %v3484, 2147483648
        %v3487 = vxor.u32 %v3485, 2147483648
        %v3488 = vmul.f32 %v3486, 1.442695
        %v3489 = vpow.pop %v3488
        %v3490 = vmul.f32 %v3487, 1.442695
        %v3491 = vpow.pop %v3490
        %v3492 = vadd.f32 %v3489, 1.0
        %v3493 = vadd.f32 %v3491, 1.0
        %v3494 = vrcp.pop %v3492
        %v3495 = vmul.f32 1.0, %v3494
        %v3496 = vrcp.pop %v3493
        %v3497 = vmul.f32 1.0, %v3496
        %v3498 = vadd.f32 %v3481, %v1352
        %v3499 = vmul.f32 %v3495, %v3498
        %v3500 = vadd.f32 %v3342, %v3499
        %v3501 = vtanh.pop %v3500
        %v3502 = vsub.f32 1.0, %v3497
        %v3503 = vmul.f32 %v3502, %v3501
        %v3504 = vmul.f32 %v3497, %v3156
        %v3505 = vadd.f32 %v3503, %v3504
        %s3506 = sadd.s32 %s1357, 2
        %v3507 = vstv %s3506
        %vm3508 = vcmp.lt.s32.totalorder %v3507, %v1354
        %v3509 = vsel %vm3508, 1, 0
        %3510 = vset.pattern.permute.xlu0 0
        %3511 = vperm.xlu0 %3510, %v3509
        %v3512 = vpop.permute.xlu0 %3511
        %vm3513 = vcmp.eq.s32.totalorder %v3512, 1
        %v3514 = vsel %vm3513, %v3505, %v3156
        %v3515 = vsel %vm3513, %v3505, 0.0
        %v3516 = vadd.f32 %v3158, %v3515
        %s3517 = smul.addr %s1901, 8
        %s3518 = scalar_lea.vmem [#allocation2], %s3517
        %v3519 = vld [vmem:[%s3518] sm:$0xff]
        %v3520 = vld [vmem:[%s3518 + $0x8] sm:$0xff]
        %v3521 = vld [vmem:[%s3518 + $0x10] sm:$0xff]
        %3522 = vmatprep.subr.mxu0 %v1245
        %3523 = vmatpush1.msra.mxu0 %v1244
        %3524 = vmatprep.subr.mxu0 %v1248
        %3525 = vmatpush1.msra.mxu0 %v1247
        %3526 = vmatprep.subr.mxu0 %v1251
        %3527 = vmatpush1.msra.mxu0 %v1250
        %3528 = vmatprep.subr.mxu0 %v1254
        %3529 = vmatpush1.msra.mxu0 %v1253
        %3530 = vmatprep.subr.mxu0 %v1257
        %3531 = vmatpush1.msra.mxu0 %v1256
        %3532 = vmatprep.subr.mxu0 %v1260
        %3533 = vmatpush1.msra.mxu0 %v1259
        %3534 = vmatprep.subr.mxu0 %v1263
        %3535 = vmatpush1.msra.mxu0 %v1262
        %3536 = vmatprep.subr.mxu0 %v1266
        %3537 = vmatpush1.msra.mxu0 %v1265
        %3538 = vmatprep.subr.mxu0 %v1269
        %3539 = vmatpush1.msra.mxu0 %v1268
        %3540 = vmatprep.subr.mxu0 %v1272
        %3541 = vmatpush1.msra.mxu0 %v1271
        %3542 = vmatprep.subr.mxu0 %v1275
        %3543 = vmatpush1.msra.mxu0 %v1274
        %3544 = vmatprep.subr.mxu0 %v1278
        %3545 = vmatpush1.msra.mxu0 %v1277
        %3546 = vmatprep.subr.mxu0 %v1281
        %3547 = vmatpush1.msra.mxu0 %v1280
        %3548 = vmatprep.subr.mxu0 %v1284
        %3549 = vmatpush1.msra.mxu0 %v1283
        %3550 = vmatprep.subr.mxu0 %v1287
        %3551 = vmatpush1.msra.mxu0 %v1286
        %3552 = vmatprep.subr.mxu0 %v1290
        %3553 = vmatpush1.msra.mxu0 %v1289
        %3554 = vmatprep.subr.mxu0 0.0
        %3555 = vmatpush1.msra.mxu0 0.0
        %3556 = vmatprep.subr.mxu0 0.0
        %3557 = vmatpush1.msra.mxu0 0.0
        %3558 = vmatprep.subr.mxu0 0.0
        %3559 = vmatpush1.msra.mxu0 0.0
        %3560 = vmatprep.subr.mxu0 0.0
        %3561 = vmatpush1.msra.mxu0 0.0
        %3562 = vmatprep.subr.mxu0 0.0
        %3563 = vmatpush1.msra.mxu0 0.0
        %3564 = vmatprep.subr.mxu0 0.0
        %3565 = vmatpush1.msra.mxu0 0.0
        %3566 = vmatprep.subr.mxu0 0.0
        %3567 = vmatpush1.msra.mxu0 0.0
        %3568 = vmatprep.subr.mxu0 0.0
        %3569 = vmatpush1.msra.mxu0 0.0
        %3570 = vmatprep.subr.mxu0 0.0
        %3571 = vmatpush1.msra.mxu0 0.0
        %3572 = vmatprep.subr.mxu0 0.0
        %3573 = vmatpush1.msra.mxu0 0.0
        %3574 = vmatprep.subr.mxu0 0.0
        %3575 = vmatpush1.msra.mxu0 0.0
        %3576 = vmatprep.subr.mxu0 0.0
        %3577 = vmatpush1.msra.mxu0 0.0
        %3578 = vmatprep.subr.mxu0 0.0
        %3579 = vmatpush1.msra.mxu0 0.0
        %3580 = vmatprep.subr.mxu0 0.0
        %3581 = vmatpush1.msra.mxu0 0.0
        %3582 = vmatprep.subr.mxu0 0.0
        %3583 = vmatpush1.msra.mxu0 0.0
        %3584 = vmatprep.subr.mxu0 0.0
        %3585 = vmatpush1.msra.mxu0 0.0
        %3586 = vmatprep.mubr.f32.mxu0 0.0
        %3587 = vmatmul.mubr.f32.gmra.mrb[0].mxu0 %v3335
        %v3588 = vpop.f32.mrb[0].mxu0
        %v3589 = vadd.f32 0.0, %v3588
        %v3590 = vpop.f32.mrb[0].mxu0
        %v3591 = vadd.f32 0.0, %v3590
        %3592 = vdwg.mxu0
        %3593 = vmatprep.subr.mxu0 0.0
        %3594 = vmatpush1.msra.mxu0 %v1246
        %3595 = vmatprep.subr.mxu0 0.0
        %3596 = vmatpush1.msra.mxu0 %v1249
        %3597 = vmatprep.subr.mxu0 0.0
        %3598 = vmatpush1.msra.mxu0 %v1252
        %3599 = vmatprep.subr.mxu0 0.0
        %3600 = vmatpush1.msra.mxu0 %v1255
        %3601 = vmatprep.subr.mxu0 0.0
        %3602 = vmatpush1.msra.mxu0 %v1258
        %3603 = vmatprep.subr.mxu0 0.0
        %3604 = vmatpush1.msra.mxu0 %v1261
        %3605 = vmatprep.subr.mxu0 0.0
        %3606 = vmatpush1.msra.mxu0 %v1264
        %3607 = vmatprep.subr.mxu0 0.0
        %3608 = vmatpush1.msra.mxu0 %v1267
        %3609 = vmatprep.subr.mxu0 0.0
        %3610 = vmatpush1.msra.mxu0 %v1270
        %3611 = vmatprep.subr.mxu0 0.0
        %3612 = vmatpush1.msra.mxu0 %v1273
        %3613 = vmatprep.subr.mxu0 0.0
        %3614 = vmatpush1.msra.mxu0 %v1276
        %3615 = vmatprep.subr.mxu0 0.0
        %3616 = vmatpush1.msra.mxu0 %v1279
        %3617 = vmatprep.subr.mxu0 0.0
        %3618 = vmatpush1.msra.mxu0 %v1282
        %3619 = vmatprep.subr.mxu0 0.0
        %3620 = vmatpush1.msra.mxu0 %v1285
        %3621 = vmatprep.subr.mxu0 0.0
        %3622 = vmatpush1.msra.mxu0 %v1288
        %3623 = vmatprep.subr.mxu0 0.0
        %3624 = vmatpush1.msra.mxu0 %v1291
        %3625 = vmatprep.subr.mxu0 0.0
        %3626 = vmatpush1.msra.mxu0 0.0
        %3627 = vmatprep.subr.mxu0 0.0
        %3628 = vmatpush1.msra.mxu0 0.0
        %3629 = vmatprep.subr.mxu0 0.0
        %3630 = vmatpush1.msra.mxu0 0.0
        %3631 = vmatprep.subr.mxu0 0.0
        %3632 = vmatpush1.msra.mxu0 0.0
        %3633 = vmatprep.subr.mxu0 0.0
        %3634 = vmatpush1.msra.mxu0 0.0
        %3635 = vmatprep.subr.mxu0 0.0
        %3636 = vmatpush1.msra.mxu0 0.0
        %3637 = vmatprep.subr.mxu0 0.0
        %3638 = vmatpush1.msra.mxu0 0.0
        %3639 = vmatprep.subr.mxu0 0.0
        %3640 = vmatpush1.msra.mxu0 0.0
        %3641 = vmatprep.subr.mxu0 0.0
        %3642 = vmatpush1.msra.mxu0 0.0
        %3643 = vmatprep.subr.mxu0 0.0
        %3644 = vmatpush1.msra.mxu0 0.0
        %3645 = vmatprep.subr.mxu0 0.0
        %3646 = vmatpush1.msra.mxu0 0.0
        %3647 = vmatprep.subr.mxu0 0.0
        %3648 = vmatpush1.msra.mxu0 0.0
        %3649 = vmatprep.subr.mxu0 0.0
        %3650 = vmatpush1.msra.mxu0 0.0
        %3651 = vmatprep.subr.mxu0 0.0
        %3652 = vmatpush1.msra.mxu0 0.0
        %3653 = vmatprep.subr.mxu0 0.0
        %3654 = vmatpush1.msra.mxu0 0.0
        %3655 = vmatprep.subr.mxu0 0.0
        %3656 = vmatpush1.msra.mxu0 0.0
        %3657 = vmatprep.mubr.f32.mxu0 0.0
        %3658 = vmatmul.mubr.f32.gmra.mrb[0].mxu0 %v3335
        %v3659 = vpop.f32.mrb[0].mxu0
        %v3660 = vadd.f32 0.0, %v3659
        %v3661 = vpop.f32.mrb[0].mxu0
        %3662 = vdwg.mxu0
        %v3663 = vadd.f32 %v3519, %v3589
        %v3664 = vadd.f32 %v3520, %v3591
        %v3665 = vxor.u32 %v3663, 2147483648
        %v3666 = vxor.u32 %v3664, 2147483648
        %v3667 = vmul.f32 %v3665, 1.442695
        %v3668 = vpow.pop %v3667
        %v3669 = vmul.f32 %v3666, 1.442695
        %v3670 = vpow.pop %v3669
        %v3671 = vadd.f32 %v3668, 1.0
        %v3672 = vadd.f32 %v3670, 1.0
        %v3673 = vrcp.pop %v3671
        %v3674 = vmul.f32 1.0, %v3673
        %v3675 = vrcp.pop %v3672
        %v3676 = vmul.f32 1.0, %v3675
        %v3677 = vadd.f32 %v3660, %v1345
        %v3678 = vmul.f32 %v3674, %v3677
        %v3679 = vadd.f32 %v3521, %v3678
        %v3680 = vtanh.pop %v3679
        %v3681 = vsub.f32 1.0, %v3676
        %v3682 = vmul.f32 %v3681, %v3680
        %v3683 = vmul.f32 %v3676, %v3335
        %v3684 = vadd.f32 %v3682, %v3683
        %s3685 = sadd.s32 %s1355, 6
        %v3686 = vstv %s3685
        %vm3687 = vcmp.lt.s32.totalorder %v3686, %v1354
        %v3688 = vsel %vm3687, 1, 0
        %3689 = vset.pattern.permute.xlu0 0
        %3690 = vperm.xlu0 %3689, %v3688
        %v3691 = vpop.permute.xlu0 %3690
        %vm3692 = vcmp.eq.s32.totalorder %v3691, 1
        %v3693 = vsel %vm3692, %v3684, %v3335
        %v3694 = vsel %vm3692, %v3684, 0.0
        %v3695 = vadd.f32 %v3337, %v3694
        %s3696 = smul.addr %s1721, 8
        %s3697 = scalar_lea.vmem [#allocation3], %s3696
        %v3698 = vld [vmem:[%s3697] sm:$0xff]
        %v3699 = vld [vmem:[%s3697 + $0x8] sm:$0xff]
        %v3700 = vld [vmem:[%s3697 + $0x10] sm:$0xff]
        %3701 = vmatprep.subr.mxu0 %v1293
        %3702 = vmatpush1.msra.mxu0 %v1292
        %3703 = vmatprep.subr.mxu0 %v1296
        %3704 = vmatpush1.msra.mxu0 %v1295
        %3705 = vmatprep.subr.mxu0 %v1299
        %3706 = vmatpush1.msra.mxu0 %v1298
        %3707 = vmatprep.subr.mxu0 %v1302
        %3708 = vmatpush1.msra.mxu0 %v1301
        %3709 = vmatprep.subr.mxu0 %v1305
        %3710 = vmatpush1.msra.mxu0 %v1304
        %3711 = vmatprep.subr.mxu0 %v1308
        %3712 = vmatpush1.msra.mxu0 %v1307
        %3713 = vmatprep.subr.mxu0 %v1311
        %3714 = vmatpush1.msra.mxu0 %v1310
        %3715 = vmatprep.subr.mxu0 %v1314
        %3716 = vmatpush1.msra.mxu0 %v1313
        %3717 = vmatprep.subr.mxu0 %v1317
        %3718 = vmatpush1.msra.mxu0 %v1316
        %3719 = vmatprep.subr.mxu0 %v1320
        %3720 = vmatpush1.msra.mxu0 %v1319
        %3721 = vmatprep.subr.mxu0 %v1323
        %3722 = vmatpush1.msra.mxu0 %v1322
        %3723 = vmatprep.subr.mxu0 %v1326
        %3724 = vmatpush1.msra.mxu0 %v1325
        %3725 = vmatprep.subr.mxu0 %v1329
        %3726 = vmatpush1.msra.mxu0 %v1328
        %3727 = vmatprep.subr.mxu0 %v1332
        %3728 = vmatpush1.msra.mxu0 %v1331
        %3729 = vmatprep.subr.mxu0 %v1335
        %3730 = vmatpush1.msra.mxu0 %v1334
        %3731 = vmatprep.subr.mxu0 %v1338
        %3732 = vmatpush1.msra.mxu0 %v1337
        %3733 = vmatprep.subr.mxu0 0.0
        %3734 = vmatpush1.msra.mxu0 0.0
        %3735 = vmatprep.subr.mxu0 0.0
        %3736 = vmatpush1.msra.mxu0 0.0
        %3737 = vmatprep.subr.mxu0 0.0
        %3738 = vmatpush1.msra.mxu0 0.0
        %3739 = vmatprep.subr.mxu0 0.0
        %3740 = vmatpush1.msra.mxu0 0.0
        %3741 = vmatprep.subr.mxu0 0.0
        %3742 = vmatpush1.msra.mxu0 0.0
        %3743 = vmatprep.subr.mxu0 0.0
        %3744 = vmatpush1.msra.mxu0 0.0
        %3745 = vmatprep.subr.mxu0 0.0
        %3746 = vmatpush1.msra.mxu0 0.0
        %3747 = vmatprep.subr.mxu0 0.0
        %3748 = vmatpush1.msra.mxu0 0.0
        %3749 = vmatprep.subr.mxu0 0.0
        %3750 = vmatpush1.msra.mxu0 0.0
        %3751 = vmatprep.subr.mxu0 0.0
        %3752 = vmatpush1.msra.mxu0 0.0
        %3753 = vmatprep.subr.mxu0 0.0
        %3754 = vmatpush1.msra.mxu0 0.0
        %3755 = vmatprep.subr.mxu0 0.0
        %3756 = vmatpush1.msra.mxu0 0.0
        %3757 = vmatprep.subr.mxu0 0.0
        %3758 = vmatpush1.msra.mxu0 0.0
        %3759 = vmatprep.subr.mxu0 0.0
        %3760 = vmatpush1.msra.mxu0 0.0
        %3761 = vmatprep.subr.mxu0 0.0
        %3762 = vmatpush1.msra.mxu0 0.0
        %3763 = vmatprep.subr.mxu0 0.0
        %3764 = vmatpush1.msra.mxu0 0.0
        %3765 = vmatprep.mubr.f32.mxu0 0.0
        %3766 = vmatmul.mubr.f32.gmra.mrb[0].mxu0 %v3514
        %v3767 = vpop.f32.mrb[0].mxu0
        %v3768 = vadd.f32 0.0, %v3767
        %v3769 = vpop.f32.mrb[0].mxu0
        %v3770 = vadd.f32 0.0, %v3769
        %3771 = vdwg.mxu0
        %3772 = vmatprep.subr.mxu0 0.0
        %3773 = vmatpush1.msra.mxu0 %v1294
        %3774 = vmatprep.subr.mxu0 0.0
        %3775 = vmatpush1.msra.mxu0 %v1297
        %3776 = vmatprep.subr.mxu0 0.0
        %3777 = vmatpush1.msra.mxu0 %v1300
        %3778 = vmatprep.subr.mxu0 0.0
        %3779 = vmatpush1.msra.mxu0 %v1303
        %3780 = vmatprep.subr.mxu0 0.0
        %3781 = vmatpush1.msra.mxu0 %v1306
        %3782 = vmatprep.subr.mxu0 0.0
        %3783 = vmatpush1.msra.mxu0 %v1309
        %3784 = vmatprep.subr.mxu0 0.0
        %3785 = vmatpush1.msra.mxu0 %v1312
        %3786 = vmatprep.subr.mxu0 0.0
        %3787 = vmatpush1.msra.mxu0 %v1315
        %3788 = vmatprep.subr.mxu0 0.0
        %3789 = vmatpush1.msra.mxu0 %v1318
        %3790 = vmatprep.subr.mxu0 0.0
        %3791 = vmatpush1.msra.mxu0 %v1321
        %3792 = vmatprep.subr.mxu0 0.0
        %3793 = vmatpush1.msra.mxu0 %v1324
        %3794 = vmatprep.subr.mxu0 0.0
        %3795 = vmatpush1.msra.mxu0 %v1327
        %3796 = vmatprep.subr.mxu0 0.0
        %3797 = vmatpush1.msra.mxu0 %v1330
        %3798 = vmatprep.subr.mxu0 0.0
        %3799 = vmatpush1.msra.mxu0 %v1333
        %3800 = vmatprep.subr.mxu0 0.0
        %3801 = vmatpush1.msra.mxu0 %v1336
        %3802 = vmatprep.subr.mxu0 0.0
        %3803 = vmatpush1.msra.mxu0 %v1339
        %3804 = vmatprep.subr.mxu0 0.0
        %3805 = vmatpush1.msra.mxu0 0.0
        %3806 = vmatprep.subr.mxu0 0.0
        %3807 = vmatpush1.msra.mxu0 0.0
        %3808 = vmatprep.subr.mxu0 0.0
        %3809 = vmatpush1.msra.mxu0 0.0
        %3810 = vmatprep.subr.mxu0 0.0
        %3811 = vmatpush1.msra.mxu0 0.0
        %3812 = vmatprep.subr.mxu0 0.0
        %3813 = vmatpush1.msra.mxu0 0.0
        %3814 = vmatprep.subr.mxu0 0.0
        %3815 = vmatpush1.msra.mxu0 0.0
        %3816 = vmatprep.subr.mxu0 0.0
        %3817 = vmatpush1.msra.mxu0 0.0
        %3818 = vmatprep.subr.mxu0 0.0
        %3819 = vmatpush1.msra.mxu0 0.0
        %3820 = vmatprep.subr.mxu0 0.0
        %3821 = vmatpush1.msra.mxu0 0.0
        %3822 = vmatprep.subr.mxu0 0.0
        %3823 = vmatpush1.msra.mxu0 0.0
        %3824 = vmatprep.subr.mxu0 0.0
        %3825 = vmatpush1.msra.mxu0 0.0
        %3826 = vmatprep.subr.mxu0 0.0
        %3827 = vmatpush1.msra.mxu0 0.0
        %3828 = vmatprep.subr.mxu0 0.0
        %3829 = vmatpush1.msra.mxu0 0.0
        %3830 = vmatprep.subr.mxu0 0.0
        %3831 = vmatpush1.msra.mxu0 0.0
        %3832 = vmatprep.subr.mxu0 0.0
        %3833 = vmatpush1.msra.mxu0 0.0
        %3834 = vmatprep.subr.mxu0 0.0
        %3835 = vmatpush1.msra.mxu0 0.0
        %3836 = vmatprep.mubr.f32.mxu0 0.0
        %3837 = vmatmul.mubr.f32.gmra.mrb[0].mxu0 %v3514
        %v3838 = vpop.f32.mrb[0].mxu0
        %v3839 = vadd.f32 0.0, %v3838
        %v3840 = vpop.f32.mrb[0].mxu0
        %3841 = vdwg.mxu0
        %v3842 = vadd.f32 %v3698, %v3768
        %v3843 = vadd.f32 %v3699, %v3770
        %v3844 = vxor.u32 %v3842, 2147483648
        %v3845 = vxor.u32 %v3843, 2147483648
        %v3846 = vmul.f32 %v3844, 1.442695
        %v3847 = vpow.pop %v3846
        %v3848 = vmul.f32 %v3845, 1.442695
        %v3849 = vpow.pop %v3848
        %v3850 = vadd.f32 %v3847, 1.0
        %v3851 = vadd.f32 %v3849, 1.0
        %v3852 = vrcp.pop %v3850
        %v3853 = vmul.f32 1.0, %v3852
        %v3854 = vrcp.pop %v3851
        %v3855 = vmul.f32 1.0, %v3854
        %v3856 = vadd.f32 %v3839, %v1352
        %v3857 = vmul.f32 %v3853, %v3856
        %v3858 = vadd.f32 %v3700, %v3857
        %v3859 = vtanh.pop %v3858
        %v3860 = vsub.f32 1.0, %v3855
        %v3861 = vmul.f32 %v3860, %v3859
        %v3862 = vmul.f32 %v3855, %v3514
        %v3863 = vadd.f32 %v3861, %v3862
        %s3864 = sadd.s32 %s1357, 1
        %v3865 = vstv %s3864
        %vm3866 = vcmp.lt.s32.totalorder %v3865, %v1354
        %v3867 = vsel %vm3866, 1, 0
        %3868 = vset.pattern.permute.xlu0 0
        %3869 = vperm.xlu0 %3868, %v3867
        %v3870 = vpop.permute.xlu0 %3869
        %vm3871 = vcmp.eq.s32.totalorder %v3870, 1
        %v3872 = vsel %vm3871, %v3863, %v3514
        %v3873 = vsel %vm3871, %v3863, 0.0
        %v3874 = vadd.f32 %v3516, %v3873
        %s3875 = smul.addr %s1541, 8
        %s3876 = scalar_lea.vmem [#allocation2], %s3875
        %v3877 = vld [vmem:[%s3876] sm:$0xff]
        %v3878 = vld [vmem:[%s3876 + $0x8] sm:$0xff]
        %v3879 = vld [vmem:[%s3876 + $0x10] sm:$0xff]
        %3880 = vmatprep.subr.mxu0 %v1245
        %3881 = vmatpush1.msra.mxu0 %v1244
        %3882 = vmatprep.subr.mxu0 %v1248
        %3883 = vmatpush1.msra.mxu0 %v1247
        %3884 = vmatprep.subr.mxu0 %v1251
        %3885 = vmatpush1.msra.mxu0 %v1250
        %3886 = vmatprep.subr.mxu0 %v1254
        %3887 = vmatpush1.msra.mxu0 %v1253
        %3888 = vmatprep.subr.mxu0 %v1257
        %3889 = vmatpush1.msra.mxu0 %v1256
        %3890 = vmatprep.subr.mxu0 %v1260
        %3891 = vmatpush1.msra.mxu0 %v1259
        %3892 = vmatprep.subr.mxu0 %v1263
        %3893 = vmatpush1.msra.mxu0 %v1262
        %3894 = vmatprep.subr.mxu0 %v1266
        %3895 = vmatpush1.msra.mxu0 %v1265
        %3896 = vmatprep.subr.mxu0 %v1269
        %3897 = vmatpush1.msra.mxu0 %v1268
        %3898 = vmatprep.subr.mxu0 %v1272
        %3899 = vmatpush1.msra.mxu0 %v1271
        %3900 = vmatprep.subr.mxu0 %v1275
        %3901 = vmatpush1.msra.mxu0 %v1274
        %3902 = vmatprep.subr.mxu0 %v1278
        %3903 = vmatpush1.msra.mxu0 %v1277
        %3904 = vmatprep.subr.mxu0 %v1281
        %3905 = vmatpush1.msra.mxu0 %v1280
        %3906 = vmatprep.subr.mxu0 %v1284
        %3907 = vmatpush1.msra.mxu0 %v1283
        %3908 = vmatprep.subr.mxu0 %v1287
        %3909 = vmatpush1.msra.mxu0 %v1286
        %3910 = vmatprep.subr.mxu0 %v1290
        %3911 = vmatpush1.msra.mxu0 %v1289
        %3912 = vmatprep.subr.mxu0 0.0
        %3913 = vmatpush1.msra.mxu0 0.0
        %3914 = vmatprep.subr.mxu0 0.0
        %3915 = vmatpush1.msra.mxu0 0.0
        %3916 = vmatprep.subr.mxu0 0.0
        %3917 = vmatpush1.msra.mxu0 0.0
        %3918 = vmatprep.subr.mxu0 0.0
        %3919 = vmatpush1.msra.mxu0 0.0
        %3920 = vmatprep.subr.mxu0 0.0
        %3921 = vmatpush1.msra.mxu0 0.0
        %3922 = vmatprep.subr.mxu0 0.0
        %3923 = vmatpush1.msra.mxu0 0.0
        %3924 = vmatprep.subr.mxu0 0.0
        %3925 = vmatpush1.msra.mxu0 0.0
        %3926 = vmatprep.subr.mxu0 0.0
        %3927 = vmatpush1.msra.mxu0 0.0
        %3928 = vmatprep.subr.mxu0 0.0
        %3929 = vmatpush1.msra.mxu0 0.0
        %3930 = vmatprep.subr.mxu0 0.0
        %3931 = vmatpush1.msra.mxu0 0.0
        %3932 = vmatprep.subr.mxu0 0.0
        %3933 = vmatpush1.msra.mxu0 0.0
        %3934 = vmatprep.subr.mxu0 0.0
        %3935 = vmatpush1.msra.mxu0 0.0
        %3936 = vmatprep.subr.mxu0 0.0
        %3937 = vmatpush1.msra.mxu0 0.0
        %3938 = vmatprep.subr.mxu0 0.0
        %3939 = vmatpush1.msra.mxu0 0.0
        %3940 = vmatprep.subr.mxu0 0.0
        %3941 = vmatpush1.msra.mxu0 0.0
        %3942 = vmatprep.subr.mxu0 0.0
        %3943 = vmatpush1.msra.mxu0 0.0
        %3944 = vmatprep.mubr.f32.mxu0 0.0
        %3945 = vmatmul.mubr.f32.gmra.mrb[0].mxu0 %v3693
        %v3946 = vpop.f32.mrb[0].mxu0
        %v3947 = vadd.f32 0.0, %v3946
        %v3948 = vpop.f32.mrb[0].mxu0
        %v3949 = vadd.f32 0.0, %v3948
        %3950 = vdwg.mxu0
        %3951 = vmatprep.subr.mxu0 0.0
        %3952 = vmatpush1.msra.mxu0 %v1246
        %3953 = vmatprep.subr.mxu0 0.0
        %3954 = vmatpush1.msra.mxu0 %v1249
        %3955 = vmatprep.subr.mxu0 0.0
        %3956 = vmatpush1.msra.mxu0 %v1252
        %3957 = vmatprep.subr.mxu0 0.0
        %3958 = vmatpush1.msra.mxu0 %v1255
        %3959 = vmatprep.subr.mxu0 0.0
        %3960 = vmatpush1.msra.mxu0 %v1258
        %3961 = vmatprep.subr.mxu0 0.0
        %3962 = vmatpush1.msra.mxu0 %v1261
        %3963 = vmatprep.subr.mxu0 0.0
        %3964 = vmatpush1.msra.mxu0 %v1264
        %3965 = vmatprep.subr.mxu0 0.0
        %3966 = vmatpush1.msra.mxu0 %v1267
        %3967 = vmatprep.subr.mxu0 0.0
        %3968 = vmatpush1.msra.mxu0 %v1270
        %3969 = vmatprep.subr.mxu0 0.0
        %3970 = vmatpush1.msra.mxu0 %v1273
        %3971 = vmatprep.subr.mxu0 0.0
        %3972 = vmatpush1.msra.mxu0 %v1276
        %3973 = vmatprep.subr.mxu0 0.0
        %3974 = vmatpush1.msra.mxu0 %v1279
        %3975 = vmatprep.subr.mxu0 0.0
        %3976 = vmatpush1.msra.mxu0 %v1282
        %3977 = vmatprep.subr.mxu0 0.0
        %3978 = vmatpush1.msra.mxu0 %v1285
        %3979 = vmatprep.subr.mxu0 0.0
        %3980 = vmatpush1.msra.mxu0 %v1288
        %3981 = vmatprep.subr.mxu0 0.0
        %3982 = vmatpush1.msra.mxu0 %v1291
        %3983 = vmatprep.subr.mxu0 0.0
        %3984 = vmatpush1.msra.mxu0 0.0
        %3985 = vmatprep.subr.mxu0 0.0
        %3986 = vmatpush1.msra.mxu0 0.0
        %3987 = vmatprep.subr.mxu0 0.0
        %3988 = vmatpush1.msra.mxu0 0.0
        %3989 = vmatprep.subr.mxu0 0.0
        %3990 = vmatpush1.msra.mxu0 0.0
        %3991 = vmatprep.subr.mxu0 0.0
        %3992 = vmatpush1.msra.mxu0 0.0
        %3993 = vmatprep.subr.mxu0 0.0
        %3994 = vmatpush1.msra.mxu0 0.0
        %3995 = vmatprep.subr.mxu0 0.0
        %3996 = vmatpush1.msra.mxu0 0.0
        %3997 = vmatprep.subr.mxu0 0.0
        %3998 = vmatpush1.msra.mxu0 0.0
        %3999 = vmatprep.subr.mxu0 0.0
        %4000 = vmatpush1.msra.mxu0 0.0
        %4001 = vmatprep.subr.mxu0 0.0
        %4002 = vmatpush1.msra.mxu0 0.0
        %4003 = vmatprep.subr.mxu0 0.0
        %4004 = vmatpush1.msra.mxu0 0.0
        %4005 = vmatprep.subr.mxu0 0.0
        %4006 = vmatpush1.msra.mxu0 0.0
        %4007 = vmatprep.subr.mxu0 0.0
        %4008 = vmatpush1.msra.mxu0 0.0
        %4009 = vmatprep.subr.mxu0 0.0
        %4010 = vmatpush1.msra.mxu0 0.0
        %4011 = vmatprep.subr.mxu0 0.0
        %4012 = vmatpush1.msra.mxu0 0.0
        %4013 = vmatprep.subr.mxu0 0.0
        %4014 = vmatpush1.msra.mxu0 0.0
        %4015 = vmatprep.mubr.f32.mxu0 0.0
        %4016 = vmatmul.mubr.f32.gmra.mrb[0].mxu0 %v3693
        %v4017 = vpop.f32.mrb[0].mxu0
        %v4018 = vadd.f32 0.0, %v4017
        %v4019 = vpop.f32.mrb[0].mxu0
        %4020 = vdwg.mxu0
        %v4021 = vadd.f32 %v3877, %v3947
        %v4022 = vadd.f32 %v3878, %v3949
        %v4023 = vxor.u32 %v4021, 2147483648
        %v4024 = vxor.u32 %v4022, 2147483648
        %v4025 = vmul.f32 %v4023, 1.442695
        %v4026 = vpow.pop %v4025
        %v4027 = vmul.f32 %v4024, 1.442695
        %v4028 = vpow.pop %v4027
        %v4029 = vadd.f32 %v4026, 1.0
        %v4030 = vadd.f32 %v4028, 1.0
        %v4031 = vrcp.pop %v4029
        %v4032 = vmul.f32 1.0, %v4031
        %v4033 = vrcp.pop %v4030
        %v4034 = vmul.f32 1.0, %v4033
        %v4035 = vadd.f32 %v4018, %v1345
        %v4036 = vmul.f32 %v4032, %v4035
        %v4037 = vadd.f32 %v3879, %v4036
        %v4038 = vtanh.pop %v4037
        %v4039 = vsub.f32 1.0, %v4034
        %v4040 = vmul.f32 %v4039, %v4038
        %v4041 = vmul.f32 %v4034, %v3693
        %v4042 = vadd.f32 %v4040, %v4041
        %s4043 = sadd.s32 %s1355, 7
        %v4044 = vstv %s4043
        %vm4045 = vcmp.lt.s32.totalorder %v4044, %v1354
        %v4046 = vsel %vm4045, 1, 0
        %4047 = vset.pattern.permute.xlu0 0
        %4048 = vperm.xlu0 %4047, %v4046
        %v4049 = vpop.permute.xlu0 %4048
        %vm4050 = vcmp.eq.s32.totalorder %v4049, 1
        %v4051 = vsel %vm4050, %v4042, %v3693
        %v4052 = vsel %vm4050, %v4042, 0.0
        %v4053 = vadd.f32 %v3695, %v4052
        %s4054 = smul.addr %s1362, 8
        %s4055 = scalar_lea.vmem [#allocation3], %s4054
        %v4056 = vld [vmem:[%s4055] sm:$0xff]
        %v4057 = vld [vmem:[%s4055 + $0x8] sm:$0xff]
        %v4058 = vld [vmem:[%s4055 + $0x10] sm:$0xff]
        %4059 = vmatprep.subr.mxu0 %v1293
        %4060 = vmatpush1.msra.mxu0 %v1292
        %4061 = vmatprep.subr.mxu0 %v1296
        %4062 = vmatpush1.msra.mxu0 %v1295
        %4063 = vmatprep.subr.mxu0 %v1299
        %4064 = vmatpush1.msra.mxu0 %v1298
        %4065 = vmatprep.subr.mxu0 %v1302
        %4066 = vmatpush1.msra.mxu0 %v1301
        %4067 = vmatprep.subr.mxu0 %v1305
        %4068 = vmatpush1.msra.mxu0 %v1304
        %4069 = vmatprep.subr.mxu0 %v1308
        %4070 = vmatpush1.msra.mxu0 %v1307
        %4071 = vmatprep.subr.mxu0 %v1311
        %4072 = vmatpush1.msra.mxu0 %v1310
        %4073 = vmatprep.subr.mxu0 %v1314
        %4074 = vmatpush1.msra.mxu0 %v1313
        %4075 = vmatprep.subr.mxu0 %v1317
        %4076 = vmatpush1.msra.mxu0 %v1316
        %4077 = vmatprep.subr.mxu0 %v1320
        %4078 = vmatpush1.msra.mxu0 %v1319
        %4079 = vmatprep.subr.mxu0 %v1323
        %4080 = vmatpush1.msra.mxu0 %v1322
        %4081 = vmatprep.subr.mxu0 %v1326
        %4082 = vmatpush1.msra.mxu0 %v1325
        %4083 = vmatprep.subr.mxu0 %v1329
        %4084 = vmatpush1.msra.mxu0 %v1328
        %4085 = vmatprep.subr.mxu0 %v1332
        %4086 = vmatpush1.msra.mxu0 %v1331
        %4087 = vmatprep.subr.mxu0 %v1335
        %4088 = vmatpush1.msra.mxu0 %v1334
        %4089 = vmatprep.subr.mxu0 %v1338
        %4090 = vmatpush1.msra.mxu0 %v1337
        %4091 = vmatprep.subr.mxu0 0.0
        %4092 = vmatpush1.msra.mxu0 0.0
        %4093 = vmatprep.subr.mxu0 0.0
        %4094 = vmatpush1.msra.mxu0 0.0
        %4095 = vmatprep.subr.mxu0 0.0
        %4096 = vmatpush1.msra.mxu0 0.0
        %4097 = vmatprep.subr.mxu0 0.0
        %4098 = vmatpush1.msra.mxu0 0.0
        %4099 = vmatprep.subr.mxu0 0.0
        %4100 = vmatpush1.msra.mxu0 0.0
        %4101 = vmatprep.subr.mxu0 0.0
        %4102 = vmatpush1.msra.mxu0 0.0
        %4103 = vmatprep.subr.mxu0 0.0
        %4104 = vmatpush1.msra.mxu0 0.0
        %4105 = vmatprep.subr.mxu0 0.0
        %4106 = vmatpush1.msra.mxu0 0.0
        %4107 = vmatprep.subr.mxu0 0.0
        %4108 = vmatpush1.msra.mxu0 0.0
        %4109 = vmatprep.subr.mxu0 0.0
        %4110 = vmatpush1.msra.mxu0 0.0
        %4111 = vmatprep.subr.mxu0 0.0
        %4112 = vmatpush1.msra.mxu0 0.0
        %4113 = vmatprep.subr.mxu0 0.0
        %4114 = vmatpush1.msra.mxu0 0.0
        %4115 = vmatprep.subr.mxu0 0.0
        %4116 = vmatpush1.msra.mxu0 0.0
        %4117 = vmatprep.subr.mxu0 0.0
        %4118 = vmatpush1.msra.mxu0 0.0
        %4119 = vmatprep.subr.mxu0 0.0
        %4120 = vmatpush1.msra.mxu0 0.0
        %4121 = vmatprep.subr.mxu0 0.0
        %4122 = vmatpush1.msra.mxu0 0.0
        %4123 = vmatprep.mubr.f32.mxu0 0.0
        %4124 = vmatmul.mubr.f32.gmra.mrb[0].mxu0 %v3872
        %v4125 = vpop.f32.mrb[0].mxu0
        %v4126 = vadd.f32 0.0, %v4125
        %v4127 = vpop.f32.mrb[0].mxu0
        %v4128 = vadd.f32 0.0, %v4127
        %4129 = vdwg.mxu0
        %4130 = vmatprep.subr.mxu0 0.0
        %4131 = vmatpush1.msra.mxu0 %v1294
        %4132 = vmatprep.subr.mxu0 0.0
        %4133 = vmatpush1.msra.mxu0 %v1297
        %4134 = vmatprep.subr.mxu0 0.0
        %4135 = vmatpush1.msra.mxu0 %v1300
        %4136 = vmatprep.subr.mxu0 0.0
        %4137 = vmatpush1.msra.mxu0 %v1303
        %4138 = vmatprep.subr.mxu0 0.0
        %4139 = vmatpush1.msra.mxu0 %v1306
        %4140 = vmatprep.subr.mxu0 0.0
        %4141 = vmatpush1.msra.mxu0 %v1309
        %4142 = vmatprep.subr.mxu0 0.0
        %4143 = vmatpush1.msra.mxu0 %v1312
        %4144 = vmatprep.subr.mxu0 0.0
        %4145 = vmatpush1.msra.mxu0 %v1315
        %4146 = vmatprep.subr.mxu0 0.0
        %4147 = vmatpush1.msra.mxu0 %v1318
        %4148 = vmatprep.subr.mxu0 0.0
        %4149 = vmatpush1.msra.mxu0 %v1321
        %4150 = vmatprep.subr.mxu0 0.0
        %4151 = vmatpush1.msra.mxu0 %v1324
        %4152 = vmatprep.subr.mxu0 0.0
        %4153 = vmatpush1.msra.mxu0 %v1327
        %4154 = vmatprep.subr.mxu0 0.0
        %4155 = vmatpush1.msra.mxu0 %v1330
        %4156 = vmatprep.subr.mxu0 0.0
        %4157 = vmatpush1.msra.mxu0 %v1333
        %4158 = vmatprep.subr.mxu0 0.0
        %4159 = vmatpush1.msra.mxu0 %v1336
        %4160 = vmatprep.subr.mxu0 0.0
        %4161 = vmatpush1.msra.mxu0 %v1339
        %4162 = vmatprep.subr.mxu0 0.0
        %4163 = vmatpush1.msra.mxu0 0.0
        %4164 = vmatprep.subr.mxu0 0.0
        %4165 = vmatpush1.msra.mxu0 0.0
        %4166 = vmatprep.subr.mxu0 0.0
        %4167 = vmatpush1.msra.mxu0 0.0
        %4168 = vmatprep.subr.mxu0 0.0
        %4169 = vmatpush1.msra.mxu0 0.0
        %4170 = vmatprep.subr.mxu0 0.0
        %4171 = vmatpush1.msra.mxu0 0.0
        %4172 = vmatprep.subr.mxu0 0.0
        %4173 = vmatpush1.msra.mxu0 0.0
        %4174 = vmatprep.subr.mxu0 0.0
        %4175 = vmatpush1.msra.mxu0 0.0
        %4176 = vmatprep.subr.mxu0 0.0
        %4177 = vmatpush1.msra.mxu0 0.0
        %4178 = vmatprep.subr.mxu0 0.0
        %4179 = vmatpush1.msra.mxu0 0.0
        %4180 = vmatprep.subr.mxu0 0.0
        %4181 = vmatpush1.msra.mxu0 0.0
        %4182 = vmatprep.subr.mxu0 0.0
        %4183 = vmatpush1.msra.mxu0 0.0
        %4184 = vmatprep.subr.mxu0 0.0
        %4185 = vmatpush1.msra.mxu0 0.0
        %4186 = vmatprep.subr.mxu0 0.0
        %4187 = vmatpush1.msra.mxu0 0.0
        %4188 = vmatprep.subr.mxu0 0.0
        %4189 = vmatpush1.msra.mxu0 0.0
        %4190 = vmatprep.subr.mxu0 0.0
        %4191 = vmatpush1.msra.mxu0 0.0
        %4192 = vmatprep.subr.mxu0 0.0
        %4193 = vmatpush1.msra.mxu0 0.0
        %4194 = vmatprep.mubr.f32.mxu0 0.0
        %4195 = vmatmul.mubr.f32.gmra.mrb[0].mxu0 %v3872
        %v4196 = vpop.f32.mrb[0].mxu0
        %v4197 = vadd.f32 0.0, %v4196
        %v4198 = vpop.f32.mrb[0].mxu0
        %4199 = vdwg.mxu0
        %v4200 = vadd.f32 %v4056, %v4126
        %v4201 = vadd.f32 %v4057, %v4128
        %v4202 = vxor.u32 %v4200, 2147483648
        %v4203 = vxor.u32 %v4201, 2147483648
        %v4204 = vmul.f32 %v4202, 1.442695
        %v4205 = vpow.pop %v4204
        %v4206 = vmul.f32 %v4203, 1.442695
        %v4207 = vpow.pop %v4206
        %v4208 = vadd.f32 %v4205, 1.0
        %v4209 = vadd.f32 %v4207, 1.0
        %v4210 = vrcp.pop %v4208
        %v4211 = vmul.f32 1.0, %v4210
        %v4212 = vrcp.pop %v4209
        %v4213 = vmul.f32 1.0, %v4212
        %v4214 = vadd.f32 %v4197, %v1352
        %v4215 = vmul.f32 %v4211, %v4214
        %v4216 = vadd.f32 %v4058, %v4215
        %v4217 = vtanh.pop %v4216
        %v4218 = vsub.f32 1.0, %v4213
        %v4219 = vmul.f32 %v4218, %v4217
        %v4220 = vmul.f32 %v4213, %v3872
        %v4221 = vadd.f32 %v4219, %v4220
        %v4222 = vstv %s1357
        %vm4223 = vcmp.lt.s32.totalorder %v4222, %v1354
        %v4224 = vsel %vm4223, 1, 0
        %4225 = vset.pattern.permute.xlu0 0
        %4226 = vperm.xlu0 %4225, %v4224
        %v4227 = vpop.permute.xlu0 %4226
        %vm4228 = vcmp.eq.s32.totalorder %v4227, 1
        %v4229 = vsel %vm4228, %v4221, %v3872
        %v4230 = vsel %vm4228, %v4221, 0.0
        %v4231 = vadd.f32 %v3874, %v4230
        %4232 = vst [vmem:[#allocation4] sm:$0xff] %v4051
        %4233 = vst [vmem:[#allocation5] sm:$0xff] %v4053
        %4234 = vst [vmem:[#allocation6] sm:$0xff] %v4229
        %4235 = vst [vmem:[#allocation7] sm:$0xff] %v4231
        %p4236 = scmp.eq.s32.totalorder %s36, 1
        // Predicated region
        $region85: #{tpu_custom_call.1} parent=79 // pred_check
          %p4237 = pneg %p4236
        $region86: #{tpu_custom_call.1} parent=79 // pred_check_branch
          %4239 = sbr.rel (%p4237) target = $region88
        $region87: #{tpu_custom_call.1} parent=79 // pred_region
          %v4240 = vcvt.s32.f32 %v1354
          %v4241 = vmax.f32 %v4240, 1.0
          %v4242 = vrcp.pop %v4241
          %v4243 = vmul.f32 1.0, %v4242
          %4245 = vset.pattern.permute.xlu0 0
          %4246 = vperm.xlu0 %4245, %v4243
          %v4247 = vpop.permute.xlu0 %4246
          %v4249 = vmul.f32 %v4053, %v4247
          %v4250 = vmul.f32 %v4231, %v4247
          %4251 = vst [vmem:[#allocation12] sm:$0xff] %v4249
          %4252 = vst [vmem:[#allocation12 + $0x8] sm:$0xff] %v4250
          %v4253 = vld [vmem:[%s11] sm:$0xff]
          %v4254 = vld [vmem:[%s11 + $0x8] sm:$0xff]
          %v4255 = vld [vmem:[%s11 + $0x10] sm:$0xff]
          %v4256 = vld [vmem:[%s11 + $0x18] sm:$0xff]
          %v4257 = vld [vmem:[%s11 + $0x20] sm:$0xff]
          %v4258 = vld [vmem:[%s11 + $0x28] sm:$0xff]
          %v4259 = vld [vmem:[%s11 + $0x30] sm:$0xff]
          %v4260 = vld [vmem:[%s11 + $0x38] sm:$0xff]
          %v4261 = vld [vmem:[%s11 + $0x40] sm:$0xff]
          %v4262 = vld [vmem:[%s11 + $0x48] sm:$0xff]
          %v4263 = vld [vmem:[%s11 + $0x50] sm:$0xff]
          %v4264 = vld [vmem:[%s11 + $0x58] sm:$0xff]
          %v4265 = vld [vmem:[%s11 + $0x60] sm:$0xff]
          %v4266 = vld [vmem:[%s11 + $0x68] sm:$0xff]
          %v4267 = vld [vmem:[%s11 + $0x70] sm:$0xff]
          %v4268 = vld [vmem:[%s11 + $0x78] sm:$0xff]
          %v4269 = vld [vmem:[%s11 + $0x80] sm:$0xff]
          %v4270 = vld [vmem:[%s11 + $0x88] sm:$0xff]
          %v4271 = vld [vmem:[%s11 + $0x90] sm:$0xff]
          %v4272 = vld [vmem:[%s11 + $0x98] sm:$0xff]
          %v4273 = vld [vmem:[%s11 + $0xa0] sm:$0xff]
          %v4274 = vld [vmem:[%s11 + $0xa8] sm:$0xff]
          %v4275 = vld [vmem:[%s11 + $0xb0] sm:$0xff]
          %v4276 = vld [vmem:[%s11 + $0xb8] sm:$0xff]
          %v4277 = vld [vmem:[%s11 + $0xc0] sm:$0xff]
          %v4278 = vld [vmem:[%s11 + $0xc8] sm:$0xff]
          %v4279 = vld [vmem:[%s11 + $0xd0] sm:$0xff]
          %v4280 = vld [vmem:[%s11 + $0xd8] sm:$0xff]
          %v4281 = vld [vmem:[%s11 + $0xe0] sm:$0xff]
          %v4282 = vld [vmem:[%s11 + $0xe8] sm:$0xff]
          %v4283 = vld [vmem:[%s11 + $0xf0] sm:$0xff]
          %v4284 = vld [vmem:[%s11 + $0xf8] sm:$0xff]
          %v4285 = vld [vmem:[%s12] sm:$0x1]
          %v4287 = vlaneseq
          %v4288 = vshrl.u32 %v4287, 7
          %v4289 = vsub.s32 0, %v4288
          %v4290 = vrot.slane %v4285, %v4289
          %4292 = vmatprep.subr.mxu0 0.0
          %4293 = vmatpush1.msra.mxu0 %v4253
          %4294 = vmatprep.subr.mxu0 0.0
          %4295 = vmatpush1.msra.mxu0 %v4254
          %4296 = vmatprep.subr.mxu0 0.0
          %4297 = vmatpush1.msra.mxu0 %v4255
          %4298 = vmatprep.subr.mxu0 0.0
          %4299 = vmatpush1.msra.mxu0 %v4256
          %4300 = vmatprep.subr.mxu0 0.0
          %4301 = vmatpush1.msra.mxu0 %v4257
          %4302 = vmatprep.subr.mxu0 0.0
          %4303 = vmatpush1.msra.mxu0 %v4258
          %4304 = vmatprep.subr.mxu0 0.0
          %4305 = vmatpush1.msra.mxu0 %v4259
          %4306 = vmatprep.subr.mxu0 0.0
          %4307 = vmatpush1.msra.mxu0 %v4260
          %4308 = vmatprep.subr.mxu0 0.0
          %4309 = vmatpush1.msra.mxu0 %v4261
          %4310 = vmatprep.subr.mxu0 0.0
          %4311 = vmatpush1.msra.mxu0 %v4262
          %4312 = vmatprep.subr.mxu0 0.0
          %4313 = vmatpush1.msra.mxu0 %v4263
          %4314 = vmatprep.subr.mxu0 0.0
          %4315 = vmatpush1.msra.mxu0 %v4264
          %4316 = vmatprep.subr.mxu0 0.0
          %4317 = vmatpush1.msra.mxu0 %v4265
          %4318 = vmatprep.subr.mxu0 0.0
          %4319 = vmatpush1.msra.mxu0 %v4266
          %4320 = vmatprep.subr.mxu0 0.0
          %4321 = vmatpush1.msra.mxu0 %v4267
          %4322 = vmatprep.subr.mxu0 0.0
          %4323 = vmatpush1.msra.mxu0 %v4268
          %4324 = vmatprep.subr.mxu0 0.0
          %4325 = vmatpush1.msra.mxu0 %v4269
          %4326 = vmatprep.subr.mxu0 0.0
          %4327 = vmatpush1.msra.mxu0 %v4270
          %4328 = vmatprep.subr.mxu0 0.0
          %4329 = vmatpush1.msra.mxu0 %v4271
          %4330 = vmatprep.subr.mxu0 0.0
          %4331 = vmatpush1.msra.mxu0 %v4272
          %4332 = vmatprep.subr.mxu0 0.0
          %4333 = vmatpush1.msra.mxu0 %v4273
          %4334 = vmatprep.subr.mxu0 0.0
          %4335 = vmatpush1.msra.mxu0 %v4274
          %4336 = vmatprep.subr.mxu0 0.0
          %4337 = vmatpush1.msra.mxu0 %v4275
          %4338 = vmatprep.subr.mxu0 0.0
          %4339 = vmatpush1.msra.mxu0 %v4276
          %4340 = vmatprep.subr.mxu0 0.0
          %4341 = vmatpush1.msra.mxu0 %v4277
          %4342 = vmatprep.subr.mxu0 0.0
          %4343 = vmatpush1.msra.mxu0 %v4278
          %4344 = vmatprep.subr.mxu0 0.0
          %4345 = vmatpush1.msra.mxu0 %v4279
          %4346 = vmatprep.subr.mxu0 0.0
          %4347 = vmatpush1.msra.mxu0 %v4280
          %4348 = vmatprep.subr.mxu0 0.0
          %4349 = vmatpush1.msra.mxu0 %v4281
          %4350 = vmatprep.subr.mxu0 0.0
          %4351 = vmatpush1.msra.mxu0 %v4282
          %4352 = vmatprep.subr.mxu0 0.0
          %4353 = vmatpush1.msra.mxu0 %v4283
          %4354 = vmatprep.subr.mxu0 0.0
          %4355 = vmatpush1.msra.mxu0 %v4284
          %4356 = vmatprep.mubr.f32.mxu0 %v4250
          %4357 = vmatmul.mubr.f32.gmra.mrb[0].mxu0 %v4249
          %v4358 = vpop.f32.mrb[0].mxu0
          %v4359 = vadd.f32 %v4290, %v4358
          %v4360 = vpop.f32.mrb[0].mxu0
          %4361 = vdwg.mxu0
          %vm4362 = vcmask 64512
          %4363 = vst.msk [vmem:[#allocation8] sm:$0xff] %vm4362, %v4359
          %v4364 = vld [vmem:[%s13] sm:$0xff]
          %v4365 = vld [vmem:[%s13 + $0x8] sm:$0xff]
          %v4366 = vld [vmem:[%s13 + $0x10] sm:$0xff]
          %v4367 = vld [vmem:[%s13 + $0x18] sm:$0xff]
          %v4368 = vld [vmem:[%s13 + $0x20] sm:$0xff]
          %v4369 = vld [vmem:[%s13 + $0x28] sm:$0xff]
          %v4370 = vld [vmem:[%s13 + $0x30] sm:$0xff]
          %v4371 = vld [vmem:[%s13 + $0x38] sm:$0xff]
          %v4372 = vld [vmem:[%s13 + $0x40] sm:$0xff]
          %v4373 = vld [vmem:[%s13 + $0x48] sm:$0xff]
          %v4374 = vld [vmem:[%s13 + $0x50] sm:$0xff]
          %v4375 = vld [vmem:[%s13 + $0x58] sm:$0xff]
          %v4376 = vld [vmem:[%s13 + $0x60] sm:$0xff]
          %v4377 = vld [vmem:[%s13 + $0x68] sm:$0xff]
          %v4378 = vld [vmem:[%s13 + $0x70] sm:$0xff]
          %v4379 = vld [vmem:[%s13 + $0x78] sm:$0xff]
          %v4380 = vld [vmem:[%s13 + $0x80] sm:$0xff]
          %v4381 = vld [vmem:[%s13 + $0x88] sm:$0xff]
          %v4382 = vld [vmem:[%s13 + $0x90] sm:$0xff]
          %v4383 = vld [vmem:[%s13 + $0x98] sm:$0xff]
          %v4384 = vld [vmem:[%s13 + $0xa0] sm:$0xff]
          %v4385 = vld [vmem:[%s13 + $0xa8] sm:$0xff]
          %v4386 = vld [vmem:[%s13 + $0xb0] sm:$0xff]
          %v4387 = vld [vmem:[%s13 + $0xb8] sm:$0xff]
          %v4388 = vld [vmem:[%s13 + $0xc0] sm:$0xff]
          %v4389 = vld [vmem:[%s13 + $0xc8] sm:$0xff]
          %v4390 = vld [vmem:[%s13 + $0xd0] sm:$0xff]
          %v4391 = vld [vmem:[%s13 + $0xd8] sm:$0xff]
          %v4392 = vld [vmem:[%s13 + $0xe0] sm:$0xff]
          %v4393 = vld [vmem:[%s13 + $0xe8] sm:$0xff]
          %v4394 = vld [vmem:[%s13 + $0xf0] sm:$0xff]
          %v4395 = vld [vmem:[%s13 + $0xf8] sm:$0xff]
          %v4396 = vld [vmem:[%s14] sm:$0x1]
          %v4398 = vlaneseq
          %v4399 = vshrl.u32 %v4398, 7
          %v4400 = vsub.s32 0, %v4399
          %v4401 = vrot.slane %v4396, %v4400
          %4403 = vmatprep.subr.mxu0 0.0
          %4404 = vmatpush1.msra.mxu0 %v4364
          %4405 = vmatprep.subr.mxu0 0.0
          %4406 = vmatpush1.msra.mxu0 %v4365
          %4407 = vmatprep.subr.mxu0 0.0
          %4408 = vmatpush1.msra.mxu0 %v4366
          %4409 = vmatprep.subr.mxu0 0.0
          %4410 = vmatpush1.msra.mxu0 %v4367
          %4411 = vmatprep.subr.mxu0 0.0
          %4412 = vmatpush1.msra.mxu0 %v4368
          %4413 = vmatprep.subr.mxu0 0.0
          %4414 = vmatpush1.msra.mxu0 %v4369
          %4415 = vmatprep.subr.mxu0 0.0
          %4416 = vmatpush1.msra.mxu0 %v4370
          %4417 = vmatprep.subr.mxu0 0.0
          %4418 = vmatpush1.msra.mxu0 %v4371
          %4419 = vmatprep.subr.mxu0 0.0
          %4420 = vmatpush1.msra.mxu0 %v4372
          %4421 = vmatprep.subr.mxu0 0.0
          %4422 = vmatpush1.msra.mxu0 %v4373
          %4423 = vmatprep.subr.mxu0 0.0
          %4424 = vmatpush1.msra.mxu0 %v4374
          %4425 = vmatprep.subr.mxu0 0.0
          %4426 = vmatpush1.msra.mxu0 %v4375
          %4427 = vmatprep.subr.mxu0 0.0
          %4428 = vmatpush1.msra.mxu0 %v4376
          %4429 = vmatprep.subr.mxu0 0.0
          %4430 = vmatpush1.msra.mxu0 %v4377
          %4431 = vmatprep.subr.mxu0 0.0
          %4432 = vmatpush1.msra.mxu0 %v4378
          %4433 = vmatprep.subr.mxu0 0.0
          %4434 = vmatpush1.msra.mxu0 %v4379
          %4435 = vmatprep.subr.mxu0 0.0
          %4436 = vmatpush1.msra.mxu0 %v4380
          %4437 = vmatprep.subr.mxu0 0.0
          %4438 = vmatpush1.msra.mxu0 %v4381
          %4439 = vmatprep.subr.mxu0 0.0
          %4440 = vmatpush1.msra.mxu0 %v4382
          %4441 = vmatprep.subr.mxu0 0.0
          %4442 = vmatpush1.msra.mxu0 %v4383
          %4443 = vmatprep.subr.mxu0 0.0
          %4444 = vmatpush1.msra.mxu0 %v4384
          %4445 = vmatprep.subr.mxu0 0.0
          %4446 = vmatpush1.msra.mxu0 %v4385
          %4447 = vmatprep.subr.mxu0 0.0
          %4448 = vmatpush1.msra.mxu0 %v4386
          %4449 = vmatprep.subr.mxu0 0.0
          %4450 = vmatpush1.msra.mxu0 %v4387
          %4451 = vmatprep.subr.mxu0 0.0
          %4452 = vmatpush1.msra.mxu0 %v4388
          %4453 = vmatprep.subr.mxu0 0.0
          %4454 = vmatpush1.msra.mxu0 %v4389
          %4455 = vmatprep.subr.mxu0 0.0
          %4456 = vmatpush1.msra.mxu0 %v4390
          %4457 = vmatprep.subr.mxu0 0.0
          %4458 = vmatpush1.msra.mxu0 %v4391
          %4459 = vmatprep.subr.mxu0 0.0
          %4460 = vmatpush1.msra.mxu0 %v4392
          %4461 = vmatprep.subr.mxu0 0.0
          %4462 = vmatpush1.msra.mxu0 %v4393
          %4463 = vmatprep.subr.mxu0 0.0
          %4464 = vmatpush1.msra.mxu0 %v4394
          %4465 = vmatprep.subr.mxu0 0.0
          %4466 = vmatpush1.msra.mxu0 %v4395
          %4467 = vmatprep.mubr.f32.mxu0 %v4250
          %4468 = vmatmul.mubr.f32.gmra.mrb[0].mxu0 %v4249
          %v4469 = vpop.f32.mrb[0].mxu0
          %v4470 = vadd.f32 %v4401, %v4469
          %v4471 = vpop.f32.mrb[0].mxu0
          %4472 = vdwg.mxu0
          %v4473 = vmax.f32 %v4470, 0.0
          %v4474 = vand.u32 2147483647, %v4470
          %v4475 = vsub.f32 0.0, %v4474
          %v4476 = vmul.f32 %v4475, 1.442695
          %v4477 = vpow.pop %v4476
          %v4478 = vadd.f32 %v4477, 1.0
          %v4479 = vlog2.pop %v4478
          %v4480 = vmul.f32 %v4479, 0.6931472
          %v4481 = vadd.f32 %v4473, %v4480
          %4482 = vst.msk [vmem:[#allocation10] sm:$0xff] %vm4362, %v4481
        $region88: #{tpu_custom_call.1} parent=79 // pred_fallthru
          _
        // Predicated region
        $region89: #{tpu_custom_call.1} parent=79 // pred_check
          %p4483 = pneg %p397
        $region90: #{tpu_custom_call.1} parent=79 // pred_check_branch
          %4485 = sbr.rel (%p4483) target = $region92
        $region91: #{tpu_custom_call.1} parent=79 // pred_region
          %s4487 = ssub.s32 128, 128
          %4488 = vsyncadd [#allocation9], %s4487
          %s4489 = smul.addr %s35, 128
          %s4490 = scalar_lea.hbm %s15, %s4489
          %s4492 = sshll.u32 [#allocation8], 4
          %s4493 = int_to_ptr.vmem [resolvable:$true] %s4492
          %4495 = dma.vmem_to_hbm [thread:$0]  %s4493, 128, %s4490, [#allocation9]
        $region92: #{tpu_custom_call.1} parent=79 // pred_fallthru
          _
        // Predicated region
        $region93: #{tpu_custom_call.1} parent=79 // pred_check
          %p4496 = pneg %p423
        $region94: #{tpu_custom_call.1} parent=79 // pred_check_branch
          %4498 = sbr.rel (%p4496) target = $region96
        $region95: #{tpu_custom_call.1} parent=79 // pred_region
          %s4500 = ssub.s32 128, 128
          %4501 = vsyncadd [#allocation11], %s4500
          %s4502 = smul.addr %s35, 128
          %s4503 = scalar_lea.hbm %s16, %s4502
          %s4505 = sshll.u32 [#allocation10], 4
          %s4506 = int_to_ptr.vmem [resolvable:$true] %s4505
          %4508 = dma.vmem_to_hbm [thread:$0]  %s4506, 128, %s4503, [#allocation11]
        $region96: #{tpu_custom_call.1} parent=79 // pred_fallthru
          _
        // Predicated region
        $region97: #{tpu_custom_call.1} parent=79 // pred_check
          %p4509 = pneg %p449
        $region98: #{tpu_custom_call.1} parent=79 // pred_check_branch
          %4511 = sbr.rel (%p4509) target = $region100
        $region99: #{tpu_custom_call.1} parent=79 // pred_region
          %s4513 = ssub.s32 256, 256
          %4514 = vsyncadd [#allocation11], %s4513
          %s4515 = smul.addr %s35, 2
          %s4516 = smul.addr %s4515, 128
          %s4517 = scalar_lea.hbm %s17, %s4516
          %s4519 = sshll.u32 [#allocation12], 4
          %s4520 = int_to_ptr.vmem [resolvable:$true] %s4519
          %4522 = dma.vmem_to_hbm [thread:$0]  %s4520, 256, %s4517, [#allocation11]
        $region100: #{tpu_custom_call.1} parent=79 // pred_fallthru
          _
        // Predicated region
        $region101: #{tpu_custom_call.1} parent=79 // pred_check
          %p4523 = pneg %p397
        $region102: #{tpu_custom_call.1} parent=79 // pred_check_branch
          %4525 = sbr.rel (%p4523) target = $region104
        $region103: #{tpu_custom_call.1} parent=79 // pred_region
          %4526 = dma.done [#allocation9], 128
        $region104: #{tpu_custom_call.1} parent=79 // pred_fallthru
          _
        // Predicated region
        $region105: #{tpu_custom_call.1} parent=79 // pred_check
          %p4527 = pneg %p423
        $region106: #{tpu_custom_call.1} parent=79 // pred_check_branch
          %4529 = sbr.rel (%p4527) target = $region108
        $region107: #{tpu_custom_call.1} parent=79 // pred_region
          %4530 = dma.done [#allocation11], 128
        $region108: #{tpu_custom_call.1} parent=79 // pred_fallthru
          _
        // Predicated region
        $region109: #{tpu_custom_call.1} parent=79 // pred_check
          %p4531 = pneg %p449
        $region110: #{tpu_custom_call.1} parent=79 // pred_check_branch
          %4533 = sbr.rel (%p4531) target = $region112
        $region111: #{tpu_custom_call.1} parent=79 // pred_region
          %4534 = dma.done [#allocation11], 256
        $region112: #{tpu_custom_call.1} parent=79 // pred_fallthru
          _
      $region80: #{tpu_custom_call.1} parent=5 // pred_fallthru
        _
      %p4535 = scmp.le.s32.totalorder 2, %s26
      // Predicated region
      $region113: #{tpu_custom_call.1} parent=5 // pred_check
        %p4536 = pneg %p4535
      $region114: #{tpu_custom_call.1} parent=5 // pred_check_branch
        %4538 = sbr.rel (%p4536) target = $region116
      $region115: #{tpu_custom_call.1} parent=5 // pred_region
        %s4539 = ssub.s32 %s26, 2
      $region116: #{tpu_custom_call.1} parent=5 // pred_fallthru
        _
    $region6: #{tpu_custom_call.1} parent=1 // loop_footer
      %s30 = sadd.s32 1, %s26
    $region7: #{tpu_custom_call.1} parent=1 // loop_footer_branch
      %25 = sbr.rel target = $region3
    $region8: #{tpu_custom_call.1} parent=1 // loop_exit
      _
    %4540 = vsyncpa [#allocation9], 1
    %s4541 = scalar_lea.sflag [#allocation9], 1
    %4542 = vsyncpa %s4541, 1
    %4543 = vsyncpa [#allocation11], 1

</llo_original>
